<compile_context>
chip_gen: v7x
topology: tpu7x:2x2x1
jax: 0.10.0
libtpu: 0.0.40
codegen_flags: <defaults>
</compile_context>

<pallas_src>
import functools
import math

import jax
import jax.numpy as jnp
from jax.experimental import pallas as pl
from jax.experimental.pallas import tpu as pltpu

# ----------------------------- config ---------------------------------------
NUM_CLASSES = 22          # cfg.num_classes
HIDDEN = 32               # scaled-down stand-in for 768
NUM_HEADS = 2
HEAD_DIM = HIDDEN // NUM_HEADS
INTERMEDIATE = 64
NUM_LAYERS = 2
VOCAB = 64
MAX_POS = 16
SEQ = 8
BATCH = 2
LN_EPS = 1e-12            # BERT LayerNorm eps
LANE = 128                # lane width of the packed parameter table
CLS_PAD = 128             # lane-dense padded classifier width (real = 22)
ROWS_PER_LAYER = 8        # qkv_b, ao_b, a_ln_g, a_ln_b, f1_b, f2_b, f_ln_g, f_ln_b


def _rows(batch, seq):
    """Row offsets inside the packed [R, 128] parameter table."""
    r_pos = VOCAB                          # pos+type embedding, pre-tiled B*S rows
    r_emb_g = r_pos + batch * seq
    return dict(word=0, pos=r_pos, emb_g=r_emb_g, emb_b=r_emb_g + 1,
                pool_b=r_emb_g + 2, cls_b=r_emb_g + 3, layer0=r_emb_g + 4)


# --------------------------- in-kernel helpers --------------------------------
def _layernorm(x, g, b):
    """LayerNorm over the last dim (g, b broadcast as [1, H])."""
    mean = jnp.mean(x, axis=-1, keepdims=True)
    xc = x - mean
    var = jnp.mean(xc * xc, axis=-1, keepdims=True)
    return xc * jax.lax.rsqrt(var + LN_EPS) * g + b


def _gelu(x):
    # TODO(synk): BERT uses exact erf-GELU; tanh approximation used here.
    c = math.sqrt(2.0 / math.pi)
    return 0.5 * x * (1.0 + jnp.tanh(c * (x + 0.044715 * x * x * x)))


# ----------------------------- fused kernel -----------------------------------
def _bert_fused_kernel(ids_ref, mask_ref, ptab_ref, wa_ref, f2_ref, head_ref,
                       o_ref, *, batch, seq):
    """Whole BERT-classifier forward in one grid step; x stays VMEM-resident.

    ids_ref : [B*S, 1] int32         token ids
    mask_ref: [B, S]   float32       attention mask (1 = keep)
    ptab_ref: [R, 128] float32       word/pos/type emb + every LN g/b + every bias
    wa_ref  : [L, H, 3H+H+I]         fused [Wqkv | Wattn_out | Wffn1] per layer
    f2_ref  : [L, I, H]              Wffn2 per layer
    head_ref: [H, H+128]             [Wpool | Wcls (padded to 128 lanes)]
    o_ref   : [B, 128]               padded logits (first 22 lanes are real)
    """
    rows = _rows(batch, seq)
    n_tok = batch * seq
    scale = 1.0 / math.sqrt(HEAD_DIM)

    # ---- embeddings: one-hot @ word_emb on the idle MXU (no gather glue) ----
    ids = ids_ref[...]                                            # [B*S, 1] int32
    vocab_iota = jax.lax.broadcasted_iota(jnp.int32, (n_tok, VOCAB), 1)
    onehot = (ids == vocab_iota).astype(jnp.float32)              # [B*S, VOCAB]
    x = jnp.dot(onehot, ptab_ref[0:VOCAB, 0:HIDDEN],
                preferred_element_type=jnp.float32)               # [B*S, H]
    x = x + ptab_ref[rows["pos"]:rows["pos"] + n_tok, 0:HIDDEN]   # pos + type(0)
    x = _layernorm(x,
                   ptab_ref[rows["emb_g"]:rows["emb_g"] + 1, 0:HIDDEN],
                   ptab_ref[rows["emb_b"]:rows["emb_b"] + 1, 0:HIDDEN])
    # embedding dropout is identity at inference

    # ---- additive attention-mask bias, expanded ONCE to [nH*B, 1, S] ----
    neg = (1.0 - mask_ref[...]) * -1e9                            # [B, S]
    neg3 = neg.reshape(batch, 1, seq)
    bias_z = jnp.concatenate([neg3] * NUM_HEADS, axis=0)          # [nH*B, 1, S]

    for l in range(NUM_LAYERS):                                   # static unroll
        base = rows["layer0"] + l * ROWS_PER_LAYER
        qkv_b = ptab_ref[base + 0:base + 1, 0:3 * HIDDEN]
        ao_b = ptab_ref[base + 1:base + 2, 0:HIDDEN]
        a_g = ptab_ref[base + 2:base + 3, 0:HIDDEN]
        a_b = ptab_ref[base + 3:base + 4, 0:HIDDEN]
        f1_b = ptab_ref[base + 4:base + 5, 0:INTERMEDIATE]
        f2_b = ptab_ref[base + 5:base + 6, 0:HIDDEN]
        f_g = ptab_ref[base + 6:base + 7, 0:HIDDEN]
        f_b = ptab_ref[base + 7:base + 8, 0:HIDDEN]
        wa = wa_ref[l]                                            # [H, 3H+H+I]
        qkv_w = wa[:, 0:3 * HIDDEN]
        ao_w = wa[:, 3 * HIDDEN:4 * HIDDEN]
        f1_w = wa[:, 4 * HIDDEN:4 * HIDDEN + INTERMEDIATE]

        # -- self-attention: fused QKV matmul; heads stacked into the batch
        #    dim of two batched dot_generals; ONE stacked softmax --
        qkv = jnp.dot(x, qkv_w, preferred_element_type=jnp.float32) + qkv_b
        qkv3 = qkv.reshape(batch, seq, 3 * HIDDEN)                # [B, S, 3H]
        q = jnp.concatenate(
            [qkv3[:, :, h * HEAD_DIM:(h + 1) * HEAD_DIM]
             for h in range(NUM_HEADS)], axis=0)                  # [nH*B, S, d]
        k = jnp.concatenate(
            [qkv3[:, :, HIDDEN + h * HEAD_DIM:HIDDEN + (h + 1) * HEAD_DIM]
             for h in range(NUM_HEADS)], axis=0)
        v = jnp.concatenate(
            [qkv3[:, :, 2 * HIDDEN + h * HEAD_DIM:2 * HIDDEN + (h + 1) * HEAD_DIM]
             for h in range(NUM_HEADS)], axis=0)

        s = jnp.einsum('zqd,zkd->zqk', q, k,
                       preferred_element_type=jnp.float32) * scale + bias_z
        s = s - jnp.max(s, axis=-1, keepdims=True)
        p = jnp.exp(s)
        p = p * pl.reciprocal(jnp.sum(p, axis=-1, keepdims=True), approx=True)
        ctx = jnp.einsum('zqk,zkd->zqd', p, v,
                         preferred_element_type=jnp.float32)      # [nH*B, S, d]
        ctx = jnp.concatenate(
            [ctx[h * batch:(h + 1) * batch] for h in range(NUM_HEADS)],
            axis=-1).reshape(n_tok, HIDDEN)                       # [B*S, H]

        attn = jnp.dot(ctx, ao_w, preferred_element_type=jnp.float32) + ao_b
        # residual add fused into LayerNorm
        x = _layernorm(x + attn, a_g, a_b)

        # -- feed-forward --
        h1 = _gelu(jnp.dot(x, f1_w, preferred_element_type=jnp.float32) + f1_b)
        ffn = jnp.dot(h1, f2_ref[l], preferred_element_type=jnp.float32) + f2_b
        x = _layernorm(x + ffn, f_g, f_b)

    # ---- CLS-row selection as a one-hot matmul (no sublane shuffles),
    #      tanh pooler, classifier padded to 128 lanes ----
    row_i = jax.lax.broadcasted_iota(jnp.int32, (batch, n_tok), 0)
    col_i = jax.lax.broadcasted_iota(jnp.int32, (batch, n_tok), 1)
    sel = (col_i == row_i * seq).astype(jnp.float32)              # [B, B*S]
    cls_x = jnp.dot(sel, x, preferred_element_type=jnp.float32)   # [B, H]
    head = head_ref[...]                                          # [H, H+128]
    pooled = jnp.tanh(
        jnp.dot(cls_x, head[:, 0:HIDDEN], preferred_element_type=jnp.float32)
        + ptab_ref[rows["pool_b"]:rows["pool_b"] + 1, 0:HIDDEN])
    # nn.Dropout(0.2) is identity at inference
    o_ref[...] = (jnp.dot(pooled, head[:, HIDDEN:HIDDEN + CLS_PAD],
                          preferred_element_type=jnp.float32)
                  + ptab_ref[rows["cls_b"]:rows["cls_b"] + 1, :])  # [B, 128]


# ----------------------------- parameters ------------------------------------
def _dense_params(key, fan_in, fan_out):
    k1, k2 = jax.random.split(key)
    w = jax.random.normal(k1, (fan_in, fan_out), jnp.float32) * 0.02
    b = jax.random.normal(k2, (fan_out,), jnp.float32) * 0.02
    return w, b


def init_params(key):
    keys = jax.random.split(key, 8 + NUM_LAYERS)
    params = {
        "word_emb": jax.random.normal(keys[0], (VOCAB, HIDDEN), jnp.float32) * 0.02,
        "pos_emb": jax.random.normal(keys[1], (MAX_POS, HIDDEN), jnp.float32) * 0.02,
        "type_emb": jax.random.normal(keys[2], (2, HIDDEN), jnp.float32) * 0.02,
        "emb_ln_g": jnp.ones((HIDDEN,), jnp.float32),
        "emb_ln_b": jnp.zeros((HIDDEN,), jnp.float32),
        "pooler": _dense_params(keys[3], HIDDEN, HIDDEN),
        "classifier": _dense_params(keys[4], HIDDEN, NUM_CLASSES),
        "layers": [],
    }
    for l in range(NUM_LAYERS):
        lk = jax.random.split(keys[8 + l], 6)
        params["layers"].append({
            "q": _dense_params(lk[0], HIDDEN, HIDDEN),
            "k": _dense_params(lk[1], HIDDEN, HIDDEN),
            "v": _dense_params(lk[2], HIDDEN, HIDDEN),
            "attn_out": _dense_params(lk[3], HIDDEN, HIDDEN),
            "attn_ln_g": jnp.ones((HIDDEN,), jnp.float32),
            "attn_ln_b": jnp.zeros((HIDDEN,), jnp.float32),
            "ffn1": _dense_params(lk[4], HIDDEN, INTERMEDIATE),
            "ffn2": _dense_params(lk[5], INTERMEDIATE, HIDDEN),
            "ffn_ln_g": jnp.ones((HIDDEN,), jnp.float32),
            "ffn_ln_b": jnp.zeros((HIDDEN,), jnp.float32),
        })
    return params


def _pack_params(params, batch, seq):
    """Pack everything into 4 dense tables (-> 4 weight DMAs instead of ~20).

    ptab  [R, 128] : word_emb rows, pre-tiled pos+type rows, all LN g/b, all biases
    wa_w  [L, H, 3H+H+I] : per-layer [Wq|Wk|Wv | Wattn_out | Wffn1]
    f2_w  [L, I, H]      : per-layer Wffn2
    head  [H, H+128]     : [Wpool | Wcls padded to 128 lanes]
    """
    rows = _rows(batch, seq)
    n_rows = rows["layer0"] + ROWS_PER_LAYER * NUM_LAYERS
    ptab = jnp.zeros((n_rows, LANE), jnp.float32)
    ptab = ptab.at[0:VOCAB, 0:HIDDEN].set(params["word_emb"])
    pos_type = params["pos_emb"][:seq] + params["type_emb"][0][None, :]   # type 0
    ptab = ptab.at[rows["pos"]:rows["pos"] + batch * seq, 0:HIDDEN].set(
        jnp.tile(pos_type, (batch, 1)))
    ptab = ptab.at[rows["emb_g"], 0:HIDDEN].set(params["emb_ln_g"])
    ptab = ptab.at[rows["emb_b"], 0:HIDDEN].set(params["emb_ln_b"])
    pool_w, pool_b = params["pooler"]
    cls_w, cls_b = params["classifier"]
    ptab = ptab.at[rows["pool_b"], 0:HIDDEN].set(pool_b)
    ptab = ptab.at[rows["cls_b"], 0:NUM_CLASSES].set(cls_b)

    wa_list, f2_list = [], []
    for l, layer in enumerate(params["layers"]):
        base = rows["layer0"] + l * ROWS_PER_LAYER
        qkv_w = jnp.concatenate([layer["q"][0], layer["k"][0], layer["v"][0]], axis=1)
        qkv_b = jnp.concatenate([layer["q"][1], layer["k"][1], layer["v"][1]], axis=0)
        ptab = ptab.at[base + 0, 0:3 * HIDDEN].set(qkv_b)
        ptab = ptab.at[base + 1, 0:HIDDEN].set(layer["attn_out"][1])
        ptab = ptab.at[base + 2, 0:HIDDEN].set(layer["attn_ln_g"])
        ptab = ptab.at[base + 3, 0:HIDDEN].set(layer["attn_ln_b"])
        ptab = ptab.at[base + 4, 0:INTERMEDIATE].set(layer["ffn1"][1])
        ptab = ptab.at[base + 5, 0:HIDDEN].set(layer["ffn2"][1])
        ptab = ptab.at[base + 6, 0:HIDDEN].set(layer["ffn_ln_g"])
        ptab = ptab.at[base + 7, 0:HIDDEN].set(layer["ffn_ln_b"])
        wa_list.append(jnp.concatenate(
            [qkv_w, layer["attn_out"][0], layer["ffn1"][0]], axis=1))  # [H, 192]
        f2_list.append(layer["ffn2"][0])                               # [I, H]
    wa_w = jnp.stack(wa_list, axis=0)
    f2_w = jnp.stack(f2_list, axis=0)
    cls_w_pad = jnp.zeros((HIDDEN, CLS_PAD), jnp.float32).at[:, :NUM_CLASSES].set(cls_w)
    head_w = jnp.concatenate([pool_w, cls_w_pad], axis=1)              # [H, H+128]
    return ptab, wa_w, f2_w, head_w


# ----------------------------- forward pass -----------------------------------
def bert_classifier_forward(params, input_ids, mask):
    """input_ids: [B, S] int32, mask: [B, S] int32 -> logits [B, NUM_CLASSES]."""
    B, S = input_ids.shape
    ptab, wa_w, f2_w, head_w = _pack_params(params, B, S)
    ids2d = input_ids.reshape(B * S, 1).astype(jnp.int32)
    maskf = mask.astype(jnp.float32)

    vmem = pl.BlockSpec(memory_space=pltpu.MemorySpace.VMEM)
    logits_pad = pl.pallas_call(
        functools.partial(_bert_fused_kernel, batch=B, seq=S),
        out_shape=jax.ShapeDtypeStruct((B, CLS_PAD), jnp.float32),
        in_specs=[vmem] * 6,
        out_specs=vmem,
    )(ids2d, maskf, ptab, wa_w, f2_w, head_w)
    return logits_pad[:, :NUM_CLASSES]                                 # [B, 22]


# ----------------------------- main -------------------------------------------
if __name__ == "__main__":
    key = jax.random.PRNGKey(0)
    pkey, ikey = jax.random.split(key)
    params = init_params(pkey)

    input_ids = jax.random.randint(ikey, (BATCH, SEQ), 0, VOCAB, dtype=jnp.int32)
    # first 6 tokens valid, rest padded (attention_mask semantics)
    mask = jnp.concatenate(
        [jnp.ones((BATCH, 6), jnp.int32), jnp.zeros((BATCH, SEQ - 6), jnp.int32)],
        axis=1)

    forward = jax.jit(bert_classifier_forward)
    logits = forward(params, input_ids, mask)
    jax.block_until_ready(logits)
    assert logits.shape == (BATCH, NUM_CLASSES)
    assert logits.dtype == jnp.float32
    print("KERNEL_OK")
</pallas_src>

<mosaic_0001>
module attributes {stable_mosaic.version = 11 : i64} {
  func.func @_bert_fused_kernel(%arg0: memref<16x1xi32, #tpu.memory_space<vmem>>, %arg1: memref<2x8xf32, #tpu.memory_space<vmem>>, %arg2: memref<100x128xf32, #tpu.memory_space<vmem>>, %arg3: memref<2x32x192xf32, #tpu.memory_space<vmem>>, %arg4: memref<2x64x32xf32, #tpu.memory_space<vmem>>, %arg5: memref<32x160xf32, #tpu.memory_space<vmem>>, %arg6: memref<2x128xf32, #tpu.memory_space<vmem>>) attributes {dimension_semantics = [], scalar_prefetch = 0 : i64, scratch_operands = 0 : i64, tpu.core_type = #tpu.core_type<tc>} {
    %c0 = arith.constant 0 : index
    %c0_0 = arith.constant 0 : index
    %0 = vector.load %arg0[%c0, %c0_0] : memref<16x1xi32, #tpu.memory_space<vmem>>, vector<16x1xi32>
    %1 = tpu.iota {dimensions = array<i32: 1>} : vector<16x64xi32>
    %2 = vector.broadcast %0 : vector<16x1xi32> to vector<16x64xi32>
    %3 = arith.cmpi eq, %2, %1 : vector<16x64xi32>
    %4 = arith.extui %3 : vector<16x64xi1> to vector<16x64xi32>
    %5 = arith.sitofp %4 : vector<16x64xi32> to vector<16x64xf32>
    %c0_1 = arith.constant 0 : index
    %c0_2 = arith.constant 0 : index
    %6 = vector.load %arg2[%c0_1, %c0_2] : memref<100x128xf32, #tpu.memory_space<vmem>>, vector<64x32xf32>
    %cst = arith.constant dense<0.000000e+00> : vector<16x32xf32>
    %7 = tpu.matmul %5, %6, %cst {dimension_numbers = #tpu.dot_dimension_numbers<[1], [0], [0], [1], [0, 0, 1, 1], [], []>} : vector<16x64xf32>, vector<64x32xf32>, vector<16x32xf32> -> vector<16x32xf32>
    %c64 = arith.constant 64 : index
    %c0_3 = arith.constant 0 : index
    %8 = vector.load %arg2[%c64, %c0_3] : memref<100x128xf32, #tpu.memory_space<vmem>>, vector<16x32xf32>
    %9 = arith.addf %7, %8 : vector<16x32xf32>
    %c80 = arith.constant 80 : index
    %c0_4 = arith.constant 0 : index
    %10 = vector.load %arg2[%c80, %c0_4] : memref<100x128xf32, #tpu.memory_space<vmem>>, vector<1x32xf32>
    %c81 = arith.constant 81 : index
    %c0_5 = arith.constant 0 : index
    %11 = vector.load %arg2[%c81, %c0_5] : memref<100x128xf32, #tpu.memory_space<vmem>>, vector<1x32xf32>
    %cst_6 = arith.constant dense<0.000000e+00> : vector<16xf32>
    %12 = vector.multi_reduction <add>, %9, %cst_6 [1] : vector<16x32xf32> to vector<16xf32>
    %13 = vector.shape_cast %12 : vector<16xf32> to vector<16x1xf32>
    %cst_7 = arith.constant 3.200000e+01 : f32
    %14 = vector.broadcast %cst_7 : f32 to vector<16x1xf32>
    %15 = arith.divf %13, %14 : vector<16x1xf32>
    %16 = vector.broadcast %15 : vector<16x1xf32> to vector<16x32xf32>
    %17 = arith.subf %9, %16 : vector<16x32xf32>
    %18 = arith.mulf %17, %17 : vector<16x32xf32>
    %cst_8 = arith.constant dense<0.000000e+00> : vector<16xf32>
    %19 = vector.multi_reduction <add>, %18, %cst_8 [1] : vector<16x32xf32> to vector<16xf32>
    %20 = vector.shape_cast %19 : vector<16xf32> to vector<16x1xf32>
    %cst_9 = arith.constant 3.200000e+01 : f32
    %21 = vector.broadcast %cst_9 : f32 to vector<16x1xf32>
    %22 = arith.divf %20, %21 : vector<16x1xf32>
    %cst_10 = arith.constant 9.99999996E-13 : f32
    %23 = vector.broadcast %cst_10 : f32 to vector<16x1xf32>
    %24 = arith.addf %22, %23 : vector<16x1xf32>
    %25 = math.rsqrt %24 : vector<16x1xf32>
    %26 = vector.broadcast %25 : vector<16x1xf32> to vector<16x32xf32>
    %27 = arith.mulf %17, %26 : vector<16x32xf32>
    %28 = vector.broadcast %10 : vector<1x32xf32> to vector<16x32xf32>
    %29 = arith.mulf %27, %28 : vector<16x32xf32>
    %30 = vector.broadcast %11 : vector<1x32xf32> to vector<16x32xf32>
    %31 = arith.addf %29, %30 : vector<16x32xf32>
    %c0_11 = arith.constant 0 : index
    %c0_12 = arith.constant 0 : index
    %32 = vector.load %arg1[%c0_11, %c0_12] : memref<2x8xf32, #tpu.memory_space<vmem>>, vector<2x8xf32>
    %cst_13 = arith.constant 1.000000e+00 : f32
    %33 = vector.broadcast %cst_13 : f32 to vector<2x8xf32>
    %34 = arith.subf %33, %32 : vector<2x8xf32>
    %cst_14 = arith.constant -1.000000e+09 : f32
    %35 = vector.broadcast %cst_14 : f32 to vector<2x8xf32>
    %36 = arith.mulf %34, %35 : vector<2x8xf32>
    %37 = vector.shape_cast %36 : vector<2x8xf32> to vector<2x1x8xf32>
    %38 = tpu.concatenate %37, %37 in 0 : vector<2x1x8xf32>, vector<2x1x8xf32> -> vector<4x1x8xf32>
    %c84 = arith.constant 84 : index
    %c0_15 = arith.constant 0 : index
    %39 = vector.load %arg2[%c84, %c0_15] : memref<100x128xf32, #tpu.memory_space<vmem>>, vector<1x96xf32>
    %c85 = arith.constant 85 : index
    %c0_16 = arith.constant 0 : index
    %40 = vector.load %arg2[%c85, %c0_16] : memref<100x128xf32, #tpu.memory_space<vmem>>, vector<1x32xf32>
    %c86 = arith.constant 86 : index
    %c0_17 = arith.constant 0 : index
    %41 = vector.load %arg2[%c86, %c0_17] : memref<100x128xf32, #tpu.memory_space<vmem>>, vector<1x32xf32>
    %c87 = arith.constant 87 : index
    %c0_18 = arith.constant 0 : index
    %42 = vector.load %arg2[%c87, %c0_18] : memref<100x128xf32, #tpu.memory_space<vmem>>, vector<1x32xf32>
    %c88 = arith.constant 88 : index
    %c0_19 = arith.constant 0 : index
    %43 = vector.load %arg2[%c88, %c0_19] : memref<100x128xf32, #tpu.memory_space<vmem>>, vector<1x64xf32>
    %c89 = arith.constant 89 : index
    %c0_20 = arith.constant 0 : index
    %44 = vector.load %arg2[%c89, %c0_20] : memref<100x128xf32, #tpu.memory_space<vmem>>, vector<1x32xf32>
    %c90 = arith.constant 90 : index
    %c0_21 = arith.constant 0 : index
    %45 = vector.load %arg2[%c90, %c0_21] : memref<100x128xf32, #tpu.memory_space<vmem>>, vector<1x32xf32>
    %c91 = arith.constant 91 : index
    %c0_22 = arith.constant 0 : index
    %46 = vector.load %arg2[%c91, %c0_22] : memref<100x128xf32, #tpu.memory_space<vmem>>, vector<1x32xf32>
    %c0_23 = arith.constant 0 : index
    %c0_24 = arith.constant 0 : index
    %c0_25 = arith.constant 0 : index
    %47 = vector.load %arg3[%c0_23, %c0_24, %c0_25] : memref<2x32x192xf32, #tpu.memory_space<vmem>>, vector<1x32x192xf32>
    %48 = vector.shape_cast %47 : vector<1x32x192xf32> to vector<32x192xf32>
    %49 = vector.extract_strided_slice %48 {offsets = [0, 0], sizes = [32, 96], strides = [1, 1]} : vector<32x192xf32> to vector<32x96xf32>
    %50 = vector.extract_strided_slice %48 {offsets = [0, 96], sizes = [32, 32], strides = [1, 1]} : vector<32x192xf32> to vector<32x32xf32>
    %51 = vector.extract_strided_slice %48 {offsets = [0, 128], sizes = [32, 64], strides = [1, 1]} : vector<32x192xf32> to vector<32x64xf32>
    %cst_26 = arith.constant dense<0.000000e+00> : vector<16x96xf32>
    %52 = tpu.matmul %31, %49, %cst_26 {dimension_numbers = #tpu.dot_dimension_numbers<[1], [0], [0], [1], [0, 0, 1, 1], [], []>} : vector<16x32xf32>, vector<32x96xf32>, vector<16x96xf32> -> vector<16x96xf32>
    %53 = vector.broadcast %39 : vector<1x96xf32> to vector<16x96xf32>
    %54 = arith.addf %52, %53 : vector<16x96xf32>
    %55 = vector.shape_cast %54 : vector<16x96xf32> to vector<2x8x96xf32>
    %56 = vector.extract_strided_slice %55 {offsets = [0, 0, 0], sizes = [2, 8, 16], strides = [1, 1, 1]} : vector<2x8x96xf32> to vector<2x8x16xf32>
    %57 = vector.extract_strided_slice %55 {offsets = [0, 0, 16], sizes = [2, 8, 16], strides = [1, 1, 1]} : vector<2x8x96xf32> to vector<2x8x16xf32>
    %58 = tpu.concatenate %56, %57 in 0 : vector<2x8x16xf32>, vector<2x8x16xf32> -> vector<4x8x16xf32>
    %59 = vector.extract_strided_slice %55 {offsets = [0, 0, 32], sizes = [2, 8, 16], strides = [1, 1, 1]} : vector<2x8x96xf32> to vector<2x8x16xf32>
    %60 = vector.extract_strided_slice %55 {offsets = [0, 0, 48], sizes = [2, 8, 16], strides = [1, 1, 1]} : vector<2x8x96xf32> to vector<2x8x16xf32>
    %61 = tpu.concatenate %59, %60 in 0 : vector<2x8x16xf32>, vector<2x8x16xf32> -> vector<4x8x16xf32>
    %62 = vector.extract_strided_slice %55 {offsets = [0, 0, 64], sizes = [2, 8, 16], strides = [1, 1, 1]} : vector<2x8x96xf32> to vector<2x8x16xf32>
    %63 = vector.extract_strided_slice %55 {offsets = [0, 0, 80], sizes = [2, 8, 16], strides = [1, 1, 1]} : vector<2x8x96xf32> to vector<2x8x16xf32>
    %64 = tpu.concatenate %62, %63 in 0 : vector<2x8x16xf32>, vector<2x8x16xf32> -> vector<4x8x16xf32>
    "tpu.trace_start"() <{level = 10 : i32, message = "zqd,zkd->zqk"}> : () -> ()
    %cst_27 = arith.constant dense<0.000000e+00> : vector<4x8x8xf32>
    %65 = tpu.matmul %58, %61, %cst_27 {dimension_numbers = #tpu.dot_dimension_numbers<[2], [2], [1], [1], [0, 0, 0, 1, 1, 1], [0], [0]>} : vector<4x8x16xf32>, vector<4x8x16xf32>, vector<4x8x8xf32> -> vector<4x8x8xf32>
    "tpu.trace_stop"() : () -> ()
    %cst_28 = arith.constant 2.500000e-01 : f32
    %66 = vector.broadcast %cst_28 : f32 to vector<4x8x8xf32>
    %67 = arith.mulf %65, %66 : vector<4x8x8xf32>
    %68 = vector.broadcast %38 : vector<4x1x8xf32> to vector<4x8x8xf32>
    %69 = arith.addf %67, %68 : vector<4x8x8xf32>
    %cst_29 = arith.constant dense<0xFF800000> : vector<4x8xf32>
    %70 = vector.multi_reduction <maximumf>, %69, %cst_29 [2] : vector<4x8x8xf32> to vector<4x8xf32>
    %71 = vector.shape_cast %70 : vector<4x8xf32> to vector<4x8x1xf32>
    %72 = vector.broadcast %71 : vector<4x8x1xf32> to vector<4x8x8xf32>
    %73 = arith.subf %69, %72 : vector<4x8x8xf32>
    %74 = math.exp %73 : vector<4x8x8xf32>
    %cst_30 = arith.constant dense<0.000000e+00> : vector<4x8xf32>
    %75 = vector.multi_reduction <add>, %74, %cst_30 [2] : vector<4x8x8xf32> to vector<4x8xf32>
    %76 = vector.shape_cast %75 : vector<4x8xf32> to vector<4x8x1xf32>
    %77 = tpu.reciprocal %76 {approx = true} : vector<4x8x1xf32> -> vector<4x8x1xf32>
    %78 = vector.broadcast %77 : vector<4x8x1xf32> to vector<4x8x8xf32>
    %79 = arith.mulf %74, %78 : vector<4x8x8xf32>
    "tpu.trace_start"() <{level = 10 : i32, message = "zqk,zkd->zqd"}> : () -> ()
    %cst_31 = arith.constant dense<0.000000e+00> : vector<4x8x16xf32>
    %80 = tpu.matmul %79, %64, %cst_31 {dimension_numbers = #tpu.dot_dimension_numbers<[2], [1], [1], [2], [0, 0, 0, 1, 1, 2], [0], [0]>} : vector<4x8x8xf32>, vector<4x8x16xf32>, vector<4x8x16xf32> -> vector<4x8x16xf32>
    "tpu.trace_stop"() : () -> ()
    %81 = vector.extract_strided_slice %80 {offsets = [0, 0, 0], sizes = [2, 8, 16], strides = [1, 1, 1]} : vector<4x8x16xf32> to vector<2x8x16xf32>
    %82 = vector.extract_strided_slice %80 {offsets = [2, 0, 0], sizes = [2, 8, 16], strides = [1, 1, 1]} : vector<4x8x16xf32> to vector<2x8x16xf32>
    %83 = tpu.concatenate %81, %82 in 2 : vector<2x8x16xf32>, vector<2x8x16xf32> -> vector<2x8x32xf32>
    %84 = vector.shape_cast %83 : vector<2x8x32xf32> to vector<16x32xf32>
    %cst_32 = arith.constant dense<0.000000e+00> : vector<16x32xf32>
    %85 = tpu.matmul %84, %50, %cst_32 {dimension_numbers = #tpu.dot_dimension_numbers<[1], [0], [0], [1], [0, 0, 1, 1], [], []>} : vector<16x32xf32>, vector<32x32xf32>, vector<16x32xf32> -> vector<16x32xf32>
    %86 = vector.broadcast %40 : vector<1x32xf32> to vector<16x32xf32>
    %87 = arith.addf %85, %86 : vector<16x32xf32>
    %88 = arith.addf %31, %87 : vector<16x32xf32>
    %cst_33 = arith.constant dense<0.000000e+00> : vector<16xf32>
    %89 = vector.multi_reduction <add>, %88, %cst_33 [1] : vector<16x32xf32> to vector<16xf32>
    %90 = vector.shape_cast %89 : vector<16xf32> to vector<16x1xf32>
    %cst_34 = arith.constant 3.200000e+01 : f32
    %91 = vector.broadcast %cst_34 : f32 to vector<16x1xf32>
    %92 = arith.divf %90, %91 : vector<16x1xf32>
    %93 = vector.broadcast %92 : vector<16x1xf32> to vector<16x32xf32>
    %94 = arith.subf %88, %93 : vector<16x32xf32>
    %95 = arith.mulf %94, %94 : vector<16x32xf32>
    %cst_35 = arith.constant dense<0.000000e+00> : vector<16xf32>
    %96 = vector.multi_reduction <add>, %95, %cst_35 [1] : vector<16x32xf32> to vector<16xf32>
    %97 = vector.shape_cast %96 : vector<16xf32> to vector<16x1xf32>
    %cst_36 = arith.constant 3.200000e+01 : f32
    %98 = vector.broadcast %cst_36 : f32 to vector<16x1xf32>
    %99 = arith.divf %97, %98 : vector<16x1xf32>
    %cst_37 = arith.constant 9.99999996E-13 : f32
    %100 = vector.broadcast %cst_37 : f32 to vector<16x1xf32>
    %101 = arith.addf %99, %100 : vector<16x1xf32>
    %102 = math.rsqrt %101 : vector<16x1xf32>
    %103 = vector.broadcast %102 : vector<16x1xf32> to vector<16x32xf32>
    %104 = arith.mulf %94, %103 : vector<16x32xf32>
    %105 = vector.broadcast %41 : vector<1x32xf32> to vector<16x32xf32>
    %106 = arith.mulf %104, %105 : vector<16x32xf32>
    %107 = vector.broadcast %42 : vector<1x32xf32> to vector<16x32xf32>
    %108 = arith.addf %106, %107 : vector<16x32xf32>
    %cst_38 = arith.constant dense<0.000000e+00> : vector<16x64xf32>
    %109 = tpu.matmul %108, %51, %cst_38 {dimension_numbers = #tpu.dot_dimension_numbers<[1], [0], [0], [1], [0, 0, 1, 1], [], []>} : vector<16x32xf32>, vector<32x64xf32>, vector<16x64xf32> -> vector<16x64xf32>
    %110 = vector.broadcast %43 : vector<1x64xf32> to vector<16x64xf32>
    %111 = arith.addf %109, %110 : vector<16x64xf32>
    %cst_39 = arith.constant 5.000000e-01 : f32
    %112 = vector.broadcast %cst_39 : f32 to vector<16x64xf32>
    %113 = arith.mulf %112, %111 : vector<16x64xf32>
    %cst_40 = arith.constant 4.471500e-02 : f32
    %114 = vector.broadcast %cst_40 : f32 to vector<16x64xf32>
    %115 = arith.mulf %114, %111 : vector<16x64xf32>
    %116 = arith.mulf %115, %111 : vector<16x64xf32>
    %117 = arith.mulf %116, %111 : vector<16x64xf32>
    %118 = arith.addf %111, %117 : vector<16x64xf32>
    %cst_41 = arith.constant 0.797884583 : f32
    %119 = vector.broadcast %cst_41 : f32 to vector<16x64xf32>
    %120 = arith.mulf %119, %118 : vector<16x64xf32>
    %121 = math.tanh %120 : vector<16x64xf32>
    %cst_42 = arith.constant 1.000000e+00 : f32
    %122 = vector.broadcast %cst_42 : f32 to vector<16x64xf32>
    %123 = arith.addf %122, %121 : vector<16x64xf32>
    %124 = arith.mulf %113, %123 : vector<16x64xf32>
    %c0_43 = arith.constant 0 : index
    %c0_44 = arith.constant 0 : index
    %c0_45 = arith.constant 0 : index
    %125 = vector.load %arg4[%c0_43, %c0_44, %c0_45] : memref<2x64x32xf32, #tpu.memory_space<vmem>>, vector<1x64x32xf32>
    %126 = vector.shape_cast %125 : vector<1x64x32xf32> to vector<64x32xf32>
    %cst_46 = arith.constant dense<0.000000e+00> : vector<16x32xf32>
    %127 = tpu.matmul %124, %126, %cst_46 {dimension_numbers = #tpu.dot_dimension_numbers<[1], [0], [0], [1], [0, 0, 1, 1], [], []>} : vector<16x64xf32>, vector<64x32xf32>, vector<16x32xf32> -> vector<16x32xf32>
    %128 = vector.broadcast %44 : vector<1x32xf32> to vector<16x32xf32>
    %129 = arith.addf %127, %128 : vector<16x32xf32>
    %130 = arith.addf %108, %129 : vector<16x32xf32>
    %cst_47 = arith.constant dense<0.000000e+00> : vector<16xf32>
    %131 = vector.multi_reduction <add>, %130, %cst_47 [1] : vector<16x32xf32> to vector<16xf32>
    %132 = vector.shape_cast %131 : vector<16xf32> to vector<16x1xf32>
    %cst_48 = arith.constant 3.200000e+01 : f32
    %133 = vector.broadcast %cst_48 : f32 to vector<16x1xf32>
    %134 = arith.divf %132, %133 : vector<16x1xf32>
    %135 = vector.broadcast %134 : vector<16x1xf32> to vector<16x32xf32>
    %136 = arith.subf %130, %135 : vector<16x32xf32>
    %137 = arith.mulf %136, %136 : vector<16x32xf32>
    %cst_49 = arith.constant dense<0.000000e+00> : vector<16xf32>
    %138 = vector.multi_reduction <add>, %137, %cst_49 [1] : vector<16x32xf32> to vector<16xf32>
    %139 = vector.shape_cast %138 : vector<16xf32> to vector<16x1xf32>
    %cst_50 = arith.constant 3.200000e+01 : f32
    %140 = vector.broadcast %cst_50 : f32 to vector<16x1xf32>
    %141 = arith.divf %139, %140 : vector<16x1xf32>
    %cst_51 = arith.constant 9.99999996E-13 : f32
    %142 = vector.broadcast %cst_51 : f32 to vector<16x1xf32>
    %143 = arith.addf %141, %142 : vector<16x1xf32>
    %144 = math.rsqrt %143 : vector<16x1xf32>
    %145 = vector.broadcast %144 : vector<16x1xf32> to vector<16x32xf32>
    %146 = arith.mulf %136, %145 : vector<16x32xf32>
    %147 = vector.broadcast %45 : vector<1x32xf32> to vector<16x32xf32>
    %148 = arith.mulf %146, %147 : vector<16x32xf32>
    %149 = vector.broadcast %46 : vector<1x32xf32> to vector<16x32xf32>
    %150 = arith.addf %148, %149 : vector<16x32xf32>
    %c92 = arith.constant 92 : index
    %c0_52 = arith.constant 0 : index
    %151 = vector.load %arg2[%c92, %c0_52] : memref<100x128xf32, #tpu.memory_space<vmem>>, vector<1x96xf32>
    %c93 = arith.constant 93 : index
    %c0_53 = arith.constant 0 : index
    %152 = vector.load %arg2[%c93, %c0_53] : memref<100x128xf32, #tpu.memory_space<vmem>>, vector<1x32xf32>
    %c94 = arith.constant 94 : index
    %c0_54 = arith.constant 0 : index
    %153 = vector.load %arg2[%c94, %c0_54] : memref<100x128xf32, #tpu.memory_space<vmem>>, vector<1x32xf32>
    %c95 = arith.constant 95 : index
    %c0_55 = arith.constant 0 : index
    %154 = vector.load %arg2[%c95, %c0_55] : memref<100x128xf32, #tpu.memory_space<vmem>>, vector<1x32xf32>
    %c96 = arith.constant 96 : index
    %c0_56 = arith.constant 0 : index
    %155 = vector.load %arg2[%c96, %c0_56] : memref<100x128xf32, #tpu.memory_space<vmem>>, vector<1x64xf32>
    %c97 = arith.constant 97 : index
    %c0_57 = arith.constant 0 : index
    %156 = vector.load %arg2[%c97, %c0_57] : memref<100x128xf32, #tpu.memory_space<vmem>>, vector<1x32xf32>
    %c98 = arith.constant 98 : index
    %c0_58 = arith.constant 0 : index
    %157 = vector.load %arg2[%c98, %c0_58] : memref<100x128xf32, #tpu.memory_space<vmem>>, vector<1x32xf32>
    %c99 = arith.constant 99 : index
    %c0_59 = arith.constant 0 : index
    %158 = vector.load %arg2[%c99, %c0_59] : memref<100x128xf32, #tpu.memory_space<vmem>>, vector<1x32xf32>
    %c1 = arith.constant 1 : index
    %c0_60 = arith.constant 0 : index
    %c0_61 = arith.constant 0 : index
    %159 = vector.load %arg3[%c1, %c0_60, %c0_61] : memref<2x32x192xf32, #tpu.memory_space<vmem>>, vector<1x32x192xf32>
    %160 = vector.shape_cast %159 : vector<1x32x192xf32> to vector<32x192xf32>
    %161 = vector.extract_strided_slice %160 {offsets = [0, 0], sizes = [32, 96], strides = [1, 1]} : vector<32x192xf32> to vector<32x96xf32>
    %162 = vector.extract_strided_slice %160 {offsets = [0, 96], sizes = [32, 32], strides = [1, 1]} : vector<32x192xf32> to vector<32x32xf32>
    %163 = vector.extract_strided_slice %160 {offsets = [0, 128], sizes = [32, 64], strides = [1, 1]} : vector<32x192xf32> to vector<32x64xf32>
    %cst_62 = arith.constant dense<0.000000e+00> : vector<16x96xf32>
    %164 = tpu.matmul %150, %161, %cst_62 {dimension_numbers = #tpu.dot_dimension_numbers<[1], [0], [0], [1], [0, 0, 1, 1], [], []>} : vector<16x32xf32>, vector<32x96xf32>, vector<16x96xf32> -> vector<16x96xf32>
    %165 = vector.broadcast %151 : vector<1x96xf32> to vector<16x96xf32>
    %166 = arith.addf %164, %165 : vector<16x96xf32>
    %167 = vector.shape_cast %166 : vector<16x96xf32> to vector<2x8x96xf32>
    %168 = vector.extract_strided_slice %167 {offsets = [0, 0, 0], sizes = [2, 8, 16], strides = [1, 1, 1]} : vector<2x8x96xf32> to vector<2x8x16xf32>
    %169 = vector.extract_strided_slice %167 {offsets = [0, 0, 16], sizes = [2, 8, 16], strides = [1, 1, 1]} : vector<2x8x96xf32> to vector<2x8x16xf32>
    %170 = tpu.concatenate %168, %169 in 0 : vector<2x8x16xf32>, vector<2x8x16xf32> -> vector<4x8x16xf32>
    %171 = vector.extract_strided_slice %167 {offsets = [0, 0, 32], sizes = [2, 8, 16], strides = [1, 1, 1]} : vector<2x8x96xf32> to vector<2x8x16xf32>
    %172 = vector.extract_strided_slice %167 {offsets = [0, 0, 48], sizes = [2, 8, 16], strides = [1, 1, 1]} : vector<2x8x96xf32> to vector<2x8x16xf32>
    %173 = tpu.concatenate %171, %172 in 0 : vector<2x8x16xf32>, vector<2x8x16xf32> -> vector<4x8x16xf32>
    %174 = vector.extract_strided_slice %167 {offsets = [0, 0, 64], sizes = [2, 8, 16], strides = [1, 1, 1]} : vector<2x8x96xf32> to vector<2x8x16xf32>
    %175 = vector.extract_strided_slice %167 {offsets = [0, 0, 80], sizes = [2, 8, 16], strides = [1, 1, 1]} : vector<2x8x96xf32> to vector<2x8x16xf32>
    %176 = tpu.concatenate %174, %175 in 0 : vector<2x8x16xf32>, vector<2x8x16xf32> -> vector<4x8x16xf32>
    "tpu.trace_start"() <{level = 10 : i32, message = "zqd,zkd->zqk"}> : () -> ()
    %cst_63 = arith.constant dense<0.000000e+00> : vector<4x8x8xf32>
    %177 = tpu.matmul %170, %173, %cst_63 {dimension_numbers = #tpu.dot_dimension_numbers<[2], [2], [1], [1], [0, 0, 0, 1, 1, 1], [0], [0]>} : vector<4x8x16xf32>, vector<4x8x16xf32>, vector<4x8x8xf32> -> vector<4x8x8xf32>
    "tpu.trace_stop"() : () -> ()
    %cst_64 = arith.constant 2.500000e-01 : f32
    %178 = vector.broadcast %cst_64 : f32 to vector<4x8x8xf32>
    %179 = arith.mulf %177, %178 : vector<4x8x8xf32>
    %180 = vector.broadcast %38 : vector<4x1x8xf32> to vector<4x8x8xf32>
    %181 = arith.addf %179, %180 : vector<4x8x8xf32>
    %cst_65 = arith.constant dense<0xFF800000> : vector<4x8xf32>
    %182 = vector.multi_reduction <maximumf>, %181, %cst_65 [2] : vector<4x8x8xf32> to vector<4x8xf32>
    %183 = vector.shape_cast %182 : vector<4x8xf32> to vector<4x8x1xf32>
    %184 = vector.broadcast %183 : vector<4x8x1xf32> to vector<4x8x8xf32>
    %185 = arith.subf %181, %184 : vector<4x8x8xf32>
    %186 = math.exp %185 : vector<4x8x8xf32>
    %cst_66 = arith.constant dense<0.000000e+00> : vector<4x8xf32>
    %187 = vector.multi_reduction <add>, %186, %cst_66 [2] : vector<4x8x8xf32> to vector<4x8xf32>
    %188 = vector.shape_cast %187 : vector<4x8xf32> to vector<4x8x1xf32>
    %189 = tpu.reciprocal %188 {approx = true} : vector<4x8x1xf32> -> vector<4x8x1xf32>
    %190 = vector.broadcast %189 : vector<4x8x1xf32> to vector<4x8x8xf32>
    %191 = arith.mulf %186, %190 : vector<4x8x8xf32>
    "tpu.trace_start"() <{level = 10 : i32, message = "zqk,zkd->zqd"}> : () -> ()
    %cst_67 = arith.constant dense<0.000000e+00> : vector<4x8x16xf32>
    %192 = tpu.matmul %191, %176, %cst_67 {dimension_numbers = #tpu.dot_dimension_numbers<[2], [1], [1], [2], [0, 0, 0, 1, 1, 2], [0], [0]>} : vector<4x8x8xf32>, vector<4x8x16xf32>, vector<4x8x16xf32> -> vector<4x8x16xf32>
    "tpu.trace_stop"() : () -> ()
    %193 = vector.extract_strided_slice %192 {offsets = [0, 0, 0], sizes = [2, 8, 16], strides = [1, 1, 1]} : vector<4x8x16xf32> to vector<2x8x16xf32>
    %194 = vector.extract_strided_slice %192 {offsets = [2, 0, 0], sizes = [2, 8, 16], strides = [1, 1, 1]} : vector<4x8x16xf32> to vector<2x8x16xf32>
    %195 = tpu.concatenate %193, %194 in 2 : vector<2x8x16xf32>, vector<2x8x16xf32> -> vector<2x8x32xf32>
    %196 = vector.shape_cast %195 : vector<2x8x32xf32> to vector<16x32xf32>
    %cst_68 = arith.constant dense<0.000000e+00> : vector<16x32xf32>
    %197 = tpu.matmul %196, %162, %cst_68 {dimension_numbers = #tpu.dot_dimension_numbers<[1], [0], [0], [1], [0, 0, 1, 1], [], []>} : vector<16x32xf32>, vector<32x32xf32>, vector<16x32xf32> -> vector<16x32xf32>
    %198 = vector.broadcast %152 : vector<1x32xf32> to vector<16x32xf32>
    %199 = arith.addf %197, %198 : vector<16x32xf32>
    %200 = arith.addf %150, %199 : vector<16x32xf32>
    %cst_69 = arith.constant dense<0.000000e+00> : vector<16xf32>
    %201 = vector.multi_reduction <add>, %200, %cst_69 [1] : vector<16x32xf32> to vector<16xf32>
    %202 = vector.shape_cast %201 : vector<16xf32> to vector<16x1xf32>
    %cst_70 = arith.constant 3.200000e+01 : f32
    %203 = vector.broadcast %cst_70 : f32 to vector<16x1xf32>
    %204 = arith.divf %202, %203 : vector<16x1xf32>
    %205 = vector.broadcast %204 : vector<16x1xf32> to vector<16x32xf32>
    %206 = arith.subf %200, %205 : vector<16x32xf32>
    %207 = arith.mulf %206, %206 : vector<16x32xf32>
    %cst_71 = arith.constant dense<0.000000e+00> : vector<16xf32>
    %208 = vector.multi_reduction <add>, %207, %cst_71 [1] : vector<16x32xf32> to vector<16xf32>
    %209 = vector.shape_cast %208 : vector<16xf32> to vector<16x1xf32>
    %cst_72 = arith.constant 3.200000e+01 : f32
    %210 = vector.broadcast %cst_72 : f32 to vector<16x1xf32>
    %211 = arith.divf %209, %210 : vector<16x1xf32>
    %cst_73 = arith.constant 9.99999996E-13 : f32
    %212 = vector.broadcast %cst_73 : f32 to vector<16x1xf32>
    %213 = arith.addf %211, %212 : vector<16x1xf32>
    %214 = math.rsqrt %213 : vector<16x1xf32>
    %215 = vector.broadcast %214 : vector<16x1xf32> to vector<16x32xf32>
    %216 = arith.mulf %206, %215 : vector<16x32xf32>
    %217 = vector.broadcast %153 : vector<1x32xf32> to vector<16x32xf32>
    %218 = arith.mulf %216, %217 : vector<16x32xf32>
    %219 = vector.broadcast %154 : vector<1x32xf32> to vector<16x32xf32>
    %220 = arith.addf %218, %219 : vector<16x32xf32>
    %cst_74 = arith.constant dense<0.000000e+00> : vector<16x64xf32>
    %221 = tpu.matmul %220, %163, %cst_74 {dimension_numbers = #tpu.dot_dimension_numbers<[1], [0], [0], [1], [0, 0, 1, 1], [], []>} : vector<16x32xf32>, vector<32x64xf32>, vector<16x64xf32> -> vector<16x64xf32>
    %222 = vector.broadcast %155 : vector<1x64xf32> to vector<16x64xf32>
    %223 = arith.addf %221, %222 : vector<16x64xf32>
    %cst_75 = arith.constant 5.000000e-01 : f32
    %224 = vector.broadcast %cst_75 : f32 to vector<16x64xf32>
    %225 = arith.mulf %224, %223 : vector<16x64xf32>
    %cst_76 = arith.constant 4.471500e-02 : f32
    %226 = vector.broadcast %cst_76 : f32 to vector<16x64xf32>
    %227 = arith.mulf %226, %223 : vector<16x64xf32>
    %228 = arith.mulf %227, %223 : vector<16x64xf32>
    %229 = arith.mulf %228, %223 : vector<16x64xf32>
    %230 = arith.addf %223, %229 : vector<16x64xf32>
    %cst_77 = arith.constant 0.797884583 : f32
    %231 = vector.broadcast %cst_77 : f32 to vector<16x64xf32>
    %232 = arith.mulf %231, %230 : vector<16x64xf32>
    %233 = math.tanh %232 : vector<16x64xf32>
    %cst_78 = arith.constant 1.000000e+00 : f32
    %234 = vector.broadcast %cst_78 : f32 to vector<16x64xf32>
    %235 = arith.addf %234, %233 : vector<16x64xf32>
    %236 = arith.mulf %225, %235 : vector<16x64xf32>
    %c1_79 = arith.constant 1 : index
    %c0_80 = arith.constant 0 : index
    %c0_81 = arith.constant 0 : index
    %237 = vector.load %arg4[%c1_79, %c0_80, %c0_81] : memref<2x64x32xf32, #tpu.memory_space<vmem>>, vector<1x64x32xf32>
    %238 = vector.shape_cast %237 : vector<1x64x32xf32> to vector<64x32xf32>
    %cst_82 = arith.constant dense<0.000000e+00> : vector<16x32xf32>
    %239 = tpu.matmul %236, %238, %cst_82 {dimension_numbers = #tpu.dot_dimension_numbers<[1], [0], [0], [1], [0, 0, 1, 1], [], []>} : vector<16x64xf32>, vector<64x32xf32>, vector<16x32xf32> -> vector<16x32xf32>
    %240 = vector.broadcast %156 : vector<1x32xf32> to vector<16x32xf32>
    %241 = arith.addf %239, %240 : vector<16x32xf32>
    %242 = arith.addf %220, %241 : vector<16x32xf32>
    %cst_83 = arith.constant dense<0.000000e+00> : vector<16xf32>
    %243 = vector.multi_reduction <add>, %242, %cst_83 [1] : vector<16x32xf32> to vector<16xf32>
    %244 = vector.shape_cast %243 : vector<16xf32> to vector<16x1xf32>
    %cst_84 = arith.constant 3.200000e+01 : f32
    %245 = vector.broadcast %cst_84 : f32 to vector<16x1xf32>
    %246 = arith.divf %244, %245 : vector<16x1xf32>
    %247 = vector.broadcast %246 : vector<16x1xf32> to vector<16x32xf32>
    %248 = arith.subf %242, %247 : vector<16x32xf32>
    %249 = arith.mulf %248, %248 : vector<16x32xf32>
    %cst_85 = arith.constant dense<0.000000e+00> : vector<16xf32>
    %250 = vector.multi_reduction <add>, %249, %cst_85 [1] : vector<16x32xf32> to vector<16xf32>
    %251 = vector.shape_cast %250 : vector<16xf32> to vector<16x1xf32>
    %cst_86 = arith.constant 3.200000e+01 : f32
    %252 = vector.broadcast %cst_86 : f32 to vector<16x1xf32>
    %253 = arith.divf %251, %252 : vector<16x1xf32>
    %cst_87 = arith.constant 9.99999996E-13 : f32
    %254 = vector.broadcast %cst_87 : f32 to vector<16x1xf32>
    %255 = arith.addf %253, %254 : vector<16x1xf32>
    %256 = math.rsqrt %255 : vector<16x1xf32>
    %257 = vector.broadcast %256 : vector<16x1xf32> to vector<16x32xf32>
    %258 = arith.mulf %248, %257 : vector<16x32xf32>
    %259 = vector.broadcast %157 : vector<1x32xf32> to vector<16x32xf32>
    %260 = arith.mulf %258, %259 : vector<16x32xf32>
    %261 = vector.broadcast %158 : vector<1x32xf32> to vector<16x32xf32>
    %262 = arith.addf %260, %261 : vector<16x32xf32>
    %263 = tpu.iota {dimensions = array<i32: 0>} : vector<2x16xi32>
    %264 = tpu.iota {dimensions = array<i32: 1>} : vector<2x16xi32>
    %c8_i32 = arith.constant 8 : i32
    %265 = vector.broadcast %c8_i32 : i32 to vector<2x16xi32>
    %266 = arith.muli %263, %265 : vector<2x16xi32>
    %267 = arith.cmpi eq, %264, %266 : vector<2x16xi32>
    %268 = arith.extui %267 : vector<2x16xi1> to vector<2x16xi32>
    %269 = arith.sitofp %268 : vector<2x16xi32> to vector<2x16xf32>
    %cst_88 = arith.constant dense<0.000000e+00> : vector<2x32xf32>
    %270 = tpu.matmul %269, %262, %cst_88 {dimension_numbers = #tpu.dot_dimension_numbers<[1], [0], [0], [1], [0, 0, 1, 1], [], []>} : vector<2x16xf32>, vector<16x32xf32>, vector<2x32xf32> -> vector<2x32xf32>
    %c0_89 = arith.constant 0 : index
    %c0_90 = arith.constant 0 : index
    %271 = vector.load %arg5[%c0_89, %c0_90] : memref<32x160xf32, #tpu.memory_space<vmem>>, vector<32x160xf32>
    %272 = vector.extract_strided_slice %271 {offsets = [0, 0], sizes = [32, 32], strides = [1, 1]} : vector<32x160xf32> to vector<32x32xf32>
    %cst_91 = arith.constant dense<0.000000e+00> : vector<2x32xf32>
    %273 = tpu.matmul %270, %272, %cst_91 {dimension_numbers = #tpu.dot_dimension_numbers<[1], [0], [0], [1], [0, 0, 1, 1], [], []>} : vector<2x32xf32>, vector<32x32xf32>, vector<2x32xf32> -> vector<2x32xf32>
    %c82 = arith.constant 82 : index
    %c0_92 = arith.constant 0 : index
    %274 = vector.load %arg2[%c82, %c0_92] : memref<100x128xf32, #tpu.memory_space<vmem>>, vector<1x32xf32>
    %275 = vector.broadcast %274 : vector<1x32xf32> to vector<2x32xf32>
    %276 = arith.addf %273, %275 : vector<2x32xf32>
    %277 = math.tanh %276 : vector<2x32xf32>
    %278 = vector.extract_strided_slice %271 {offsets = [0, 32], sizes = [32, 128], strides = [1, 1]} : vector<32x160xf32> to vector<32x128xf32>
    %cst_93 = arith.constant dense<0.000000e+00> : vector<2x128xf32>
    %279 = tpu.matmul %277, %278, %cst_93 {dimension_numbers = #tpu.dot_dimension_numbers<[1], [0], [0], [1], [0, 0, 1, 1], [], []>} : vector<2x32xf32>, vector<32x128xf32>, vector<2x128xf32> -> vector<2x128xf32>
    %c83 = arith.constant 83 : index
    %c0_94 = arith.constant 0 : index
    %280 = vector.load %arg2[%c83, %c0_94] : memref<100x128xf32, #tpu.memory_space<vmem>>, vector<1x128xf32>
    %281 = vector.broadcast %280 : vector<1x128xf32> to vector<2x128xf32>
    %282 = arith.addf %279, %281 : vector<2x128xf32>
    %c0_95 = arith.constant 0 : index
    %c0_96 = arith.constant 0 : index
    %283 = vector.load %arg6[%c0_95, %c0_96] : memref<2x128xf32, #tpu.memory_space<vmem>>, vector<2x128xf32>
    tpu.vector_store %arg6[%c0_95, %c0_96], %282 {strides = array<i32>} : memref<2x128xf32, #tpu.memory_space<vmem>>, vector<2x128xf32>,
    return
  }
}

</mosaic_0001>

<llo_original>
// kernel: bert_classifier_forward.1
$region0: #{bert_classifier_forward.1}
  #allocation0 [shape = 'u32[]', space=smem, size = 0x4, offset = 0x4, fixed_abs, tag = 'smem constant byte address 0x4 - core index']
  #allocation1 [shape = 'u32[144,128]{1,0:T(1,128)}', space=vmem, size = 0x12000, scoped, tag = 'internal scratch']
  %s0 = inlined_call_operand.vmem [shape: s32[16,1], index: 0, kind: input, shape index: {}]
  %s1 = inlined_call_operand.vmem [shape: f32[2,8], index: 1, kind: input, shape index: {}]
  %s2 = inlined_call_operand.vmem [shape: f32[100,128], index: 2, kind: input, shape index: {}]
  %s3 = inlined_call_operand.vmem [shape: f32[2,32,192], index: 3, kind: input, shape index: {}]
  %s4 = inlined_call_operand.vmem [shape: f32[2,64,32], index: 4, kind: input, shape index: {}]
  %s5 = inlined_call_operand.vmem [shape: f32[32,160], index: 5, kind: input, shape index: {}]
  %s6 = inlined_call_operand.hbm [shape: f32[2,128], index: 6, kind: output, shape index: {}]
  %s7 = sld [smem:[#allocation0]]
  $region34: #{bert_classifier_forward.1} parent=0
    _
  %s9 = ssub.s32 1, %s7
  %s10 = scalar_select 0, %s9, %s7
  $region1: #{bert_classifier_forward.1} parent=0
    #allocation2 [shape = 'u8[1024]{0}', space=vmem, size = 0x400, scoped, tag = 'output window, operand 0, single buffered']
    #allocation3 [shape = 's32[1]{0}', space=sflag, size = 0x4, scoped, tag = 'scoped memory for bert_classifier_forward.1']
    %11 = vsyncpa [#allocation3], 0
    // Predicated region
    $region2: #{bert_classifier_forward.1} parent=1 // pred_check
      _
    $region3: #{bert_classifier_forward.1} parent=1 // pred_check_branch
      %13 = sbr.rel (0) target = $region5
    $region4: #{bert_classifier_forward.1} parent=1 // pred_region
      _
    $region5: #{bert_classifier_forward.1} parent=1 // pred_fallthru
      _
    // Predicated region
    $region6: #{bert_classifier_forward.1} parent=1 // pred_check
      _
    $region7: #{bert_classifier_forward.1} parent=1 // pred_check_branch
      %15 = sbr.rel (0) target = $region9
    $region8: #{bert_classifier_forward.1} parent=1 // pred_region
      _
    $region9: #{bert_classifier_forward.1} parent=1 // pred_fallthru
      _
    // Predicated region
    $region10: #{bert_classifier_forward.1} parent=1 // pred_check
      _
    $region11: #{bert_classifier_forward.1} parent=1 // pred_check_branch
      %17 = sbr.rel (0) target = $region13
    $region12: #{bert_classifier_forward.1} parent=1 // pred_region
      _
    $region13: #{bert_classifier_forward.1} parent=1 // pred_fallthru
      _
    // Predicated region
    $region14: #{bert_classifier_forward.1} parent=1 // pred_check
      _
    $region15: #{bert_classifier_forward.1} parent=1 // pred_check_branch
      %19 = sbr.rel (0) target = $region17
    $region16: #{bert_classifier_forward.1} parent=1 // pred_region
      _
    $region17: #{bert_classifier_forward.1} parent=1 // pred_fallthru
      _
    // Predicated region
    $region18: #{bert_classifier_forward.1} parent=1 // pred_check
      _
    $region19: #{bert_classifier_forward.1} parent=1 // pred_check_branch
      %21 = sbr.rel (0) target = $region21
    $region20: #{bert_classifier_forward.1} parent=1 // pred_region
      _
    $region21: #{bert_classifier_forward.1} parent=1 // pred_fallthru
      _
    // Predicated region
    $region22: #{bert_classifier_forward.1} parent=1 // pred_check
      _
    $region23: #{bert_classifier_forward.1} parent=1 // pred_check_branch
      %23 = sbr.rel (0) target = $region25
    $region24: #{bert_classifier_forward.1} parent=1 // pred_region
      _
    $region25: #{bert_classifier_forward.1} parent=1 // pred_fallthru
      _
    %v24 = vld [vmem:[%s0] sm:$0xff]
    %v25 = vld [vmem:[%s0 + $0x8] sm:$0xff]
    %v26 = vlaneseq
    %v27 = vand.u32 %v26, 127
    %28 = vset.pattern.permute.xlu0 0
    %29 = vperm.xlu0 %28, %v24
    %v30 = vpop.permute.xlu0 %29
    %31 = vset.pattern.permute.xlu0 0
    %32 = vperm.xlu0 %31, %v25
    %v33 = vpop.permute.xlu0 %32
    %vm34 = vcmp.eq.s32.totalorder %v30, %v27
    %vm35 = vcmp.eq.s32.totalorder %v33, %v27
    %v36 = vsel %vm34, 1, 0
    %v37 = vsel %vm35, 1, 0
    %v38 = vcvt.s32.f32 %v36
    %v39 = vcvt.s32.f32 %v37
    %v40 = vld [vmem:[%s2] sm:$0xff]
    %v41 = vld [vmem:[%s2 + $0x8] sm:$0xff]
    %v42 = vld [vmem:[%s2 + $0x10] sm:$0xff]
    %v43 = vld [vmem:[%s2 + $0x18] sm:$0xff]
    %v44 = vld [vmem:[%s2 + $0x20] sm:$0xff]
    %v45 = vld [vmem:[%s2 + $0x28] sm:$0xff]
    %v46 = vld [vmem:[%s2 + $0x30] sm:$0xff]
    %v47 = vld [vmem:[%s2 + $0x38] sm:$0xff]
    %v48 = vld [vmem:[%s2 + $0x40] sm:$0xff]
    %v49 = vld [vmem:[%s2 + $0x48] sm:$0xff]
    %vm50 = vcmask 523264
    %v52 = vsel %vm50, %v38, 0
    %v55 = vsel %vm50, %v39, 0
    %57 = vmatprep.subr.mxu0 0.0
    %58 = vmatpush1.msra.mxu0 %v40
    %59 = vmatprep.subr.mxu0 0.0
    %60 = vmatpush1.msra.mxu0 %v41
    %61 = vmatprep.subr.mxu0 0.0
    %62 = vmatpush1.msra.mxu0 %v42
    %63 = vmatprep.subr.mxu0 0.0
    %64 = vmatpush1.msra.mxu0 %v43
    %65 = vmatprep.subr.mxu0 0.0
    %66 = vmatpush1.msra.mxu0 %v44
    %67 = vmatprep.subr.mxu0 0.0
    %68 = vmatpush1.msra.mxu0 %v45
    %69 = vmatprep.subr.mxu0 0.0
    %70 = vmatpush1.msra.mxu0 %v46
    %71 = vmatprep.subr.mxu0 0.0
    %72 = vmatpush1.msra.mxu0 %v47
    %73 = vmatprep.subr.mxu0 0.0
    %74 = vmatpush1.msra.mxu0 0.0
    %75 = vmatprep.subr.mxu0 0.0
    %76 = vmatpush1.msra.mxu0 0.0
    %77 = vmatprep.subr.mxu0 0.0
    %78 = vmatpush1.msra.mxu0 0.0
    %79 = vmatprep.subr.mxu0 0.0
    %80 = vmatpush1.msra.mxu0 0.0
    %81 = vmatprep.subr.mxu0 0.0
    %82 = vmatpush1.msra.mxu0 0.0
    %83 = vmatprep.subr.mxu0 0.0
    %84 = vmatpush1.msra.mxu0 0.0
    %85 = vmatprep.subr.mxu0 0.0
    %86 = vmatpush1.msra.mxu0 0.0
    %87 = vmatprep.subr.mxu0 0.0
    %88 = vmatpush1.msra.mxu0 0.0
    %89 = vmatprep.subr.mxu0 0.0
    %90 = vmatpush1.msra.mxu0 0.0
    %91 = vmatprep.subr.mxu0 0.0
    %92 = vmatpush1.msra.mxu0 0.0
    %93 = vmatprep.subr.mxu0 0.0
    %94 = vmatpush1.msra.mxu0 0.0
    %95 = vmatprep.subr.mxu0 0.0
    %96 = vmatpush1.msra.mxu0 0.0
    %97 = vmatprep.subr.mxu0 0.0
    %98 = vmatpush1.msra.mxu0 0.0
    %99 = vmatprep.subr.mxu0 0.0
    %100 = vmatpush1.msra.mxu0 0.0
    %101 = vmatprep.subr.mxu0 0.0
    %102 = vmatpush1.msra.mxu0 0.0
    %103 = vmatprep.subr.mxu0 0.0
    %104 = vmatpush1.msra.mxu0 0.0
    %105 = vmatprep.subr.mxu0 0.0
    %106 = vmatpush1.msra.mxu0 0.0
    %107 = vmatprep.subr.mxu0 0.0
    %108 = vmatpush1.msra.mxu0 0.0
    %109 = vmatprep.subr.mxu0 0.0
    %110 = vmatpush1.msra.mxu0 0.0
    %111 = vmatprep.subr.mxu0 0.0
    %112 = vmatpush1.msra.mxu0 0.0
    %113 = vmatprep.subr.mxu0 0.0
    %114 = vmatpush1.msra.mxu0 0.0
    %115 = vmatprep.subr.mxu0 0.0
    %116 = vmatpush1.msra.mxu0 0.0
    %117 = vmatprep.subr.mxu0 0.0
    %118 = vmatpush1.msra.mxu0 0.0
    %119 = vmatprep.subr.mxu0 0.0
    %120 = vmatpush1.msra.mxu0 0.0
    %121 = vmatprep.mubr.f32.mxu0 0.0
    %122 = vmatmul.mubr.f32.gmra.mrb[0].mxu0 %v52
    %v123 = vpop.f32.mrb[0].mxu0
    %v124 = vadd.f32 %v48, %v123
    %v125 = vpop.f32.mrb[0].mxu0
    %126 = vmatprep.mubr.f32.mxu0 0.0
    %127 = vmatmul.mubr.f32.gmra.mrb[0].mxu0 %v55
    %v128 = vpop.f32.mrb[0].mxu0
    %v129 = vadd.f32 %v49, %v128
    %v130 = vpop.f32.mrb[0].mxu0
    %131 = vdwg.mxu0
    %v132 = vld [vmem:[%s2 + $0x50] sm:$0x1]
    %v133 = vld [vmem:[%s2 + $0x51] sm:$0x1]
    %vm134 = vcmask 261120
    %v135 = vsel %vm134, %v124, 0.0
    %136 = vadd.xlane.f32.xlu0 %v135
    %v137 = vpop.xlane.xlu0 %136
    %v138 = vsel %vm134, %v129, 0.0
    %139 = vadd.xlane.f32.xlu0 %v138
    %v140 = vpop.xlane.xlu0 %139
    %v141 = vrcp.pop 32.0
    %v142 = vmul.f32 %v137, %v141
    %v143 = vmul.f32 %v140, %v141
    %v144 = vsub.f32 %v124, %v142
    %v145 = vsub.f32 %v129, %v143
    %v146 = vmul.f32 %v144, %v144
    %v147 = vmul.f32 %v145, %v145
    %v148 = vsel %vm134, %v146, 0.0
    %149 = vadd.xlane.f32.xlu0 %v148
    %v150 = vpop.xlane.xlu0 %149
    %v151 = vsel %vm134, %v147, 0.0
    %152 = vadd.xlane.f32.xlu0 %v151
    %v153 = vpop.xlane.xlu0 %152
    %v154 = vmul.f32 %v150, %v141
    %v155 = vmul.f32 %v153, %v141
    %v156 = vadd.f32 %v154, 1e-12
    %v157 = vadd.f32 %v155, 1e-12
    %v158 = vrsqrt.pop %v156
    %v159 = vrsqrt.pop %v157
    %v160 = vmul.f32 %v144, %v158
    %v161 = vmul.f32 %v145, %v159
    %v162 = vlaneseq
    %v163 = vshrl.u32 %v162, 7
    %v164 = vsub.s32 0, %v163
    %v165 = vrot.slane %v132, %v164
    %v166 = vmul.f32 %v160, %v165
    %v167 = vmul.f32 %v161, %v165
    %v168 = vlaneseq
    %v169 = vshrl.u32 %v168, 7
    %v170 = vsub.s32 0, %v169
    %v171 = vrot.slane %v133, %v170
    %v172 = vadd.f32 %v166, %v171
    %v173 = vadd.f32 %v167, %v171
    %v174 = vld [vmem:[%s1] sm:$0x3]
    %v175 = vsub.f32 1.0, %v174
    %v176 = vmul.f32 %v175, -1e+09
    %v179 = vunpack.c.l.s4 1966171168
    %v180 = vunpack.c.0.s8 %v179
    %v181 = vlaneseq
    %v182 = vshrl.u32 %v181, 7
    %v183 = vsub.s32 %v180, %v182
    %v184 = vrot.slane %v176, %v183
    %v185 = vcombine.high %v184, %v184
    %v187 = vunpack.c.l.s4 1966171168
    %v188 = vunpack.c.0.s8 %v187
    %v189 = vlaneseq
    %v190 = vshrl.u32 %v189, 7
    %v191 = vsub.s32 %v188, %v190
    %v192 = vrot.slane %v184, %v191
    %v194 = vunpack.c.l.s4 1966171168
    %v195 = vunpack.c.0.s8 %v194
    %v196 = vlaneseq
    %v197 = vshrl.u32 %v196, 7
    %v198 = vsub.s32 %v195, %v197
    %v199 = vrot.slane %v185, %v198
    %v200 = vld [vmem:[%s2 + $0x54] sm:$0x1]
    %v201 = vld [vmem:[%s2 + $0x55] sm:$0x1]
    %v202 = vld [vmem:[%s2 + $0x56] sm:$0x1]
    %v203 = vld [vmem:[%s2 + $0x57] sm:$0x1]
    %v204 = vld [vmem:[%s2 + $0x58] sm:$0x1]
    %v205 = vld [vmem:[%s2 + $0x59] sm:$0x1]
    %v206 = vld [vmem:[%s2 + $0x5a] sm:$0x1]
    %v207 = vld [vmem:[%s2 + $0x5b] sm:$0x1]
    %v208 = vld [vmem:[%s3] sm:$0xff]
    %v209 = vld [vmem:[%s3 + $0x8] sm:$0xff]
    %v210 = vld [vmem:[%s3 + $0x10] sm:$0xff]
    %v211 = vld [vmem:[%s3 + $0x18] sm:$0xff]
    %v212 = vld [vmem:[%s3 + $0x20] sm:$0xff]
    %v213 = vld [vmem:[%s3 + $0x28] sm:$0xff]
    %v214 = vld [vmem:[%s3 + $0x30] sm:$0xff]
    %v215 = vld [vmem:[%s3 + $0x38] sm:$0xff]
    %v216 = vlaneseq
    %v217 = vshrl.u32 %v216, 7
    %v218 = vsub.s32 0, %v217
    %v219 = vrot.slane %v200, %v218
    %v221 = vsel %vm134, %v172, 0
    %v224 = vsel %vm134, %v173, 0
    %226 = vmatprep.subr.mxu0 0.0
    %227 = vmatpush1.msra.mxu0 %v208
    %228 = vmatprep.subr.mxu0 0.0
    %229 = vmatpush1.msra.mxu0 %v210
    %230 = vmatprep.subr.mxu0 0.0
    %231 = vmatpush1.msra.mxu0 %v212
    %232 = vmatprep.subr.mxu0 0.0
    %233 = vmatpush1.msra.mxu0 %v214
    %234 = vmatprep.subr.mxu0 0.0
    %235 = vmatpush1.msra.mxu0 0.0
    %236 = vmatprep.subr.mxu0 0.0
    %237 = vmatpush1.msra.mxu0 0.0
    %238 = vmatprep.subr.mxu0 0.0
    %239 = vmatpush1.msra.mxu0 0.0
    %240 = vmatprep.subr.mxu0 0.0
    %241 = vmatpush1.msra.mxu0 0.0
    %242 = vmatprep.subr.mxu0 0.0
    %243 = vmatpush1.msra.mxu0 0.0
    %244 = vmatprep.subr.mxu0 0.0
    %245 = vmatpush1.msra.mxu0 0.0
    %246 = vmatprep.subr.mxu0 0.0
    %247 = vmatpush1.msra.mxu0 0.0
    %248 = vmatprep.subr.mxu0 0.0
    %249 = vmatpush1.msra.mxu0 0.0
    %250 = vmatprep.subr.mxu0 0.0
    %251 = vmatpush1.msra.mxu0 0.0
    %252 = vmatprep.subr.mxu0 0.0
    %253 = vmatpush1.msra.mxu0 0.0
    %254 = vmatprep.subr.mxu0 0.0
    %255 = vmatpush1.msra.mxu0 0.0
    %256 = vmatprep.subr.mxu0 0.0
    %257 = vmatpush1.msra.mxu0 0.0
    %258 = vmatprep.subr.mxu0 0.0
    %259 = vmatpush1.msra.mxu0 0.0
    %260 = vmatprep.subr.mxu0 0.0
    %261 = vmatpush1.msra.mxu0 0.0
    %262 = vmatprep.subr.mxu0 0.0
    %263 = vmatpush1.msra.mxu0 0.0
    %264 = vmatprep.subr.mxu0 0.0
    %265 = vmatpush1.msra.mxu0 0.0
    %266 = vmatprep.subr.mxu0 0.0
    %267 = vmatpush1.msra.mxu0 0.0
    %268 = vmatprep.subr.mxu0 0.0
    %269 = vmatpush1.msra.mxu0 0.0
    %270 = vmatprep.subr.mxu0 0.0
    %271 = vmatpush1.msra.mxu0 0.0
    %272 = vmatprep.subr.mxu0 0.0
    %273 = vmatpush1.msra.mxu0 0.0
    %274 = vmatprep.subr.mxu0 0.0
    %275 = vmatpush1.msra.mxu0 0.0
    %276 = vmatprep.subr.mxu0 0.0
    %277 = vmatpush1.msra.mxu0 0.0
    %278 = vmatprep.subr.mxu0 0.0
    %279 = vmatpush1.msra.mxu0 0.0
    %280 = vmatprep.subr.mxu0 0.0
    %281 = vmatpush1.msra.mxu0 0.0
    %282 = vmatprep.subr.mxu0 0.0
    %283 = vmatpush1.msra.mxu0 0.0
    %284 = vmatprep.subr.mxu0 0.0
    %285 = vmatpush1.msra.mxu0 0.0
    %286 = vmatprep.subr.mxu0 0.0
    %287 = vmatpush1.msra.mxu0 0.0
    %288 = vmatprep.subr.mxu0 0.0
    %289 = vmatpush1.msra.mxu0 0.0
    %290 = vmatprep.mubr.f32.mxu0 0.0
    %291 = vmatmul.mubr.f32.gmra.mrb[0].mxu0 %v221
    %v292 = vpop.f32.mrb[0].mxu0
    %v293 = vadd.f32 %v219, %v292
    %v294 = vpop.f32.mrb[0].mxu0
    %295 = vmatprep.mubr.f32.mxu0 0.0
    %296 = vmatmul.mubr.f32.gmra.mrb[0].mxu0 %v224
    %v297 = vpop.f32.mrb[0].mxu0
    %v298 = vadd.f32 %v219, %v297
    %v299 = vpop.f32.mrb[0].mxu0
    %300 = vdwg.mxu0
    %303 = vrot.lane.b32.xlu0 %v293, 112
    %v304 = vpop.permute.xlu0 %303
    %305 = vrot.lane.b32.xlu0 %v298, 112
    %v306 = vpop.permute.xlu0 %305
    %307 = vrot.lane.b32.xlu0 %v293, 96
    %v308 = vpop.permute.xlu0 %307
    %vm309 = vcmask 130048
    %v310 = vsel %vm309, %v293, 0
    %v312 = vsel %vm309, %v308, 0
    %314 = vmatprep.subr.mxu0 0.0
    %315 = vmatpush1.xpose.msra.mxu0 %v312
    %316 = vmatprep.subr.mxu0 0.0
    %317 = vmatpush1.xpose.msra.mxu0 0.0
    %318 = vmatprep.subr.mxu0 0.0
    %319 = vmatpush1.xpose.msra.mxu0 0.0
    %320 = vmatprep.subr.mxu0 0.0
    %321 = vmatpush1.xpose.msra.mxu0 0.0
    %322 = vmatprep.subr.mxu0 0.0
    %323 = vmatpush1.xpose.msra.mxu0 0.0
    %324 = vmatprep.subr.mxu0 0.0
    %325 = vmatpush1.xpose.msra.mxu0 0.0
    %326 = vmatprep.subr.mxu0 0.0
    %327 = vmatpush1.xpose.msra.mxu0 0.0
    %328 = vmatprep.subr.mxu0 0.0
    %329 = vmatpush1.xpose.msra.mxu0 0.0
    %330 = vmatprep.subr.mxu0 0.0
    %331 = vmatpush1.xpose.msra.mxu0 0.0
    %332 = vmatprep.subr.mxu0 0.0
    %333 = vmatpush1.xpose.msra.mxu0 0.0
    %334 = vmatprep.subr.mxu0 0.0
    %335 = vmatpush1.xpose.msra.mxu0 0.0
    %336 = vmatprep.subr.mxu0 0.0
    %337 = vmatpush1.xpose.msra.mxu0 0.0
    %338 = vmatprep.subr.mxu0 0.0
    %339 = vmatpush1.xpose.msra.mxu0 0.0
    %340 = vmatprep.subr.mxu0 0.0
    %341 = vmatpush1.xpose.msra.mxu0 0.0
    %342 = vmatprep.subr.mxu0 0.0
    %343 = vmatpush1.xpose.msra.mxu0 0.0
    %344 = vmatprep.subr.mxu0 0.0
    %345 = vmatpush1.xpose.msra.mxu0 0.0
    %346 = vmatprep.subr.mxu0 0.0
    %347 = vmatpush1.xpose.msra.mxu0 0.0
    %348 = vmatprep.subr.mxu0 0.0
    %349 = vmatpush1.xpose.msra.mxu0 0.0
    %350 = vmatprep.subr.mxu0 0.0
    %351 = vmatpush1.xpose.msra.mxu0 0.0
    %352 = vmatprep.subr.mxu0 0.0
    %353 = vmatpush1.xpose.msra.mxu0 0.0
    %354 = vmatprep.subr.mxu0 0.0
    %355 = vmatpush1.xpose.msra.mxu0 0.0
    %356 = vmatprep.subr.mxu0 0.0
    %357 = vmatpush1.xpose.msra.mxu0 0.0
    %358 = vmatprep.subr.mxu0 0.0
    %359 = vmatpush1.xpose.msra.mxu0 0.0
    %360 = vmatprep.subr.mxu0 0.0
    %361 = vmatpush1.xpose.msra.mxu0 0.0
    %362 = vmatprep.subr.mxu0 0.0
    %363 = vmatpush1.xpose.msra.mxu0 0.0
    %364 = vmatprep.subr.mxu0 0.0
    %365 = vmatpush1.xpose.msra.mxu0 0.0
    %366 = vmatprep.subr.mxu0 0.0
    %367 = vmatpush1.xpose.msra.mxu0 0.0
    %368 = vmatprep.subr.mxu0 0.0
    %369 = vmatpush1.xpose.msra.mxu0 0.0
    %370 = vmatprep.subr.mxu0 0.0
    %371 = vmatpush1.xpose.msra.mxu0 0.0
    %372 = vmatprep.subr.mxu0 0.0
    %373 = vmatpush1.xpose.msra.mxu0 0.0
    %374 = vmatprep.subr.mxu0 0.0
    %375 = vmatpush1.xpose.msra.mxu0 0.0
    %376 = vmatprep.subr.mxu0 0.0
    %377 = vmatpush1.xpose.msra.mxu0 0.0
    %378 = vmatprep.mubr.f32.mxu0 0.0
    %379 = vmatmul.mubr.f32.gmra.mrb[0].mxu0 %v310
    %v380 = vpop.f32.mrb[0].mxu0
    %v381 = vadd.f32 0.0, %v380
    %v382 = vpop.f32.mrb[0].mxu0
    %383 = vdwg.mxu0
    %384 = vrot.lane.b32.xlu0 %v298, 96
    %v385 = vpop.permute.xlu0 %384
    %v386 = vsel %vm309, %v298, 0
    %v388 = vsel %vm309, %v385, 0
    %390 = vmatprep.subr.mxu0 0.0
    %391 = vmatpush1.xpose.msra.mxu0 %v388
    %392 = vmatprep.subr.mxu0 0.0
    %393 = vmatpush1.xpose.msra.mxu0 0.0
    %394 = vmatprep.subr.mxu0 0.0
    %395 = vmatpush1.xpose.msra.mxu0 0.0
    %396 = vmatprep.subr.mxu0 0.0
    %397 = vmatpush1.xpose.msra.mxu0 0.0
    %398 = vmatprep.subr.mxu0 0.0
    %399 = vmatpush1.xpose.msra.mxu0 0.0
    %400 = vmatprep.subr.mxu0 0.0
    %401 = vmatpush1.xpose.msra.mxu0 0.0
    %402 = vmatprep.subr.mxu0 0.0
    %403 = vmatpush1.xpose.msra.mxu0 0.0
    %404 = vmatprep.subr.mxu0 0.0
    %405 = vmatpush1.xpose.msra.mxu0 0.0
    %406 = vmatprep.subr.mxu0 0.0
    %407 = vmatpush1.xpose.msra.mxu0 0.0
    %408 = vmatprep.subr.mxu0 0.0
    %409 = vmatpush1.xpose.msra.mxu0 0.0
    %410 = vmatprep.subr.mxu0 0.0
    %411 = vmatpush1.xpose.msra.mxu0 0.0
    %412 = vmatprep.subr.mxu0 0.0
    %413 = vmatpush1.xpose.msra.mxu0 0.0
    %414 = vmatprep.subr.mxu0 0.0
    %415 = vmatpush1.xpose.msra.mxu0 0.0
    %416 = vmatprep.subr.mxu0 0.0
    %417 = vmatpush1.xpose.msra.mxu0 0.0
    %418 = vmatprep.subr.mxu0 0.0
    %419 = vmatpush1.xpose.msra.mxu0 0.0
    %420 = vmatprep.subr.mxu0 0.0
    %421 = vmatpush1.xpose.msra.mxu0 0.0
    %422 = vmatprep.subr.mxu0 0.0
    %423 = vmatpush1.xpose.msra.mxu0 0.0
    %424 = vmatprep.subr.mxu0 0.0
    %425 = vmatpush1.xpose.msra.mxu0 0.0
    %426 = vmatprep.subr.mxu0 0.0
    %427 = vmatpush1.xpose.msra.mxu0 0.0
    %428 = vmatprep.subr.mxu0 0.0
    %429 = vmatpush1.xpose.msra.mxu0 0.0
    %430 = vmatprep.subr.mxu0 0.0
    %431 = vmatpush1.xpose.msra.mxu0 0.0
    %432 = vmatprep.subr.mxu0 0.0
    %433 = vmatpush1.xpose.msra.mxu0 0.0
    %434 = vmatprep.subr.mxu0 0.0
    %435 = vmatpush1.xpose.msra.mxu0 0.0
    %436 = vmatprep.subr.mxu0 0.0
    %437 = vmatpush1.xpose.msra.mxu0 0.0
    %438 = vmatprep.subr.mxu0 0.0
    %439 = vmatpush1.xpose.msra.mxu0 0.0
    %440 = vmatprep.subr.mxu0 0.0
    %441 = vmatpush1.xpose.msra.mxu0 0.0
    %442 = vmatprep.subr.mxu0 0.0
    %443 = vmatpush1.xpose.msra.mxu0 0.0
    %444 = vmatprep.subr.mxu0 0.0
    %445 = vmatpush1.xpose.msra.mxu0 0.0
    %446 = vmatprep.subr.mxu0 0.0
    %447 = vmatpush1.xpose.msra.mxu0 0.0
    %448 = vmatprep.subr.mxu0 0.0
    %449 = vmatpush1.xpose.msra.mxu0 0.0
    %450 = vmatprep.subr.mxu0 0.0
    %451 = vmatpush1.xpose.msra.mxu0 0.0
    %452 = vmatprep.subr.mxu0 0.0
    %453 = vmatpush1.xpose.msra.mxu0 0.0
    %454 = vmatprep.mubr.f32.mxu0 0.0
    %455 = vmatmul.mubr.f32.gmra.mrb[0].mxu0 %v386
    %v456 = vpop.f32.mrb[0].mxu0
    %v457 = vadd.f32 0.0, %v456
    %v458 = vpop.f32.mrb[0].mxu0
    %459 = vdwg.mxu0
    %460 = vrot.lane.b32.xlu0 %v304, 96
    %v461 = vpop.permute.xlu0 %460
    %v462 = vsel %vm309, %v304, 0
    %v464 = vsel %vm309, %v461, 0
    %466 = vmatprep.subr.mxu0 0.0
    %467 = vmatpush1.xpose.msra.mxu0 %v464
    %468 = vmatprep.subr.mxu0 0.0
    %469 = vmatpush1.xpose.msra.mxu0 0.0
    %470 = vmatprep.subr.mxu0 0.0
    %471 = vmatpush1.xpose.msra.mxu0 0.0
    %472 = vmatprep.subr.mxu0 0.0
    %473 = vmatpush1.xpose.msra.mxu0 0.0
    %474 = vmatprep.subr.mxu0 0.0
    %475 = vmatpush1.xpose.msra.mxu0 0.0
    %476 = vmatprep.subr.mxu0 0.0
    %477 = vmatpush1.xpose.msra.mxu0 0.0
    %478 = vmatprep.subr.mxu0 0.0
    %479 = vmatpush1.xpose.msra.mxu0 0.0
    %480 = vmatprep.subr.mxu0 0.0
    %481 = vmatpush1.xpose.msra.mxu0 0.0
    %482 = vmatprep.subr.mxu0 0.0
    %483 = vmatpush1.xpose.msra.mxu0 0.0
    %484 = vmatprep.subr.mxu0 0.0
    %485 = vmatpush1.xpose.msra.mxu0 0.0
    %486 = vmatprep.subr.mxu0 0.0
    %487 = vmatpush1.xpose.msra.mxu0 0.0
    %488 = vmatprep.subr.mxu0 0.0
    %489 = vmatpush1.xpose.msra.mxu0 0.0
    %490 = vmatprep.subr.mxu0 0.0
    %491 = vmatpush1.xpose.msra.mxu0 0.0
    %492 = vmatprep.subr.mxu0 0.0
    %493 = vmatpush1.xpose.msra.mxu0 0.0
    %494 = vmatprep.subr.mxu0 0.0
    %495 = vmatpush1.xpose.msra.mxu0 0.0
    %496 = vmatprep.subr.mxu0 0.0
    %497 = vmatpush1.xpose.msra.mxu0 0.0
    %498 = vmatprep.subr.mxu0 0.0
    %499 = vmatpush1.xpose.msra.mxu0 0.0
    %500 = vmatprep.subr.mxu0 0.0
    %501 = vmatpush1.xpose.msra.mxu0 0.0
    %502 = vmatprep.subr.mxu0 0.0
    %503 = vmatpush1.xpose.msra.mxu0 0.0
    %504 = vmatprep.subr.mxu0 0.0
    %505 = vmatpush1.xpose.msra.mxu0 0.0
    %506 = vmatprep.subr.mxu0 0.0
    %507 = vmatpush1.xpose.msra.mxu0 0.0
    %508 = vmatprep.subr.mxu0 0.0
    %509 = vmatpush1.xpose.msra.mxu0 0.0
    %510 = vmatprep.subr.mxu0 0.0
    %511 = vmatpush1.xpose.msra.mxu0 0.0
    %512 = vmatprep.subr.mxu0 0.0
    %513 = vmatpush1.xpose.msra.mxu0 0.0
    %514 = vmatprep.subr.mxu0 0.0
    %515 = vmatpush1.xpose.msra.mxu0 0.0
    %516 = vmatprep.subr.mxu0 0.0
    %517 = vmatpush1.xpose.msra.mxu0 0.0
    %518 = vmatprep.subr.mxu0 0.0
    %519 = vmatpush1.xpose.msra.mxu0 0.0
    %520 = vmatprep.subr.mxu0 0.0
    %521 = vmatpush1.xpose.msra.mxu0 0.0
    %522 = vmatprep.subr.mxu0 0.0
    %523 = vmatpush1.xpose.msra.mxu0 0.0
    %524 = vmatprep.subr.mxu0 0.0
    %525 = vmatpush1.xpose.msra.mxu0 0.0
    %526 = vmatprep.subr.mxu0 0.0
    %527 = vmatpush1.xpose.msra.mxu0 0.0
    %528 = vmatprep.subr.mxu0 0.0
    %529 = vmatpush1.xpose.msra.mxu0 0.0
    %530 = vmatprep.mubr.f32.mxu0 0.0
    %531 = vmatmul.mubr.f32.gmra.mrb[0].mxu0 %v462
    %v532 = vpop.f32.mrb[0].mxu0
    %v533 = vadd.f32 0.0, %v532
    %v534 = vpop.f32.mrb[0].mxu0
    %535 = vdwg.mxu0
    %536 = vrot.lane.b32.xlu0 %v306, 96
    %v537 = vpop.permute.xlu0 %536
    %v538 = vsel %vm309, %v306, 0
    %v540 = vsel %vm309, %v537, 0
    %542 = vmatprep.subr.mxu0 0.0
    %543 = vmatpush1.xpose.msra.mxu0 %v540
    %544 = vmatprep.subr.mxu0 0.0
    %545 = vmatpush1.xpose.msra.mxu0 0.0
    %546 = vmatprep.subr.mxu0 0.0
    %547 = vmatpush1.xpose.msra.mxu0 0.0
    %548 = vmatprep.subr.mxu0 0.0
    %549 = vmatpush1.xpose.msra.mxu0 0.0
    %550 = vmatprep.subr.mxu0 0.0
    %551 = vmatpush1.xpose.msra.mxu0 0.0
    %552 = vmatprep.subr.mxu0 0.0
    %553 = vmatpush1.xpose.msra.mxu0 0.0
    %554 = vmatprep.subr.mxu0 0.0
    %555 = vmatpush1.xpose.msra.mxu0 0.0
    %556 = vmatprep.subr.mxu0 0.0
    %557 = vmatpush1.xpose.msra.mxu0 0.0
    %558 = vmatprep.subr.mxu0 0.0
    %559 = vmatpush1.xpose.msra.mxu0 0.0
    %560 = vmatprep.subr.mxu0 0.0
    %561 = vmatpush1.xpose.msra.mxu0 0.0
    %562 = vmatprep.subr.mxu0 0.0
    %563 = vmatpush1.xpose.msra.mxu0 0.0
    %564 = vmatprep.subr.mxu0 0.0
    %565 = vmatpush1.xpose.msra.mxu0 0.0
    %566 = vmatprep.subr.mxu0 0.0
    %567 = vmatpush1.xpose.msra.mxu0 0.0
    %568 = vmatprep.subr.mxu0 0.0
    %569 = vmatpush1.xpose.msra.mxu0 0.0
    %570 = vmatprep.subr.mxu0 0.0
    %571 = vmatpush1.xpose.msra.mxu0 0.0
    %572 = vmatprep.subr.mxu0 0.0
    %573 = vmatpush1.xpose.msra.mxu0 0.0
    %574 = vmatprep.subr.mxu0 0.0
    %575 = vmatpush1.xpose.msra.mxu0 0.0
    %576 = vmatprep.subr.mxu0 0.0
    %577 = vmatpush1.xpose.msra.mxu0 0.0
    %578 = vmatprep.subr.mxu0 0.0
    %579 = vmatpush1.xpose.msra.mxu0 0.0
    %580 = vmatprep.subr.mxu0 0.0
    %581 = vmatpush1.xpose.msra.mxu0 0.0
    %582 = vmatprep.subr.mxu0 0.0
    %583 = vmatpush1.xpose.msra.mxu0 0.0
    %584 = vmatprep.subr.mxu0 0.0
    %585 = vmatpush1.xpose.msra.mxu0 0.0
    %586 = vmatprep.subr.mxu0 0.0
    %587 = vmatpush1.xpose.msra.mxu0 0.0
    %588 = vmatprep.subr.mxu0 0.0
    %589 = vmatpush1.xpose.msra.mxu0 0.0
    %590 = vmatprep.subr.mxu0 0.0
    %591 = vmatpush1.xpose.msra.mxu0 0.0
    %592 = vmatprep.subr.mxu0 0.0
    %593 = vmatpush1.xpose.msra.mxu0 0.0
    %594 = vmatprep.subr.mxu0 0.0
    %595 = vmatpush1.xpose.msra.mxu0 0.0
    %596 = vmatprep.subr.mxu0 0.0
    %597 = vmatpush1.xpose.msra.mxu0 0.0
    %598 = vmatprep.subr.mxu0 0.0
    %599 = vmatpush1.xpose.msra.mxu0 0.0
    %600 = vmatprep.subr.mxu0 0.0
    %601 = vmatpush1.xpose.msra.mxu0 0.0
    %602 = vmatprep.subr.mxu0 0.0
    %603 = vmatpush1.xpose.msra.mxu0 0.0
    %604 = vmatprep.subr.mxu0 0.0
    %605 = vmatpush1.xpose.msra.mxu0 0.0
    %606 = vmatprep.mubr.f32.mxu0 0.0
    %607 = vmatmul.mubr.f32.gmra.mrb[0].mxu0 %v538
    %v608 = vpop.f32.mrb[0].mxu0
    %v609 = vadd.f32 0.0, %v608
    %v610 = vpop.f32.mrb[0].mxu0
    %611 = vdwg.mxu0
    %v612 = vmul.f32 %v381, 0.25
    %v613 = vmul.f32 %v457, 0.25
    %v614 = vmul.f32 %v533, 0.25
    %v615 = vmul.f32 %v609, 0.25
    %v616 = vlaneseq
    %v617 = vshrl.u32 %v616, 7
    %v618 = vsub.s32 0, %v617
    %v619 = vrot.slane %v192, %v618
    %v620 = vlaneseq
    %v621 = vshrl.u32 %v620, 7
    %v622 = vsub.s32 0, %v621
    %v623 = vrot.slane %v199, %v622
    %v626 = vadd.f32 %v612, %v619
    %v627 = vadd.f32 %v613, %v623
    %v628 = vadd.f32 %v614, %v619
    %v629 = vadd.f32 %v615, %v623
    %vm630 = vcmask 64512
    %v631 = vsel %vm630, %v626, -inf
    %632 = vmax.xlane.f32.xlu0 %v631
    %v633 = vpop.xlane.xlu0 %632
    %v634 = vsel %vm630, %v627, -inf
    %635 = vmax.xlane.f32.xlu0 %v634
    %v636 = vpop.xlane.xlu0 %635
    %v637 = vsel %vm630, %v628, -inf
    %638 = vmax.xlane.f32.xlu0 %v637
    %v639 = vpop.xlane.xlu0 %638
    %v640 = vsel %vm630, %v629, -inf
    %641 = vmax.xlane.f32.xlu0 %v640
    %v642 = vpop.xlane.xlu0 %641
    %v643 = vsub.f32 %v626, %v633
    %v644 = vsub.f32 %v627, %v636
    %v645 = vsub.f32 %v628, %v639
    %v646 = vsub.f32 %v629, %v642
    %v647 = vmul.f32 %v643, 1.442695
    %v648 = vpow.pop %v647
    %v649 = vmul.f32 %v644, 1.442695
    %v650 = vpow.pop %v649
    %v651 = vmul.f32 %v645, 1.442695
    %v652 = vpow.pop %v651
    %v653 = vmul.f32 %v646, 1.442695
    %v654 = vpow.pop %v653
    %v655 = vsel %vm630, %v648, 0.0
    %656 = vadd.xlane.f32.xlu0 %v655
    %v657 = vpop.xlane.xlu0 %656
    %v658 = vsel %vm630, %v650, 0.0
    %659 = vadd.xlane.f32.xlu0 %v658
    %v660 = vpop.xlane.xlu0 %659
    %v661 = vsel %vm630, %v652, 0.0
    %662 = vadd.xlane.f32.xlu0 %v661
    %v663 = vpop.xlane.xlu0 %662
    %v664 = vsel %vm630, %v654, 0.0
    %665 = vadd.xlane.f32.xlu0 %v664
    %v666 = vpop.xlane.xlu0 %665
    %v667 = vrcp.pop %v657
    %v668 = vrcp.pop %v660
    %v669 = vrcp.pop %v663
    %v670 = vrcp.pop %v666
    %v671 = vmul.f32 %v648, %v667
    %v672 = vmul.f32 %v650, %v668
    %v673 = vmul.f32 %v652, %v669
    %v674 = vmul.f32 %v654, %v670
    %675 = vrot.lane.b32.xlu0 %v293, 64
    %v676 = vpop.permute.xlu0 %675
    %v679 = vsel %vm630, %v671, 0
    %681 = vmatprep.subr.mxu0 0.0
    %682 = vmatpush1.msra.mxu0 %v676
    %683 = vmatprep.subr.mxu0 0.0
    %684 = vmatpush1.msra.mxu0 0.0
    %685 = vmatprep.subr.mxu0 0.0
    %686 = vmatpush1.msra.mxu0 0.0
    %687 = vmatprep.subr.mxu0 0.0
    %688 = vmatpush1.msra.mxu0 0.0
    %689 = vmatprep.subr.mxu0 0.0
    %690 = vmatpush1.msra.mxu0 0.0
    %691 = vmatprep.subr.mxu0 0.0
    %692 = vmatpush1.msra.mxu0 0.0
    %693 = vmatprep.subr.mxu0 0.0
    %694 = vmatpush1.msra.mxu0 0.0
    %695 = vmatprep.subr.mxu0 0.0
    %696 = vmatpush1.msra.mxu0 0.0
    %697 = vmatprep.subr.mxu0 0.0
    %698 = vmatpush1.msra.mxu0 0.0
    %699 = vmatprep.subr.mxu0 0.0
    %700 = vmatpush1.msra.mxu0 0.0
    %701 = vmatprep.subr.mxu0 0.0
    %702 = vmatpush1.msra.mxu0 0.0
    %703 = vmatprep.subr.mxu0 0.0
    %704 = vmatpush1.msra.mxu0 0.0
    %705 = vmatprep.subr.mxu0 0.0
    %706 = vmatpush1.msra.mxu0 0.0
    %707 = vmatprep.subr.mxu0 0.0
    %708 = vmatpush1.msra.mxu0 0.0
    %709 = vmatprep.subr.mxu0 0.0
    %710 = vmatpush1.msra.mxu0 0.0
    %711 = vmatprep.subr.mxu0 0.0
    %712 = vmatpush1.msra.mxu0 0.0
    %713 = vmatprep.subr.mxu0 0.0
    %714 = vmatpush1.msra.mxu0 0.0
    %715 = vmatprep.subr.mxu0 0.0
    %716 = vmatpush1.msra.mxu0 0.0
    %717 = vmatprep.subr.mxu0 0.0
    %718 = vmatpush1.msra.mxu0 0.0
    %719 = vmatprep.subr.mxu0 0.0
    %720 = vmatpush1.msra.mxu0 0.0
    %721 = vmatprep.subr.mxu0 0.0
    %722 = vmatpush1.msra.mxu0 0.0
    %723 = vmatprep.subr.mxu0 0.0
    %724 = vmatpush1.msra.mxu0 0.0
    %725 = vmatprep.subr.mxu0 0.0
    %726 = vmatpush1.msra.mxu0 0.0
    %727 = vmatprep.subr.mxu0 0.0
    %728 = vmatpush1.msra.mxu0 0.0
    %729 = vmatprep.subr.mxu0 0.0
    %730 = vmatpush1.msra.mxu0 0.0
    %731 = vmatprep.subr.mxu0 0.0
    %732 = vmatpush1.msra.mxu0 0.0
    %733 = vmatprep.subr.mxu0 0.0
    %734 = vmatpush1.msra.mxu0 0.0
    %735 = vmatprep.subr.mxu0 0.0
    %736 = vmatpush1.msra.mxu0 0.0
    %737 = vmatprep.subr.mxu0 0.0
    %738 = vmatpush1.msra.mxu0 0.0
    %739 = vmatprep.subr.mxu0 0.0
    %740 = vmatpush1.msra.mxu0 0.0
    %741 = vmatprep.subr.mxu0 0.0
    %742 = vmatpush1.msra.mxu0 0.0
    %743 = vmatprep.subr.mxu0 0.0
    %744 = vmatpush1.msra.mxu0 0.0
    %745 = vmatprep.mubr.f32.mxu0 0.0
    %746 = vmatmul.mubr.f32.gmra.mrb[0].mxu0 %v679
    %v747 = vpop.f32.mrb[0].mxu0
    %v748 = vadd.f32 0.0, %v747
    %v749 = vpop.f32.mrb[0].mxu0
    %750 = vdwg.mxu0
    %751 = vrot.lane.b32.xlu0 %v298, 64
    %v752 = vpop.permute.xlu0 %751
    %v755 = vsel %vm630, %v672, 0
    %757 = vmatprep.subr.mxu0 0.0
    %758 = vmatpush1.msra.mxu0 %v752
    %759 = vmatprep.subr.mxu0 0.0
    %760 = vmatpush1.msra.mxu0 0.0
    %761 = vmatprep.subr.mxu0 0.0
    %762 = vmatpush1.msra.mxu0 0.0
    %763 = vmatprep.subr.mxu0 0.0
    %764 = vmatpush1.msra.mxu0 0.0
    %765 = vmatprep.subr.mxu0 0.0
    %766 = vmatpush1.msra.mxu0 0.0
    %767 = vmatprep.subr.mxu0 0.0
    %768 = vmatpush1.msra.mxu0 0.0
    %769 = vmatprep.subr.mxu0 0.0
    %770 = vmatpush1.msra.mxu0 0.0
    %771 = vmatprep.subr.mxu0 0.0
    %772 = vmatpush1.msra.mxu0 0.0
    %773 = vmatprep.subr.mxu0 0.0
    %774 = vmatpush1.msra.mxu0 0.0
    %775 = vmatprep.subr.mxu0 0.0
    %776 = vmatpush1.msra.mxu0 0.0
    %777 = vmatprep.subr.mxu0 0.0
    %778 = vmatpush1.msra.mxu0 0.0
    %779 = vmatprep.subr.mxu0 0.0
    %780 = vmatpush1.msra.mxu0 0.0
    %781 = vmatprep.subr.mxu0 0.0
    %782 = vmatpush1.msra.mxu0 0.0
    %783 = vmatprep.subr.mxu0 0.0
    %784 = vmatpush1.msra.mxu0 0.0
    %785 = vmatprep.subr.mxu0 0.0
    %786 = vmatpush1.msra.mxu0 0.0
    %787 = vmatprep.subr.mxu0 0.0
    %788 = vmatpush1.msra.mxu0 0.0
    %789 = vmatprep.subr.mxu0 0.0
    %790 = vmatpush1.msra.mxu0 0.0
    %791 = vmatprep.subr.mxu0 0.0
    %792 = vmatpush1.msra.mxu0 0.0
    %793 = vmatprep.subr.mxu0 0.0
    %794 = vmatpush1.msra.mxu0 0.0
    %795 = vmatprep.subr.mxu0 0.0
    %796 = vmatpush1.msra.mxu0 0.0
    %797 = vmatprep.subr.mxu0 0.0
    %798 = vmatpush1.msra.mxu0 0.0
    %799 = vmatprep.subr.mxu0 0.0
    %800 = vmatpush1.msra.mxu0 0.0
    %801 = vmatprep.subr.mxu0 0.0
    %802 = vmatpush1.msra.mxu0 0.0
    %803 = vmatprep.subr.mxu0 0.0
    %804 = vmatpush1.msra.mxu0 0.0
    %805 = vmatprep.subr.mxu0 0.0
    %806 = vmatpush1.msra.mxu0 0.0
    %807 = vmatprep.subr.mxu0 0.0
    %808 = vmatpush1.msra.mxu0 0.0
    %809 = vmatprep.subr.mxu0 0.0
    %810 = vmatpush1.msra.mxu0 0.0
    %811 = vmatprep.subr.mxu0 0.0
    %812 = vmatpush1.msra.mxu0 0.0
    %813 = vmatprep.subr.mxu0 0.0
    %814 = vmatpush1.msra.mxu0 0.0
    %815 = vmatprep.subr.mxu0 0.0
    %816 = vmatpush1.msra.mxu0 0.0
    %817 = vmatprep.subr.mxu0 0.0
    %818 = vmatpush1.msra.mxu0 0.0
    %819 = vmatprep.subr.mxu0 0.0
    %820 = vmatpush1.msra.mxu0 0.0
    %821 = vmatprep.mubr.f32.mxu0 0.0
    %822 = vmatmul.mubr.f32.gmra.mrb[0].mxu0 %v755
    %v823 = vpop.f32.mrb[0].mxu0
    %v824 = vadd.f32 0.0, %v823
    %v825 = vpop.f32.mrb[0].mxu0
    %826 = vdwg.mxu0
    %827 = vrot.lane.b32.xlu0 %v304, 64
    %v828 = vpop.permute.xlu0 %827
    %v831 = vsel %vm630, %v673, 0
    %833 = vmatprep.subr.mxu0 0.0
    %834 = vmatpush1.msra.mxu0 %v828
    %835 = vmatprep.subr.mxu0 0.0
    %836 = vmatpush1.msra.mxu0 0.0
    %837 = vmatprep.subr.mxu0 0.0
    %838 = vmatpush1.msra.mxu0 0.0
    %839 = vmatprep.subr.mxu0 0.0
    %840 = vmatpush1.msra.mxu0 0.0
    %841 = vmatprep.subr.mxu0 0.0
    %842 = vmatpush1.msra.mxu0 0.0
    %843 = vmatprep.subr.mxu0 0.0
    %844 = vmatpush1.msra.mxu0 0.0
    %845 = vmatprep.subr.mxu0 0.0
    %846 = vmatpush1.msra.mxu0 0.0
    %847 = vmatprep.subr.mxu0 0.0
    %848 = vmatpush1.msra.mxu0 0.0
    %849 = vmatprep.subr.mxu0 0.0
    %850 = vmatpush1.msra.mxu0 0.0
    %851 = vmatprep.subr.mxu0 0.0
    %852 = vmatpush1.msra.mxu0 0.0
    %853 = vmatprep.subr.mxu0 0.0
    %854 = vmatpush1.msra.mxu0 0.0
    %855 = vmatprep.subr.mxu0 0.0
    %856 = vmatpush1.msra.mxu0 0.0
    %857 = vmatprep.subr.mxu0 0.0
    %858 = vmatpush1.msra.mxu0 0.0
    %859 = vmatprep.subr.mxu0 0.0
    %860 = vmatpush1.msra.mxu0 0.0
    %861 = vmatprep.subr.mxu0 0.0
    %862 = vmatpush1.msra.mxu0 0.0
    %863 = vmatprep.subr.mxu0 0.0
    %864 = vmatpush1.msra.mxu0 0.0
    %865 = vmatprep.subr.mxu0 0.0
    %866 = vmatpush1.msra.mxu0 0.0
    %867 = vmatprep.subr.mxu0 0.0
    %868 = vmatpush1.msra.mxu0 0.0
    %869 = vmatprep.subr.mxu0 0.0
    %870 = vmatpush1.msra.mxu0 0.0
    %871 = vmatprep.subr.mxu0 0.0
    %872 = vmatpush1.msra.mxu0 0.0
    %873 = vmatprep.subr.mxu0 0.0
    %874 = vmatpush1.msra.mxu0 0.0
    %875 = vmatprep.subr.mxu0 0.0
    %876 = vmatpush1.msra.mxu0 0.0
    %877 = vmatprep.subr.mxu0 0.0
    %878 = vmatpush1.msra.mxu0 0.0
    %879 = vmatprep.subr.mxu0 0.0
    %880 = vmatpush1.msra.mxu0 0.0
    %881 = vmatprep.subr.mxu0 0.0
    %882 = vmatpush1.msra.mxu0 0.0
    %883 = vmatprep.subr.mxu0 0.0
    %884 = vmatpush1.msra.mxu0 0.0
    %885 = vmatprep.subr.mxu0 0.0
    %886 = vmatpush1.msra.mxu0 0.0
    %887 = vmatprep.subr.mxu0 0.0
    %888 = vmatpush1.msra.mxu0 0.0
    %889 = vmatprep.subr.mxu0 0.0
    %890 = vmatpush1.msra.mxu0 0.0
    %891 = vmatprep.subr.mxu0 0.0
    %892 = vmatpush1.msra.mxu0 0.0
    %893 = vmatprep.subr.mxu0 0.0
    %894 = vmatpush1.msra.mxu0 0.0
    %895 = vmatprep.subr.mxu0 0.0
    %896 = vmatpush1.msra.mxu0 0.0
    %897 = vmatprep.mubr.f32.mxu0 0.0
    %898 = vmatmul.mubr.f32.gmra.mrb[0].mxu0 %v831
    %v899 = vpop.f32.mrb[0].mxu0
    %v900 = vadd.f32 0.0, %v899
    %v901 = vpop.f32.mrb[0].mxu0
    %902 = vdwg.mxu0
    %903 = vrot.lane.b32.xlu0 %v306, 64
    %v904 = vpop.permute.xlu0 %903
    %v907 = vsel %vm630, %v674, 0
    %909 = vmatprep.subr.mxu0 0.0
    %910 = vmatpush1.msra.mxu0 %v904
    %911 = vmatprep.subr.mxu0 0.0
    %912 = vmatpush1.msra.mxu0 0.0
    %913 = vmatprep.subr.mxu0 0.0
    %914 = vmatpush1.msra.mxu0 0.0
    %915 = vmatprep.subr.mxu0 0.0
    %916 = vmatpush1.msra.mxu0 0.0
    %917 = vmatprep.subr.mxu0 0.0
    %918 = vmatpush1.msra.mxu0 0.0
    %919 = vmatprep.subr.mxu0 0.0
    %920 = vmatpush1.msra.mxu0 0.0
    %921 = vmatprep.subr.mxu0 0.0
    %922 = vmatpush1.msra.mxu0 0.0
    %923 = vmatprep.subr.mxu0 0.0
    %924 = vmatpush1.msra.mxu0 0.0
    %925 = vmatprep.subr.mxu0 0.0
    %926 = vmatpush1.msra.mxu0 0.0
    %927 = vmatprep.subr.mxu0 0.0
    %928 = vmatpush1.msra.mxu0 0.0
    %929 = vmatprep.subr.mxu0 0.0
    %930 = vmatpush1.msra.mxu0 0.0
    %931 = vmatprep.subr.mxu0 0.0
    %932 = vmatpush1.msra.mxu0 0.0
    %933 = vmatprep.subr.mxu0 0.0
    %934 = vmatpush1.msra.mxu0 0.0
    %935 = vmatprep.subr.mxu0 0.0
    %936 = vmatpush1.msra.mxu0 0.0
    %937 = vmatprep.subr.mxu0 0.0
    %938 = vmatpush1.msra.mxu0 0.0
    %939 = vmatprep.subr.mxu0 0.0
    %940 = vmatpush1.msra.mxu0 0.0
    %941 = vmatprep.subr.mxu0 0.0
    %942 = vmatpush1.msra.mxu0 0.0
    %943 = vmatprep.subr.mxu0 0.0
    %944 = vmatpush1.msra.mxu0 0.0
    %945 = vmatprep.subr.mxu0 0.0
    %946 = vmatpush1.msra.mxu0 0.0
    %947 = vmatprep.subr.mxu0 0.0
    %948 = vmatpush1.msra.mxu0 0.0
    %949 = vmatprep.subr.mxu0 0.0
    %950 = vmatpush1.msra.mxu0 0.0
    %951 = vmatprep.subr.mxu0 0.0
    %952 = vmatpush1.msra.mxu0 0.0
    %953 = vmatprep.subr.mxu0 0.0
    %954 = vmatpush1.msra.mxu0 0.0
    %955 = vmatprep.subr.mxu0 0.0
    %956 = vmatpush1.msra.mxu0 0.0
    %957 = vmatprep.subr.mxu0 0.0
    %958 = vmatpush1.msra.mxu0 0.0
    %959 = vmatprep.subr.mxu0 0.0
    %960 = vmatpush1.msra.mxu0 0.0
    %961 = vmatprep.subr.mxu0 0.0
    %962 = vmatpush1.msra.mxu0 0.0
    %963 = vmatprep.subr.mxu0 0.0
    %964 = vmatpush1.msra.mxu0 0.0
    %965 = vmatprep.subr.mxu0 0.0
    %966 = vmatpush1.msra.mxu0 0.0
    %967 = vmatprep.subr.mxu0 0.0
    %968 = vmatpush1.msra.mxu0 0.0
    %969 = vmatprep.subr.mxu0 0.0
    %970 = vmatpush1.msra.mxu0 0.0
    %971 = vmatprep.subr.mxu0 0.0
    %972 = vmatpush1.msra.mxu0 0.0
    %973 = vmatprep.mubr.f32.mxu0 0.0
    %974 = vmatmul.mubr.f32.gmra.mrb[0].mxu0 %v907
    %v975 = vpop.f32.mrb[0].mxu0
    %v976 = vadd.f32 0.0, %v975
    %v977 = vpop.f32.mrb[0].mxu0
    %978 = vdwg.mxu0
    %981 = vrot.lane.b32.xlu0 %v900, 16
    %v982 = vpop.permute.xlu0 %981
    %983 = vrot.lane.b32.xlu0 %v976, 16
    %v984 = vpop.permute.xlu0 %983
    %v987 = vsel %vm309, %v748, %v982
    %v988 = vsel %vm309, %v824, %v984
    %v989 = vlaneseq
    %v990 = vshrl.u32 %v989, 7
    %v991 = vsub.s32 0, %v990
    %v992 = vrot.slane %v201, %v991
    %997 = vrot.lane.b32.xlu0 %v208, 32
    %v998 = vpop.permute.xlu0 %997
    %999 = vrot.lane.b32.xlu0 %v210, 32
    %v1000 = vpop.permute.xlu0 %999
    %1001 = vrot.lane.b32.xlu0 %v212, 32
    %v1002 = vpop.permute.xlu0 %1001
    %1003 = vrot.lane.b32.xlu0 %v214, 32
    %v1004 = vpop.permute.xlu0 %1003
    %v1010 = vsel %vm134, %v987, 0
    %v1013 = vsel %vm134, %v988, 0
    %1015 = vmatprep.subr.mxu0 0.0
    %1016 = vmatpush1.msra.mxu0 %v998
    %1017 = vmatprep.subr.mxu0 0.0
    %1018 = vmatpush1.msra.mxu0 %v1000
    %1019 = vmatprep.subr.mxu0 0.0
    %1020 = vmatpush1.msra.mxu0 %v1002
    %1021 = vmatprep.subr.mxu0 0.0
    %1022 = vmatpush1.msra.mxu0 %v1004
    %1023 = vmatprep.subr.mxu0 0.0
    %1024 = vmatpush1.msra.mxu0 0.0
    %1025 = vmatprep.subr.mxu0 0.0
    %1026 = vmatpush1.msra.mxu0 0.0
    %1027 = vmatprep.subr.mxu0 0.0
    %1028 = vmatpush1.msra.mxu0 0.0
    %1029 = vmatprep.subr.mxu0 0.0
    %1030 = vmatpush1.msra.mxu0 0.0
    %1031 = vmatprep.subr.mxu0 0.0
    %1032 = vmatpush1.msra.mxu0 0.0
    %1033 = vmatprep.subr.mxu0 0.0
    %1034 = vmatpush1.msra.mxu0 0.0
    %1035 = vmatprep.subr.mxu0 0.0
    %1036 = vmatpush1.msra.mxu0 0.0
    %1037 = vmatprep.subr.mxu0 0.0
    %1038 = vmatpush1.msra.mxu0 0.0
    %1039 = vmatprep.subr.mxu0 0.0
    %1040 = vmatpush1.msra.mxu0 0.0
    %1041 = vmatprep.subr.mxu0 0.0
    %1042 = vmatpush1.msra.mxu0 0.0
    %1043 = vmatprep.subr.mxu0 0.0
    %1044 = vmatpush1.msra.mxu0 0.0
    %1045 = vmatprep.subr.mxu0 0.0
    %1046 = vmatpush1.msra.mxu0 0.0
    %1047 = vmatprep.subr.mxu0 0.0
    %1048 = vmatpush1.msra.mxu0 0.0
    %1049 = vmatprep.subr.mxu0 0.0
    %1050 = vmatpush1.msra.mxu0 0.0
    %1051 = vmatprep.subr.mxu0 0.0
    %1052 = vmatpush1.msra.mxu0 0.0
    %1053 = vmatprep.subr.mxu0 0.0
    %1054 = vmatpush1.msra.mxu0 0.0
    %1055 = vmatprep.subr.mxu0 0.0
    %1056 = vmatpush1.msra.mxu0 0.0
    %1057 = vmatprep.subr.mxu0 0.0
    %1058 = vmatpush1.msra.mxu0 0.0
    %1059 = vmatprep.subr.mxu0 0.0
    %1060 = vmatpush1.msra.mxu0 0.0
    %1061 = vmatprep.subr.mxu0 0.0
    %1062 = vmatpush1.msra.mxu0 0.0
    %1063 = vmatprep.subr.mxu0 0.0
    %1064 = vmatpush1.msra.mxu0 0.0
    %1065 = vmatprep.subr.mxu0 0.0
    %1066 = vmatpush1.msra.mxu0 0.0
    %1067 = vmatprep.subr.mxu0 0.0
    %1068 = vmatpush1.msra.mxu0 0.0
    %1069 = vmatprep.subr.mxu0 0.0
    %1070 = vmatpush1.msra.mxu0 0.0
    %1071 = vmatprep.subr.mxu0 0.0
    %1072 = vmatpush1.msra.mxu0 0.0
    %1073 = vmatprep.subr.mxu0 0.0
    %1074 = vmatpush1.msra.mxu0 0.0
    %1075 = vmatprep.subr.mxu0 0.0
    %1076 = vmatpush1.msra.mxu0 0.0
    %1077 = vmatprep.subr.mxu0 0.0
    %1078 = vmatpush1.msra.mxu0 0.0
    %1079 = vmatprep.mubr.f32.mxu0 0.0
    %1080 = vmatmul.mubr.f32.gmra.mrb[0].mxu0 %v1010
    %v1081 = vpop.f32.mrb[0].mxu0
    %v1082 = vadd.f32 %v992, %v1081
    %v1083 = vpop.f32.mrb[0].mxu0
    %1084 = vmatprep.mubr.f32.mxu0 0.0
    %1085 = vmatmul.mubr.f32.gmra.mrb[0].mxu0 %v1013
    %v1086 = vpop.f32.mrb[0].mxu0
    %v1087 = vadd.f32 %v992, %v1086
    %v1088 = vpop.f32.mrb[0].mxu0
    %1089 = vdwg.mxu0
    %v1090 = vadd.f32 %v172, %v1082
    %v1091 = vadd.f32 %v173, %v1087
    %v1092 = vsel %vm134, %v1090, 0.0
    %1093 = vadd.xlane.f32.xlu0 %v1092
    %v1094 = vpop.xlane.xlu0 %1093
    %v1095 = vsel %vm134, %v1091, 0.0
    %1096 = vadd.xlane.f32.xlu0 %v1095
    %v1097 = vpop.xlane.xlu0 %1096
    %v1098 = vmul.f32 %v1094, %v141
    %v1099 = vmul.f32 %v1097, %v141
    %v1100 = vsub.f32 %v1090, %v1098
    %v1101 = vsub.f32 %v1091, %v1099
    %v1102 = vmul.f32 %v1100, %v1100
    %v1103 = vmul.f32 %v1101, %v1101
    %v1104 = vsel %vm134, %v1102, 0.0
    %1105 = vadd.xlane.f32.xlu0 %v1104
    %v1106 = vpop.xlane.xlu0 %1105
    %v1107 = vsel %vm134, %v1103, 0.0
    %1108 = vadd.xlane.f32.xlu0 %v1107
    %v1109 = vpop.xlane.xlu0 %1108
    %v1110 = vmul.f32 %v1106, %v141
    %v1111 = vmul.f32 %v1109, %v141
    %v1112 = vadd.f32 %v1110, 1e-12
    %v1113 = vadd.f32 %v1111, 1e-12
    %v1114 = vrsqrt.pop %v1112
    %v1115 = vrsqrt.pop %v1113
    %v1116 = vmul.f32 %v1100, %v1114
    %v1117 = vmul.f32 %v1101, %v1115
    %v1118 = vlaneseq
    %v1119 = vshrl.u32 %v1118, 7
    %v1120 = vsub.s32 0, %v1119
    %v1121 = vrot.slane %v202, %v1120
    %v1122 = vmul.f32 %v1116, %v1121
    %v1123 = vmul.f32 %v1117, %v1121
    %v1124 = vlaneseq
    %v1125 = vshrl.u32 %v1124, 7
    %v1126 = vsub.s32 0, %v1125
    %v1127 = vrot.slane %v203, %v1126
    %v1128 = vadd.f32 %v1122, %v1127
    %v1129 = vadd.f32 %v1123, %v1127
    %v1130 = vlaneseq
    %v1131 = vshrl.u32 %v1130, 7
    %v1132 = vsub.s32 0, %v1131
    %v1133 = vrot.slane %v204, %v1132
    %v1135 = vsel %vm134, %v1128, 0
    %v1138 = vsel %vm134, %v1129, 0
    %1140 = vmatprep.subr.mxu0 0.0
    %1141 = vmatpush1.msra.mxu0 %v209
    %1142 = vmatprep.subr.mxu0 0.0
    %1143 = vmatpush1.msra.mxu0 %v211
    %1144 = vmatprep.subr.mxu0 0.0
    %1145 = vmatpush1.msra.mxu0 %v213
    %1146 = vmatprep.subr.mxu0 0.0
    %1147 = vmatpush1.msra.mxu0 %v215
    %1148 = vmatprep.subr.mxu0 0.0
    %1149 = vmatpush1.msra.mxu0 0.0
    %1150 = vmatprep.subr.mxu0 0.0
    %1151 = vmatpush1.msra.mxu0 0.0
    %1152 = vmatprep.subr.mxu0 0.0
    %1153 = vmatpush1.msra.mxu0 0.0
    %1154 = vmatprep.subr.mxu0 0.0
    %1155 = vmatpush1.msra.mxu0 0.0
    %1156 = vmatprep.subr.mxu0 0.0
    %1157 = vmatpush1.msra.mxu0 0.0
    %1158 = vmatprep.subr.mxu0 0.0
    %1159 = vmatpush1.msra.mxu0 0.0
    %1160 = vmatprep.subr.mxu0 0.0
    %1161 = vmatpush1.msra.mxu0 0.0
    %1162 = vmatprep.subr.mxu0 0.0
    %1163 = vmatpush1.msra.mxu0 0.0
    %1164 = vmatprep.subr.mxu0 0.0
    %1165 = vmatpush1.msra.mxu0 0.0
    %1166 = vmatprep.subr.mxu0 0.0
    %1167 = vmatpush1.msra.mxu0 0.0
    %1168 = vmatprep.subr.mxu0 0.0
    %1169 = vmatpush1.msra.mxu0 0.0
    %1170 = vmatprep.subr.mxu0 0.0
    %1171 = vmatpush1.msra.mxu0 0.0
    %1172 = vmatprep.subr.mxu0 0.0
    %1173 = vmatpush1.msra.mxu0 0.0
    %1174 = vmatprep.subr.mxu0 0.0
    %1175 = vmatpush1.msra.mxu0 0.0
    %1176 = vmatprep.subr.mxu0 0.0
    %1177 = vmatpush1.msra.mxu0 0.0
    %1178 = vmatprep.subr.mxu0 0.0
    %1179 = vmatpush1.msra.mxu0 0.0
    %1180 = vmatprep.subr.mxu0 0.0
    %1181 = vmatpush1.msra.mxu0 0.0
    %1182 = vmatprep.subr.mxu0 0.0
    %1183 = vmatpush1.msra.mxu0 0.0
    %1184 = vmatprep.subr.mxu0 0.0
    %1185 = vmatpush1.msra.mxu0 0.0
    %1186 = vmatprep.subr.mxu0 0.0
    %1187 = vmatpush1.msra.mxu0 0.0
    %1188 = vmatprep.subr.mxu0 0.0
    %1189 = vmatpush1.msra.mxu0 0.0
    %1190 = vmatprep.subr.mxu0 0.0
    %1191 = vmatpush1.msra.mxu0 0.0
    %1192 = vmatprep.subr.mxu0 0.0
    %1193 = vmatpush1.msra.mxu0 0.0
    %1194 = vmatprep.subr.mxu0 0.0
    %1195 = vmatpush1.msra.mxu0 0.0
    %1196 = vmatprep.subr.mxu0 0.0
    %1197 = vmatpush1.msra.mxu0 0.0
    %1198 = vmatprep.subr.mxu0 0.0
    %1199 = vmatpush1.msra.mxu0 0.0
    %1200 = vmatprep.subr.mxu0 0.0
    %1201 = vmatpush1.msra.mxu0 0.0
    %1202 = vmatprep.subr.mxu0 0.0
    %1203 = vmatpush1.msra.mxu0 0.0
    %1204 = vmatprep.mubr.f32.mxu0 0.0
    %1205 = vmatmul.mubr.f32.gmra.mrb[0].mxu0 %v1135
    %v1206 = vpop.f32.mrb[0].mxu0
    %v1207 = vadd.f32 %v1133, %v1206
    %v1208 = vpop.f32.mrb[0].mxu0
    %1209 = vmatprep.mubr.f32.mxu0 0.0
    %1210 = vmatmul.mubr.f32.gmra.mrb[0].mxu0 %v1138
    %v1211 = vpop.f32.mrb[0].mxu0
    %v1212 = vadd.f32 %v1133, %v1211
    %v1213 = vpop.f32.mrb[0].mxu0
    %1214 = vdwg.mxu0
    %v1215 = vmul.f32 %v1207, 0.5
    %v1216 = vmul.f32 %v1212, 0.5
    %v1217 = vmul.f32 %v1207, 0.044715
    %v1218 = vmul.f32 %v1212, 0.044715
    %v1219 = vmul.f32 %v1217, %v1207
    %v1220 = vmul.f32 %v1218, %v1212
    %v1221 = vmul.f32 %v1219, %v1207
    %v1222 = vmul.f32 %v1220, %v1212
    %v1223 = vadd.f32 %v1207, %v1221
    %v1224 = vadd.f32 %v1212, %v1222
    %v1225 = vmul.f32 %v1223, 0.7978846
    %v1226 = vmul.f32 %v1224, 0.7978846
    %v1227 = vtanh.pop %v1225
    %v1228 = vtanh.pop %v1226
    %v1229 = vadd.f32 %v1227, 1.0
    %v1230 = vadd.f32 %v1228, 1.0
    %v1231 = vmul.f32 %v1215, %v1229
    %v1232 = vmul.f32 %v1216, %v1230
    %v1233 = vld [vmem:[%s4] sm:$0xff]
    %v1234 = vld [vmem:[%s4 + $0x8] sm:$0xff]
    %v1235 = vld [vmem:[%s4 + $0x10] sm:$0xff]
    %v1236 = vld [vmem:[%s4 + $0x18] sm:$0xff]
    %v1237 = vld [vmem:[%s4 + $0x20] sm:$0xff]
    %v1238 = vld [vmem:[%s4 + $0x28] sm:$0xff]
    %v1239 = vld [vmem:[%s4 + $0x30] sm:$0xff]
    %v1240 = vld [vmem:[%s4 + $0x38] sm:$0xff]
    %v1241 = vlaneseq
    %v1242 = vshrl.u32 %v1241, 7
    %v1243 = vsub.s32 0, %v1242
    %v1244 = vrot.slane %v205, %v1243
    %v1246 = vsel %vm50, %v1231, 0
    %v1249 = vsel %vm50, %v1232, 0
    %1251 = vmatprep.subr.mxu0 0.0
    %1252 = vmatpush1.msra.mxu0 %v1233
    %1253 = vmatprep.subr.mxu0 0.0
    %1254 = vmatpush1.msra.mxu0 %v1234
    %1255 = vmatprep.subr.mxu0 0.0
    %1256 = vmatpush1.msra.mxu0 %v1235
    %1257 = vmatprep.subr.mxu0 0.0
    %1258 = vmatpush1.msra.mxu0 %v1236
    %1259 = vmatprep.subr.mxu0 0.0
    %1260 = vmatpush1.msra.mxu0 %v1237
    %1261 = vmatprep.subr.mxu0 0.0
    %1262 = vmatpush1.msra.mxu0 %v1238
    %1263 = vmatprep.subr.mxu0 0.0
    %1264 = vmatpush1.msra.mxu0 %v1239
    %1265 = vmatprep.subr.mxu0 0.0
    %1266 = vmatpush1.msra.mxu0 %v1240
    %1267 = vmatprep.subr.mxu0 0.0
    %1268 = vmatpush1.msra.mxu0 0.0
    %1269 = vmatprep.subr.mxu0 0.0
    %1270 = vmatpush1.msra.mxu0 0.0
    %1271 = vmatprep.subr.mxu0 0.0
    %1272 = vmatpush1.msra.mxu0 0.0
    %1273 = vmatprep.subr.mxu0 0.0
    %1274 = vmatpush1.msra.mxu0 0.0
    %1275 = vmatprep.subr.mxu0 0.0
    %1276 = vmatpush1.msra.mxu0 0.0
    %1277 = vmatprep.subr.mxu0 0.0
    %1278 = vmatpush1.msra.mxu0 0.0
    %1279 = vmatprep.subr.mxu0 0.0
    %1280 = vmatpush1.msra.mxu0 0.0
    %1281 = vmatprep.subr.mxu0 0.0
    %1282 = vmatpush1.msra.mxu0 0.0
    %1283 = vmatprep.subr.mxu0 0.0
    %1284 = vmatpush1.msra.mxu0 0.0
    %1285 = vmatprep.subr.mxu0 0.0
    %1286 = vmatpush1.msra.mxu0 0.0
    %1287 = vmatprep.subr.mxu0 0.0
    %1288 = vmatpush1.msra.mxu0 0.0
    %1289 = vmatprep.subr.mxu0 0.0
    %1290 = vmatpush1.msra.mxu0 0.0
    %1291 = vmatprep.subr.mxu0 0.0
    %1292 = vmatpush1.msra.mxu0 0.0
    %1293 = vmatprep.subr.mxu0 0.0
    %1294 = vmatpush1.msra.mxu0 0.0
    %1295 = vmatprep.subr.mxu0 0.0
    %1296 = vmatpush1.msra.mxu0 0.0
    %1297 = vmatprep.subr.mxu0 0.0
    %1298 = vmatpush1.msra.mxu0 0.0
    %1299 = vmatprep.subr.mxu0 0.0
    %1300 = vmatpush1.msra.mxu0 0.0
    %1301 = vmatprep.subr.mxu0 0.0
    %1302 = vmatpush1.msra.mxu0 0.0
    %1303 = vmatprep.subr.mxu0 0.0
    %1304 = vmatpush1.msra.mxu0 0.0
    %1305 = vmatprep.subr.mxu0 0.0
    %1306 = vmatpush1.msra.mxu0 0.0
    %1307 = vmatprep.subr.mxu0 0.0
    %1308 = vmatpush1.msra.mxu0 0.0
    %1309 = vmatprep.subr.mxu0 0.0
    %1310 = vmatpush1.msra.mxu0 0.0
    %1311 = vmatprep.subr.mxu0 0.0
    %1312 = vmatpush1.msra.mxu0 0.0
    %1313 = vmatprep.subr.mxu0 0.0
    %1314 = vmatpush1.msra.mxu0 0.0
    %1315 = vmatprep.mubr.f32.mxu0 0.0
    %1316 = vmatmul.mubr.f32.gmra.mrb[0].mxu0 %v1246
    %v1317 = vpop.f32.mrb[0].mxu0
    %v1318 = vadd.f32 %v1244, %v1317
    %v1319 = vpop.f32.mrb[0].mxu0
    %1320 = vmatprep.mubr.f32.mxu0 0.0
    %1321 = vmatmul.mubr.f32.gmra.mrb[0].mxu0 %v1249
    %v1322 = vpop.f32.mrb[0].mxu0
    %v1323 = vadd.f32 %v1244, %v1322
    %v1324 = vpop.f32.mrb[0].mxu0
    %1325 = vdwg.mxu0
    %v1326 = vadd.f32 %v1128, %v1318
    %v1327 = vadd.f32 %v1129, %v1323
    %v1328 = vsel %vm134, %v1326, 0.0
    %1329 = vadd.xlane.f32.xlu0 %v1328
    %v1330 = vpop.xlane.xlu0 %1329
    %v1331 = vsel %vm134, %v1327, 0.0
    %1332 = vadd.xlane.f32.xlu0 %v1331
    %v1333 = vpop.xlane.xlu0 %1332
    %v1334 = vmul.f32 %v1330, %v141
    %v1335 = vmul.f32 %v1333, %v141
    %v1336 = vsub.f32 %v1326, %v1334
    %v1337 = vsub.f32 %v1327, %v1335
    %v1338 = vmul.f32 %v1336, %v1336
    %v1339 = vmul.f32 %v1337, %v1337
    %v1340 = vsel %vm134, %v1338, 0.0
    %1341 = vadd.xlane.f32.xlu0 %v1340
    %v1342 = vpop.xlane.xlu0 %1341
    %v1343 = vsel %vm134, %v1339, 0.0
    %1344 = vadd.xlane.f32.xlu0 %v1343
    %v1345 = vpop.xlane.xlu0 %1344
    %v1346 = vmul.f32 %v1342, %v141
    %v1347 = vmul.f32 %v1345, %v141
    %v1348 = vadd.f32 %v1346, 1e-12
    %v1349 = vadd.f32 %v1347, 1e-12
    %v1350 = vrsqrt.pop %v1348
    %v1351 = vrsqrt.pop %v1349
    %v1352 = vmul.f32 %v1336, %v1350
    %v1353 = vmul.f32 %v1337, %v1351
    %v1354 = vlaneseq
    %v1355 = vshrl.u32 %v1354, 7
    %v1356 = vsub.s32 0, %v1355
    %v1357 = vrot.slane %v206, %v1356
    %v1358 = vmul.f32 %v1352, %v1357
    %v1359 = vmul.f32 %v1353, %v1357
    %v1360 = vlaneseq
    %v1361 = vshrl.u32 %v1360, 7
    %v1362 = vsub.s32 0, %v1361
    %v1363 = vrot.slane %v207, %v1362
    %v1364 = vadd.f32 %v1358, %v1363
    %v1365 = vadd.f32 %v1359, %v1363
    %v1366 = vld [vmem:[%s2 + $0x5c] sm:$0x1]
    %v1367 = vld [vmem:[%s2 + $0x5d] sm:$0x1]
    %v1368 = vld [vmem:[%s2 + $0x5e] sm:$0x1]
    %v1369 = vld [vmem:[%s2 + $0x5f] sm:$0x1]
    %v1370 = vld [vmem:[%s2 + $0x60] sm:$0x1]
    %v1371 = vld [vmem:[%s2 + $0x61] sm:$0x1]
    %v1372 = vld [vmem:[%s2 + $0x62] sm:$0x1]
    %v1373 = vld [vmem:[%s2 + $0x63] sm:$0x1]
    %s1374 = scalar_lea.vmem %s3, 64
    %v1375 = vld [vmem:[%s1374] sm:$0xff]
    %v1376 = vld [vmem:[%s1374 + $0x8] sm:$0xff]
    %v1377 = vld [vmem:[%s1374 + $0x10] sm:$0xff]
    %v1378 = vld [vmem:[%s1374 + $0x18] sm:$0xff]
    %v1379 = vld [vmem:[%s1374 + $0x20] sm:$0xff]
    %v1380 = vld [vmem:[%s1374 + $0x28] sm:$0xff]
    %v1381 = vld [vmem:[%s1374 + $0x30] sm:$0xff]
    %v1382 = vld [vmem:[%s1374 + $0x38] sm:$0xff]
    %v1383 = vlaneseq
    %v1384 = vshrl.u32 %v1383, 7
    %v1385 = vsub.s32 0, %v1384
    %v1386 = vrot.slane %v1366, %v1385
    %v1388 = vsel %vm134, %v1364, 0
    %v1391 = vsel %vm134, %v1365, 0
    %1393 = vmatprep.subr.mxu0 0.0
    %1394 = vmatpush1.msra.mxu0 %v1375
    %1395 = vmatprep.subr.mxu0 0.0
    %1396 = vmatpush1.msra.mxu0 %v1377
    %1397 = vmatprep.subr.mxu0 0.0
    %1398 = vmatpush1.msra.mxu0 %v1379
    %1399 = vmatprep.subr.mxu0 0.0
    %1400 = vmatpush1.msra.mxu0 %v1381
    %1401 = vmatprep.subr.mxu0 0.0
    %1402 = vmatpush1.msra.mxu0 0.0
    %1403 = vmatprep.subr.mxu0 0.0
    %1404 = vmatpush1.msra.mxu0 0.0
    %1405 = vmatprep.subr.mxu0 0.0
    %1406 = vmatpush1.msra.mxu0 0.0
    %1407 = vmatprep.subr.mxu0 0.0
    %1408 = vmatpush1.msra.mxu0 0.0
    %1409 = vmatprep.subr.mxu0 0.0
    %1410 = vmatpush1.msra.mxu0 0.0
    %1411 = vmatprep.subr.mxu0 0.0
    %1412 = vmatpush1.msra.mxu0 0.0
    %1413 = vmatprep.subr.mxu0 0.0
    %1414 = vmatpush1.msra.mxu0 0.0
    %1415 = vmatprep.subr.mxu0 0.0
    %1416 = vmatpush1.msra.mxu0 0.0
    %1417 = vmatprep.subr.mxu0 0.0
    %1418 = vmatpush1.msra.mxu0 0.0
    %1419 = vmatprep.subr.mxu0 0.0
    %1420 = vmatpush1.msra.mxu0 0.0
    %1421 = vmatprep.subr.mxu0 0.0
    %1422 = vmatpush1.msra.mxu0 0.0
    %1423 = vmatprep.subr.mxu0 0.0
    %1424 = vmatpush1.msra.mxu0 0.0
    %1425 = vmatprep.subr.mxu0 0.0
    %1426 = vmatpush1.msra.mxu0 0.0
    %1427 = vmatprep.subr.mxu0 0.0
    %1428 = vmatpush1.msra.mxu0 0.0
    %1429 = vmatprep.subr.mxu0 0.0
    %1430 = vmatpush1.msra.mxu0 0.0
    %1431 = vmatprep.subr.mxu0 0.0
    %1432 = vmatpush1.msra.mxu0 0.0
    %1433 = vmatprep.subr.mxu0 0.0
    %1434 = vmatpush1.msra.mxu0 0.0
    %1435 = vmatprep.subr.mxu0 0.0
    %1436 = vmatpush1.msra.mxu0 0.0
    %1437 = vmatprep.subr.mxu0 0.0
    %1438 = vmatpush1.msra.mxu0 0.0
    %1439 = vmatprep.subr.mxu0 0.0
    %1440 = vmatpush1.msra.mxu0 0.0
    %1441 = vmatprep.subr.mxu0 0.0
    %1442 = vmatpush1.msra.mxu0 0.0
    %1443 = vmatprep.subr.mxu0 0.0
    %1444 = vmatpush1.msra.mxu0 0.0
    %1445 = vmatprep.subr.mxu0 0.0
    %1446 = vmatpush1.msra.mxu0 0.0
    %1447 = vmatprep.subr.mxu0 0.0
    %1448 = vmatpush1.msra.mxu0 0.0
    %1449 = vmatprep.subr.mxu0 0.0
    %1450 = vmatpush1.msra.mxu0 0.0
    %1451 = vmatprep.subr.mxu0 0.0
    %1452 = vmatpush1.msra.mxu0 0.0
    %1453 = vmatprep.subr.mxu0 0.0
    %1454 = vmatpush1.msra.mxu0 0.0
    %1455 = vmatprep.subr.mxu0 0.0
    %1456 = vmatpush1.msra.mxu0 0.0
    %1457 = vmatprep.mubr.f32.mxu0 0.0
    %1458 = vmatmul.mubr.f32.gmra.mrb[0].mxu0 %v1388
    %v1459 = vpop.f32.mrb[0].mxu0
    %v1460 = vadd.f32 %v1386, %v1459
    %v1461 = vpop.f32.mrb[0].mxu0
    %1462 = vmatprep.mubr.f32.mxu0 0.0
    %1463 = vmatmul.mubr.f32.gmra.mrb[0].mxu0 %v1391
    %v1464 = vpop.f32.mrb[0].mxu0
    %v1465 = vadd.f32 %v1386, %v1464
    %v1466 = vpop.f32.mrb[0].mxu0
    %1467 = vdwg.mxu0
    %1470 = vrot.lane.b32.xlu0 %v1460, 112
    %v1471 = vpop.permute.xlu0 %1470
    %1472 = vrot.lane.b32.xlu0 %v1465, 112
    %v1473 = vpop.permute.xlu0 %1472
    %1474 = vrot.lane.b32.xlu0 %v1460, 96
    %v1475 = vpop.permute.xlu0 %1474
    %v1476 = vsel %vm309, %v1460, 0
    %v1478 = vsel %vm309, %v1475, 0
    %1480 = vmatprep.subr.mxu0 0.0
    %1481 = vmatpush1.xpose.msra.mxu0 %v1478
    %1482 = vmatprep.subr.mxu0 0.0
    %1483 = vmatpush1.xpose.msra.mxu0 0.0
    %1484 = vmatprep.subr.mxu0 0.0
    %1485 = vmatpush1.xpose.msra.mxu0 0.0
    %1486 = vmatprep.subr.mxu0 0.0
    %1487 = vmatpush1.xpose.msra.mxu0 0.0
    %1488 = vmatprep.subr.mxu0 0.0
    %1489 = vmatpush1.xpose.msra.mxu0 0.0
    %1490 = vmatprep.subr.mxu0 0.0
    %1491 = vmatpush1.xpose.msra.mxu0 0.0
    %1492 = vmatprep.subr.mxu0 0.0
    %1493 = vmatpush1.xpose.msra.mxu0 0.0
    %1494 = vmatprep.subr.mxu0 0.0
    %1495 = vmatpush1.xpose.msra.mxu0 0.0
    %1496 = vmatprep.subr.mxu0 0.0
    %1497 = vmatpush1.xpose.msra.mxu0 0.0
    %1498 = vmatprep.subr.mxu0 0.0
    %1499 = vmatpush1.xpose.msra.mxu0 0.0
    %1500 = vmatprep.subr.mxu0 0.0
    %1501 = vmatpush1.xpose.msra.mxu0 0.0
    %1502 = vmatprep.subr.mxu0 0.0
    %1503 = vmatpush1.xpose.msra.mxu0 0.0
    %1504 = vmatprep.subr.mxu0 0.0
    %1505 = vmatpush1.xpose.msra.mxu0 0.0
    %1506 = vmatprep.subr.mxu0 0.0
    %1507 = vmatpush1.xpose.msra.mxu0 0.0
    %1508 = vmatprep.subr.mxu0 0.0
    %1509 = vmatpush1.xpose.msra.mxu0 0.0
    %1510 = vmatprep.subr.mxu0 0.0
    %1511 = vmatpush1.xpose.msra.mxu0 0.0
    %1512 = vmatprep.subr.mxu0 0.0
    %1513 = vmatpush1.xpose.msra.mxu0 0.0
    %1514 = vmatprep.subr.mxu0 0.0
    %1515 = vmatpush1.xpose.msra.mxu0 0.0
    %1516 = vmatprep.subr.mxu0 0.0
    %1517 = vmatpush1.xpose.msra.mxu0 0.0
    %1518 = vmatprep.subr.mxu0 0.0
    %1519 = vmatpush1.xpose.msra.mxu0 0.0
    %1520 = vmatprep.subr.mxu0 0.0
    %1521 = vmatpush1.xpose.msra.mxu0 0.0
    %1522 = vmatprep.subr.mxu0 0.0
    %1523 = vmatpush1.xpose.msra.mxu0 0.0
    %1524 = vmatprep.subr.mxu0 0.0
    %1525 = vmatpush1.xpose.msra.mxu0 0.0
    %1526 = vmatprep.subr.mxu0 0.0
    %1527 = vmatpush1.xpose.msra.mxu0 0.0
    %1528 = vmatprep.subr.mxu0 0.0
    %1529 = vmatpush1.xpose.msra.mxu0 0.0
    %1530 = vmatprep.subr.mxu0 0.0
    %1531 = vmatpush1.xpose.msra.mxu0 0.0
    %1532 = vmatprep.subr.mxu0 0.0
    %1533 = vmatpush1.xpose.msra.mxu0 0.0
    %1534 = vmatprep.subr.mxu0 0.0
    %1535 = vmatpush1.xpose.msra.mxu0 0.0
    %1536 = vmatprep.subr.mxu0 0.0
    %1537 = vmatpush1.xpose.msra.mxu0 0.0
    %1538 = vmatprep.subr.mxu0 0.0
    %1539 = vmatpush1.xpose.msra.mxu0 0.0
    %1540 = vmatprep.subr.mxu0 0.0
    %1541 = vmatpush1.xpose.msra.mxu0 0.0
    %1542 = vmatprep.subr.mxu0 0.0
    %1543 = vmatpush1.xpose.msra.mxu0 0.0
    %1544 = vmatprep.mubr.f32.mxu0 0.0
    %1545 = vmatmul.mubr.f32.gmra.mrb[0].mxu0 %v1476
    %v1546 = vpop.f32.mrb[0].mxu0
    %v1547 = vadd.f32 0.0, %v1546
    %v1548 = vpop.f32.mrb[0].mxu0
    %1549 = vdwg.mxu0
    %1550 = vrot.lane.b32.xlu0 %v1465, 96
    %v1551 = vpop.permute.xlu0 %1550
    %v1552 = vsel %vm309, %v1465, 0
    %v1554 = vsel %vm309, %v1551, 0
    %1556 = vmatprep.subr.mxu0 0.0
    %1557 = vmatpush1.xpose.msra.mxu0 %v1554
    %1558 = vmatprep.subr.mxu0 0.0
    %1559 = vmatpush1.xpose.msra.mxu0 0.0
    %1560 = vmatprep.subr.mxu0 0.0
    %1561 = vmatpush1.xpose.msra.mxu0 0.0
    %1562 = vmatprep.subr.mxu0 0.0
    %1563 = vmatpush1.xpose.msra.mxu0 0.0
    %1564 = vmatprep.subr.mxu0 0.0
    %1565 = vmatpush1.xpose.msra.mxu0 0.0
    %1566 = vmatprep.subr.mxu0 0.0
    %1567 = vmatpush1.xpose.msra.mxu0 0.0
    %1568 = vmatprep.subr.mxu0 0.0
    %1569 = vmatpush1.xpose.msra.mxu0 0.0
    %1570 = vmatprep.subr.mxu0 0.0
    %1571 = vmatpush1.xpose.msra.mxu0 0.0
    %1572 = vmatprep.subr.mxu0 0.0
    %1573 = vmatpush1.xpose.msra.mxu0 0.0
    %1574 = vmatprep.subr.mxu0 0.0
    %1575 = vmatpush1.xpose.msra.mxu0 0.0
    %1576 = vmatprep.subr.mxu0 0.0
    %1577 = vmatpush1.xpose.msra.mxu0 0.0
    %1578 = vmatprep.subr.mxu0 0.0
    %1579 = vmatpush1.xpose.msra.mxu0 0.0
    %1580 = vmatprep.subr.mxu0 0.0
    %1581 = vmatpush1.xpose.msra.mxu0 0.0
    %1582 = vmatprep.subr.mxu0 0.0
    %1583 = vmatpush1.xpose.msra.mxu0 0.0
    %1584 = vmatprep.subr.mxu0 0.0
    %1585 = vmatpush1.xpose.msra.mxu0 0.0
    %1586 = vmatprep.subr.mxu0 0.0
    %1587 = vmatpush1.xpose.msra.mxu0 0.0
    %1588 = vmatprep.subr.mxu0 0.0
    %1589 = vmatpush1.xpose.msra.mxu0 0.0
    %1590 = vmatprep.subr.mxu0 0.0
    %1591 = vmatpush1.xpose.msra.mxu0 0.0
    %1592 = vmatprep.subr.mxu0 0.0
    %1593 = vmatpush1.xpose.msra.mxu0 0.0
    %1594 = vmatprep.subr.mxu0 0.0
    %1595 = vmatpush1.xpose.msra.mxu0 0.0
    %1596 = vmatprep.subr.mxu0 0.0
    %1597 = vmatpush1.xpose.msra.mxu0 0.0
    %1598 = vmatprep.subr.mxu0 0.0
    %1599 = vmatpush1.xpose.msra.mxu0 0.0
    %1600 = vmatprep.subr.mxu0 0.0
    %1601 = vmatpush1.xpose.msra.mxu0 0.0
    %1602 = vmatprep.subr.mxu0 0.0
    %1603 = vmatpush1.xpose.msra.mxu0 0.0
    %1604 = vmatprep.subr.mxu0 0.0
    %1605 = vmatpush1.xpose.msra.mxu0 0.0
    %1606 = vmatprep.subr.mxu0 0.0
    %1607 = vmatpush1.xpose.msra.mxu0 0.0
    %1608 = vmatprep.subr.mxu0 0.0
    %1609 = vmatpush1.xpose.msra.mxu0 0.0
    %1610 = vmatprep.subr.mxu0 0.0
    %1611 = vmatpush1.xpose.msra.mxu0 0.0
    %1612 = vmatprep.subr.mxu0 0.0
    %1613 = vmatpush1.xpose.msra.mxu0 0.0
    %1614 = vmatprep.subr.mxu0 0.0
    %1615 = vmatpush1.xpose.msra.mxu0 0.0
    %1616 = vmatprep.subr.mxu0 0.0
    %1617 = vmatpush1.xpose.msra.mxu0 0.0
    %1618 = vmatprep.subr.mxu0 0.0
    %1619 = vmatpush1.xpose.msra.mxu0 0.0
    %1620 = vmatprep.mubr.f32.mxu0 0.0
    %1621 = vmatmul.mubr.f32.gmra.mrb[0].mxu0 %v1552
    %v1622 = vpop.f32.mrb[0].mxu0
    %v1623 = vadd.f32 0.0, %v1622
    %v1624 = vpop.f32.mrb[0].mxu0
    %1625 = vdwg.mxu0
    %1626 = vrot.lane.b32.xlu0 %v1471, 96
    %v1627 = vpop.permute.xlu0 %1626
    %v1628 = vsel %vm309, %v1471, 0
    %v1630 = vsel %vm309, %v1627, 0
    %1632 = vmatprep.subr.mxu0 0.0
    %1633 = vmatpush1.xpose.msra.mxu0 %v1630
    %1634 = vmatprep.subr.mxu0 0.0
    %1635 = vmatpush1.xpose.msra.mxu0 0.0
    %1636 = vmatprep.subr.mxu0 0.0
    %1637 = vmatpush1.xpose.msra.mxu0 0.0
    %1638 = vmatprep.subr.mxu0 0.0
    %1639 = vmatpush1.xpose.msra.mxu0 0.0
    %1640 = vmatprep.subr.mxu0 0.0
    %1641 = vmatpush1.xpose.msra.mxu0 0.0
    %1642 = vmatprep.subr.mxu0 0.0
    %1643 = vmatpush1.xpose.msra.mxu0 0.0
    %1644 = vmatprep.subr.mxu0 0.0
    %1645 = vmatpush1.xpose.msra.mxu0 0.0
    %1646 = vmatprep.subr.mxu0 0.0
    %1647 = vmatpush1.xpose.msra.mxu0 0.0
    %1648 = vmatprep.subr.mxu0 0.0
    %1649 = vmatpush1.xpose.msra.mxu0 0.0
    %1650 = vmatprep.subr.mxu0 0.0
    %1651 = vmatpush1.xpose.msra.mxu0 0.0
    %1652 = vmatprep.subr.mxu0 0.0
    %1653 = vmatpush1.xpose.msra.mxu0 0.0
    %1654 = vmatprep.subr.mxu0 0.0
    %1655 = vmatpush1.xpose.msra.mxu0 0.0
    %1656 = vmatprep.subr.mxu0 0.0
    %1657 = vmatpush1.xpose.msra.mxu0 0.0
    %1658 = vmatprep.subr.mxu0 0.0
    %1659 = vmatpush1.xpose.msra.mxu0 0.0
    %1660 = vmatprep.subr.mxu0 0.0
    %1661 = vmatpush1.xpose.msra.mxu0 0.0
    %1662 = vmatprep.subr.mxu0 0.0
    %1663 = vmatpush1.xpose.msra.mxu0 0.0
    %1664 = vmatprep.subr.mxu0 0.0
    %1665 = vmatpush1.xpose.msra.mxu0 0.0
    %1666 = vmatprep.subr.mxu0 0.0
    %1667 = vmatpush1.xpose.msra.mxu0 0.0
    %1668 = vmatprep.subr.mxu0 0.0
    %1669 = vmatpush1.xpose.msra.mxu0 0.0
    %1670 = vmatprep.subr.mxu0 0.0
    %1671 = vmatpush1.xpose.msra.mxu0 0.0
    %1672 = vmatprep.subr.mxu0 0.0
    %1673 = vmatpush1.xpose.msra.mxu0 0.0
    %1674 = vmatprep.subr.mxu0 0.0
    %1675 = vmatpush1.xpose.msra.mxu0 0.0
    %1676 = vmatprep.subr.mxu0 0.0
    %1677 = vmatpush1.xpose.msra.mxu0 0.0
    %1678 = vmatprep.subr.mxu0 0.0
    %1679 = vmatpush1.xpose.msra.mxu0 0.0
    %1680 = vmatprep.subr.mxu0 0.0
    %1681 = vmatpush1.xpose.msra.mxu0 0.0
    %1682 = vmatprep.subr.mxu0 0.0
    %1683 = vmatpush1.xpose.msra.mxu0 0.0
    %1684 = vmatprep.subr.mxu0 0.0
    %1685 = vmatpush1.xpose.msra.mxu0 0.0
    %1686 = vmatprep.subr.mxu0 0.0
    %1687 = vmatpush1.xpose.msra.mxu0 0.0
    %1688 = vmatprep.subr.mxu0 0.0
    %1689 = vmatpush1.xpose.msra.mxu0 0.0
    %1690 = vmatprep.subr.mxu0 0.0
    %1691 = vmatpush1.xpose.msra.mxu0 0.0
    %1692 = vmatprep.subr.mxu0 0.0
    %1693 = vmatpush1.xpose.msra.mxu0 0.0
    %1694 = vmatprep.subr.mxu0 0.0
    %1695 = vmatpush1.xpose.msra.mxu0 0.0
    %1696 = vmatprep.mubr.f32.mxu0 0.0
    %1697 = vmatmul.mubr.f32.gmra.mrb[0].mxu0 %v1628
    %v1698 = vpop.f32.mrb[0].mxu0
    %v1699 = vadd.f32 0.0, %v1698
    %v1700 = vpop.f32.mrb[0].mxu0
    %1701 = vdwg.mxu0
    %1702 = vrot.lane.b32.xlu0 %v1473, 96
    %v1703 = vpop.permute.xlu0 %1702
    %v1704 = vsel %vm309, %v1473, 0
    %v1706 = vsel %vm309, %v1703, 0
    %1708 = vmatprep.subr.mxu0 0.0
    %1709 = vmatpush1.xpose.msra.mxu0 %v1706
    %1710 = vmatprep.subr.mxu0 0.0
    %1711 = vmatpush1.xpose.msra.mxu0 0.0
    %1712 = vmatprep.subr.mxu0 0.0
    %1713 = vmatpush1.xpose.msra.mxu0 0.0
    %1714 = vmatprep.subr.mxu0 0.0
    %1715 = vmatpush1.xpose.msra.mxu0 0.0
    %1716 = vmatprep.subr.mxu0 0.0
    %1717 = vmatpush1.xpose.msra.mxu0 0.0
    %1718 = vmatprep.subr.mxu0 0.0
    %1719 = vmatpush1.xpose.msra.mxu0 0.0
    %1720 = vmatprep.subr.mxu0 0.0
    %1721 = vmatpush1.xpose.msra.mxu0 0.0
    %1722 = vmatprep.subr.mxu0 0.0
    %1723 = vmatpush1.xpose.msra.mxu0 0.0
    %1724 = vmatprep.subr.mxu0 0.0
    %1725 = vmatpush1.xpose.msra.mxu0 0.0
    %1726 = vmatprep.subr.mxu0 0.0
    %1727 = vmatpush1.xpose.msra.mxu0 0.0
    %1728 = vmatprep.subr.mxu0 0.0
    %1729 = vmatpush1.xpose.msra.mxu0 0.0
    %1730 = vmatprep.subr.mxu0 0.0
    %1731 = vmatpush1.xpose.msra.mxu0 0.0
    %1732 = vmatprep.subr.mxu0 0.0
    %1733 = vmatpush1.xpose.msra.mxu0 0.0
    %1734 = vmatprep.subr.mxu0 0.0
    %1735 = vmatpush1.xpose.msra.mxu0 0.0
    %1736 = vmatprep.subr.mxu0 0.0
    %1737 = vmatpush1.xpose.msra.mxu0 0.0
    %1738 = vmatprep.subr.mxu0 0.0
    %1739 = vmatpush1.xpose.msra.mxu0 0.0
    %1740 = vmatprep.subr.mxu0 0.0
    %1741 = vmatpush1.xpose.msra.mxu0 0.0
    %1742 = vmatprep.subr.mxu0 0.0
    %1743 = vmatpush1.xpose.msra.mxu0 0.0
    %1744 = vmatprep.subr.mxu0 0.0
    %1745 = vmatpush1.xpose.msra.mxu0 0.0
    %1746 = vmatprep.subr.mxu0 0.0
    %1747 = vmatpush1.xpose.msra.mxu0 0.0
    %1748 = vmatprep.subr.mxu0 0.0
    %1749 = vmatpush1.xpose.msra.mxu0 0.0
    %1750 = vmatprep.subr.mxu0 0.0
    %1751 = vmatpush1.xpose.msra.mxu0 0.0
    %1752 = vmatprep.subr.mxu0 0.0
    %1753 = vmatpush1.xpose.msra.mxu0 0.0
    %1754 = vmatprep.subr.mxu0 0.0
    %1755 = vmatpush1.xpose.msra.mxu0 0.0
    %1756 = vmatprep.subr.mxu0 0.0
    %1757 = vmatpush1.xpose.msra.mxu0 0.0
    %1758 = vmatprep.subr.mxu0 0.0
    %1759 = vmatpush1.xpose.msra.mxu0 0.0
    %1760 = vmatprep.subr.mxu0 0.0
    %1761 = vmatpush1.xpose.msra.mxu0 0.0
    %1762 = vmatprep.subr.mxu0 0.0
    %1763 = vmatpush1.xpose.msra.mxu0 0.0
    %1764 = vmatprep.subr.mxu0 0.0
    %1765 = vmatpush1.xpose.msra.mxu0 0.0
    %1766 = vmatprep.subr.mxu0 0.0
    %1767 = vmatpush1.xpose.msra.mxu0 0.0
    %1768 = vmatprep.subr.mxu0 0.0
    %1769 = vmatpush1.xpose.msra.mxu0 0.0
    %1770 = vmatprep.subr.mxu0 0.0
    %1771 = vmatpush1.xpose.msra.mxu0 0.0
    %1772 = vmatprep.mubr.f32.mxu0 0.0
    %1773 = vmatmul.mubr.f32.gmra.mrb[0].mxu0 %v1704
    %v1774 = vpop.f32.mrb[0].mxu0
    %v1775 = vadd.f32 0.0, %v1774
    %v1776 = vpop.f32.mrb[0].mxu0
    %1777 = vdwg.mxu0
    %v1778 = vmul.f32 %v1547, 0.25
    %v1779 = vmul.f32 %v1623, 0.25
    %v1780 = vmul.f32 %v1699, 0.25
    %v1781 = vmul.f32 %v1775, 0.25
    %v1782 = vadd.f32 %v1778, %v619
    %v1783 = vadd.f32 %v1779, %v623
    %v1784 = vadd.f32 %v1780, %v619
    %v1785 = vadd.f32 %v1781, %v623
    %v1786 = vsel %vm630, %v1782, -inf
    %1787 = vmax.xlane.f32.xlu0 %v1786
    %v1788 = vpop.xlane.xlu0 %1787
    %v1789 = vsel %vm630, %v1783, -inf
    %1790 = vmax.xlane.f32.xlu0 %v1789
    %v1791 = vpop.xlane.xlu0 %1790
    %v1792 = vsel %vm630, %v1784, -inf
    %1793 = vmax.xlane.f32.xlu0 %v1792
    %v1794 = vpop.xlane.xlu0 %1793
    %v1795 = vsel %vm630, %v1785, -inf
    %1796 = vmax.xlane.f32.xlu0 %v1795
    %v1797 = vpop.xlane.xlu0 %1796
    %v1798 = vsub.f32 %v1782, %v1788
    %v1799 = vsub.f32 %v1783, %v1791
    %v1800 = vsub.f32 %v1784, %v1794
    %v1801 = vsub.f32 %v1785, %v1797
    %v1802 = vmul.f32 %v1798, 1.442695
    %v1803 = vpow.pop %v1802
    %v1804 = vmul.f32 %v1799, 1.442695
    %v1805 = vpow.pop %v1804
    %v1806 = vmul.f32 %v1800, 1.442695
    %v1807 = vpow.pop %v1806
    %v1808 = vmul.f32 %v1801, 1.442695
    %v1809 = vpow.pop %v1808
    %v1810 = vsel %vm630, %v1803, 0.0
    %1811 = vadd.xlane.f32.xlu0 %v1810
    %v1812 = vpop.xlane.xlu0 %1811
    %v1813 = vsel %vm630, %v1805, 0.0
    %1814 = vadd.xlane.f32.xlu0 %v1813
    %v1815 = vpop.xlane.xlu0 %1814
    %v1816 = vsel %vm630, %v1807, 0.0
    %1817 = vadd.xlane.f32.xlu0 %v1816
    %v1818 = vpop.xlane.xlu0 %1817
    %v1819 = vsel %vm630, %v1809, 0.0
    %1820 = vadd.xlane.f32.xlu0 %v1819
    %v1821 = vpop.xlane.xlu0 %1820
    %v1822 = vrcp.pop %v1812
    %v1823 = vrcp.pop %v1815
    %v1824 = vrcp.pop %v1818
    %v1825 = vrcp.pop %v1821
    %v1826 = vmul.f32 %v1803, %v1822
    %v1827 = vmul.f32 %v1805, %v1823
    %v1828 = vmul.f32 %v1807, %v1824
    %v1829 = vmul.f32 %v1809, %v1825
    %1830 = vrot.lane.b32.xlu0 %v1460, 64
    %v1831 = vpop.permute.xlu0 %1830
    %v1834 = vsel %vm630, %v1826, 0
    %1836 = vmatprep.subr.mxu0 0.0
    %1837 = vmatpush1.msra.mxu0 %v1831
    %1838 = vmatprep.subr.mxu0 0.0
    %1839 = vmatpush1.msra.mxu0 0.0
    %1840 = vmatprep.subr.mxu0 0.0
    %1841 = vmatpush1.msra.mxu0 0.0
    %1842 = vmatprep.subr.mxu0 0.0
    %1843 = vmatpush1.msra.mxu0 0.0
    %1844 = vmatprep.subr.mxu0 0.0
    %1845 = vmatpush1.msra.mxu0 0.0
    %1846 = vmatprep.subr.mxu0 0.0
    %1847 = vmatpush1.msra.mxu0 0.0
    %1848 = vmatprep.subr.mxu0 0.0
    %1849 = vmatpush1.msra.mxu0 0.0
    %1850 = vmatprep.subr.mxu0 0.0
    %1851 = vmatpush1.msra.mxu0 0.0
    %1852 = vmatprep.subr.mxu0 0.0
    %1853 = vmatpush1.msra.mxu0 0.0
    %1854 = vmatprep.subr.mxu0 0.0
    %1855 = vmatpush1.msra.mxu0 0.0
    %1856 = vmatprep.subr.mxu0 0.0
    %1857 = vmatpush1.msra.mxu0 0.0
    %1858 = vmatprep.subr.mxu0 0.0
    %1859 = vmatpush1.msra.mxu0 0.0
    %1860 = vmatprep.subr.mxu0 0.0
    %1861 = vmatpush1.msra.mxu0 0.0
    %1862 = vmatprep.subr.mxu0 0.0
    %1863 = vmatpush1.msra.mxu0 0.0
    %1864 = vmatprep.subr.mxu0 0.0
    %1865 = vmatpush1.msra.mxu0 0.0
    %1866 = vmatprep.subr.mxu0 0.0
    %1867 = vmatpush1.msra.mxu0 0.0
    %1868 = vmatprep.subr.mxu0 0.0
    %1869 = vmatpush1.msra.mxu0 0.0
    %1870 = vmatprep.subr.mxu0 0.0
    %1871 = vmatpush1.msra.mxu0 0.0
    %1872 = vmatprep.subr.mxu0 0.0
    %1873 = vmatpush1.msra.mxu0 0.0
    %1874 = vmatprep.subr.mxu0 0.0
    %1875 = vmatpush1.msra.mxu0 0.0
    %1876 = vmatprep.subr.mxu0 0.0
    %1877 = vmatpush1.msra.mxu0 0.0
    %1878 = vmatprep.subr.mxu0 0.0
    %1879 = vmatpush1.msra.mxu0 0.0
    %1880 = vmatprep.subr.mxu0 0.0
    %1881 = vmatpush1.msra.mxu0 0.0
    %1882 = vmatprep.subr.mxu0 0.0
    %1883 = vmatpush1.msra.mxu0 0.0
    %1884 = vmatprep.subr.mxu0 0.0
    %1885 = vmatpush1.msra.mxu0 0.0
    %1886 = vmatprep.subr.mxu0 0.0
    %1887 = vmatpush1.msra.mxu0 0.0
    %1888 = vmatprep.subr.mxu0 0.0
    %1889 = vmatpush1.msra.mxu0 0.0
    %1890 = vmatprep.subr.mxu0 0.0
    %1891 = vmatpush1.msra.mxu0 0.0
    %1892 = vmatprep.subr.mxu0 0.0
    %1893 = vmatpush1.msra.mxu0 0.0
    %1894 = vmatprep.subr.mxu0 0.0
    %1895 = vmatpush1.msra.mxu0 0.0
    %1896 = vmatprep.subr.mxu0 0.0
    %1897 = vmatpush1.msra.mxu0 0.0
    %1898 = vmatprep.subr.mxu0 0.0
    %1899 = vmatpush1.msra.mxu0 0.0
    %1900 = vmatprep.mubr.f32.mxu0 0.0
    %1901 = vmatmul.mubr.f32.gmra.mrb[0].mxu0 %v1834
    %v1902 = vpop.f32.mrb[0].mxu0
    %v1903 = vadd.f32 0.0, %v1902
    %v1904 = vpop.f32.mrb[0].mxu0
    %1905 = vdwg.mxu0
    %1906 = vrot.lane.b32.xlu0 %v1465, 64
    %v1907 = vpop.permute.xlu0 %1906
    %v1910 = vsel %vm630, %v1827, 0
    %1912 = vmatprep.subr.mxu0 0.0
    %1913 = vmatpush1.msra.mxu0 %v1907
    %1914 = vmatprep.subr.mxu0 0.0
    %1915 = vmatpush1.msra.mxu0 0.0
    %1916 = vmatprep.subr.mxu0 0.0
    %1917 = vmatpush1.msra.mxu0 0.0
    %1918 = vmatprep.subr.mxu0 0.0
    %1919 = vmatpush1.msra.mxu0 0.0
    %1920 = vmatprep.subr.mxu0 0.0
    %1921 = vmatpush1.msra.mxu0 0.0
    %1922 = vmatprep.subr.mxu0 0.0
    %1923 = vmatpush1.msra.mxu0 0.0
    %1924 = vmatprep.subr.mxu0 0.0
    %1925 = vmatpush1.msra.mxu0 0.0
    %1926 = vmatprep.subr.mxu0 0.0
    %1927 = vmatpush1.msra.mxu0 0.0
    %1928 = vmatprep.subr.mxu0 0.0
    %1929 = vmatpush1.msra.mxu0 0.0
    %1930 = vmatprep.subr.mxu0 0.0
    %1931 = vmatpush1.msra.mxu0 0.0
    %1932 = vmatprep.subr.mxu0 0.0
    %1933 = vmatpush1.msra.mxu0 0.0
    %1934 = vmatprep.subr.mxu0 0.0
    %1935 = vmatpush1.msra.mxu0 0.0
    %1936 = vmatprep.subr.mxu0 0.0
    %1937 = vmatpush1.msra.mxu0 0.0
    %1938 = vmatprep.subr.mxu0 0.0
    %1939 = vmatpush1.msra.mxu0 0.0
    %1940 = vmatprep.subr.mxu0 0.0
    %1941 = vmatpush1.msra.mxu0 0.0
    %1942 = vmatprep.subr.mxu0 0.0
    %1943 = vmatpush1.msra.mxu0 0.0
    %1944 = vmatprep.subr.mxu0 0.0
    %1945 = vmatpush1.msra.mxu0 0.0
    %1946 = vmatprep.subr.mxu0 0.0
    %1947 = vmatpush1.msra.mxu0 0.0
    %1948 = vmatprep.subr.mxu0 0.0
    %1949 = vmatpush1.msra.mxu0 0.0
    %1950 = vmatprep.subr.mxu0 0.0
    %1951 = vmatpush1.msra.mxu0 0.0
    %1952 = vmatprep.subr.mxu0 0.0
    %1953 = vmatpush1.msra.mxu0 0.0
    %1954 = vmatprep.subr.mxu0 0.0
    %1955 = vmatpush1.msra.mxu0 0.0
    %1956 = vmatprep.subr.mxu0 0.0
    %1957 = vmatpush1.msra.mxu0 0.0
    %1958 = vmatprep.subr.mxu0 0.0
    %1959 = vmatpush1.msra.mxu0 0.0
    %1960 = vmatprep.subr.mxu0 0.0
    %1961 = vmatpush1.msra.mxu0 0.0
    %1962 = vmatprep.subr.mxu0 0.0
    %1963 = vmatpush1.msra.mxu0 0.0
    %1964 = vmatprep.subr.mxu0 0.0
    %1965 = vmatpush1.msra.mxu0 0.0
    %1966 = vmatprep.subr.mxu0 0.0
    %1967 = vmatpush1.msra.mxu0 0.0
    %1968 = vmatprep.subr.mxu0 0.0
    %1969 = vmatpush1.msra.mxu0 0.0
    %1970 = vmatprep.subr.mxu0 0.0
    %1971 = vmatpush1.msra.mxu0 0.0
    %1972 = vmatprep.subr.mxu0 0.0
    %1973 = vmatpush1.msra.mxu0 0.0
    %1974 = vmatprep.subr.mxu0 0.0
    %1975 = vmatpush1.msra.mxu0 0.0
    %1976 = vmatprep.mubr.f32.mxu0 0.0
    %1977 = vmatmul.mubr.f32.gmra.mrb[0].mxu0 %v1910
    %v1978 = vpop.f32.mrb[0].mxu0
    %v1979 = vadd.f32 0.0, %v1978
    %v1980 = vpop.f32.mrb[0].mxu0
    %1981 = vdwg.mxu0
    %1982 = vrot.lane.b32.xlu0 %v1471, 64
    %v1983 = vpop.permute.xlu0 %1982
    %v1986 = vsel %vm630, %v1828, 0
    %1988 = vmatprep.subr.mxu0 0.0
    %1989 = vmatpush1.msra.mxu0 %v1983
    %1990 = vmatprep.subr.mxu0 0.0
    %1991 = vmatpush1.msra.mxu0 0.0
    %1992 = vmatprep.subr.mxu0 0.0
    %1993 = vmatpush1.msra.mxu0 0.0
    %1994 = vmatprep.subr.mxu0 0.0
    %1995 = vmatpush1.msra.mxu0 0.0
    %1996 = vmatprep.subr.mxu0 0.0
    %1997 = vmatpush1.msra.mxu0 0.0
    %1998 = vmatprep.subr.mxu0 0.0
    %1999 = vmatpush1.msra.mxu0 0.0
    %2000 = vmatprep.subr.mxu0 0.0
    %2001 = vmatpush1.msra.mxu0 0.0
    %2002 = vmatprep.subr.mxu0 0.0
    %2003 = vmatpush1.msra.mxu0 0.0
    %2004 = vmatprep.subr.mxu0 0.0
    %2005 = vmatpush1.msra.mxu0 0.0
    %2006 = vmatprep.subr.mxu0 0.0
    %2007 = vmatpush1.msra.mxu0 0.0
    %2008 = vmatprep.subr.mxu0 0.0
    %2009 = vmatpush1.msra.mxu0 0.0
    %2010 = vmatprep.subr.mxu0 0.0
    %2011 = vmatpush1.msra.mxu0 0.0
    %2012 = vmatprep.subr.mxu0 0.0
    %2013 = vmatpush1.msra.mxu0 0.0
    %2014 = vmatprep.subr.mxu0 0.0
    %2015 = vmatpush1.msra.mxu0 0.0
    %2016 = vmatprep.subr.mxu0 0.0
    %2017 = vmatpush1.msra.mxu0 0.0
    %2018 = vmatprep.subr.mxu0 0.0
    %2019 = vmatpush1.msra.mxu0 0.0
    %2020 = vmatprep.subr.mxu0 0.0
    %2021 = vmatpush1.msra.mxu0 0.0
    %2022 = vmatprep.subr.mxu0 0.0
    %2023 = vmatpush1.msra.mxu0 0.0
    %2024 = vmatprep.subr.mxu0 0.0
    %2025 = vmatpush1.msra.mxu0 0.0
    %2026 = vmatprep.subr.mxu0 0.0
    %2027 = vmatpush1.msra.mxu0 0.0
    %2028 = vmatprep.subr.mxu0 0.0
    %2029 = vmatpush1.msra.mxu0 0.0
    %2030 = vmatprep.subr.mxu0 0.0
    %2031 = vmatpush1.msra.mxu0 0.0
    %2032 = vmatprep.subr.mxu0 0.0
    %2033 = vmatpush1.msra.mxu0 0.0
    %2034 = vmatprep.subr.mxu0 0.0
    %2035 = vmatpush1.msra.mxu0 0.0
    %2036 = vmatprep.subr.mxu0 0.0
    %2037 = vmatpush1.msra.mxu0 0.0
    %2038 = vmatprep.subr.mxu0 0.0
    %2039 = vmatpush1.msra.mxu0 0.0
    %2040 = vmatprep.subr.mxu0 0.0
    %2041 = vmatpush1.msra.mxu0 0.0
    %2042 = vmatprep.subr.mxu0 0.0
    %2043 = vmatpush1.msra.mxu0 0.0
    %2044 = vmatprep.subr.mxu0 0.0
    %2045 = vmatpush1.msra.mxu0 0.0
    %2046 = vmatprep.subr.mxu0 0.0
    %2047 = vmatpush1.msra.mxu0 0.0
    %2048 = vmatprep.subr.mxu0 0.0
    %2049 = vmatpush1.msra.mxu0 0.0
    %2050 = vmatprep.subr.mxu0 0.0
    %2051 = vmatpush1.msra.mxu0 0.0
    %2052 = vmatprep.mubr.f32.mxu0 0.0
    %2053 = vmatmul.mubr.f32.gmra.mrb[0].mxu0 %v1986
    %v2054 = vpop.f32.mrb[0].mxu0
    %v2055 = vadd.f32 0.0, %v2054
    %v2056 = vpop.f32.mrb[0].mxu0
    %2057 = vdwg.mxu0
    %2058 = vrot.lane.b32.xlu0 %v1473, 64
    %v2059 = vpop.permute.xlu0 %2058
    %v2062 = vsel %vm630, %v1829, 0
    %2064 = vmatprep.subr.mxu0 0.0
    %2065 = vmatpush1.msra.mxu0 %v2059
    %2066 = vmatprep.subr.mxu0 0.0
    %2067 = vmatpush1.msra.mxu0 0.0
    %2068 = vmatprep.subr.mxu0 0.0
    %2069 = vmatpush1.msra.mxu0 0.0
    %2070 = vmatprep.subr.mxu0 0.0
    %2071 = vmatpush1.msra.mxu0 0.0
    %2072 = vmatprep.subr.mxu0 0.0
    %2073 = vmatpush1.msra.mxu0 0.0
    %2074 = vmatprep.subr.mxu0 0.0
    %2075 = vmatpush1.msra.mxu0 0.0
    %2076 = vmatprep.subr.mxu0 0.0
    %2077 = vmatpush1.msra.mxu0 0.0
    %2078 = vmatprep.subr.mxu0 0.0
    %2079 = vmatpush1.msra.mxu0 0.0
    %2080 = vmatprep.subr.mxu0 0.0
    %2081 = vmatpush1.msra.mxu0 0.0
    %2082 = vmatprep.subr.mxu0 0.0
    %2083 = vmatpush1.msra.mxu0 0.0
    %2084 = vmatprep.subr.mxu0 0.0
    %2085 = vmatpush1.msra.mxu0 0.0
    %2086 = vmatprep.subr.mxu0 0.0
    %2087 = vmatpush1.msra.mxu0 0.0
    %2088 = vmatprep.subr.mxu0 0.0
    %2089 = vmatpush1.msra.mxu0 0.0
    %2090 = vmatprep.subr.mxu0 0.0
    %2091 = vmatpush1.msra.mxu0 0.0
    %2092 = vmatprep.subr.mxu0 0.0
    %2093 = vmatpush1.msra.mxu0 0.0
    %2094 = vmatprep.subr.mxu0 0.0
    %2095 = vmatpush1.msra.mxu0 0.0
    %2096 = vmatprep.subr.mxu0 0.0
    %2097 = vmatpush1.msra.mxu0 0.0
    %2098 = vmatprep.subr.mxu0 0.0
    %2099 = vmatpush1.msra.mxu0 0.0
    %2100 = vmatprep.subr.mxu0 0.0
    %2101 = vmatpush1.msra.mxu0 0.0
    %2102 = vmatprep.subr.mxu0 0.0
    %2103 = vmatpush1.msra.mxu0 0.0
    %2104 = vmatprep.subr.mxu0 0.0
    %2105 = vmatpush1.msra.mxu0 0.0
    %2106 = vmatprep.subr.mxu0 0.0
    %2107 = vmatpush1.msra.mxu0 0.0
    %2108 = vmatprep.subr.mxu0 0.0
    %2109 = vmatpush1.msra.mxu0 0.0
    %2110 = vmatprep.subr.mxu0 0.0
    %2111 = vmatpush1.msra.mxu0 0.0
    %2112 = vmatprep.subr.mxu0 0.0
    %2113 = vmatpush1.msra.mxu0 0.0
    %2114 = vmatprep.subr.mxu0 0.0
    %2115 = vmatpush1.msra.mxu0 0.0
    %2116 = vmatprep.subr.mxu0 0.0
    %2117 = vmatpush1.msra.mxu0 0.0
    %2118 = vmatprep.subr.mxu0 0.0
    %2119 = vmatpush1.msra.mxu0 0.0
    %2120 = vmatprep.subr.mxu0 0.0
    %2121 = vmatpush1.msra.mxu0 0.0
    %2122 = vmatprep.subr.mxu0 0.0
    %2123 = vmatpush1.msra.mxu0 0.0
    %2124 = vmatprep.subr.mxu0 0.0
    %2125 = vmatpush1.msra.mxu0 0.0
    %2126 = vmatprep.subr.mxu0 0.0
    %2127 = vmatpush1.msra.mxu0 0.0
    %2128 = vmatprep.mubr.f32.mxu0 0.0
    %2129 = vmatmul.mubr.f32.gmra.mrb[0].mxu0 %v2062
    %v2130 = vpop.f32.mrb[0].mxu0
    %v2131 = vadd.f32 0.0, %v2130
    %v2132 = vpop.f32.mrb[0].mxu0
    %2133 = vdwg.mxu0
    %2136 = vrot.lane.b32.xlu0 %v2055, 16
    %v2137 = vpop.permute.xlu0 %2136
    %2138 = vrot.lane.b32.xlu0 %v2131, 16
    %v2139 = vpop.permute.xlu0 %2138
    %v2142 = vsel %vm309, %v1903, %v2137
    %v2143 = vsel %vm309, %v1979, %v2139
    %v2144 = vlaneseq
    %v2145 = vshrl.u32 %v2144, 7
    %v2146 = vsub.s32 0, %v2145
    %v2147 = vrot.slane %v1367, %v2146
    %2152 = vrot.lane.b32.xlu0 %v1375, 32
    %v2153 = vpop.permute.xlu0 %2152
    %2154 = vrot.lane.b32.xlu0 %v1377, 32
    %v2155 = vpop.permute.xlu0 %2154
    %2156 = vrot.lane.b32.xlu0 %v1379, 32
    %v2157 = vpop.permute.xlu0 %2156
    %2158 = vrot.lane.b32.xlu0 %v1381, 32
    %v2159 = vpop.permute.xlu0 %2158
    %v2165 = vsel %vm134, %v2142, 0
    %v2168 = vsel %vm134, %v2143, 0
    %2170 = vmatprep.subr.mxu0 0.0
    %2171 = vmatpush1.msra.mxu0 %v2153
    %2172 = vmatprep.subr.mxu0 0.0
    %2173 = vmatpush1.msra.mxu0 %v2155
    %2174 = vmatprep.subr.mxu0 0.0
    %2175 = vmatpush1.msra.mxu0 %v2157
    %2176 = vmatprep.subr.mxu0 0.0
    %2177 = vmatpush1.msra.mxu0 %v2159
    %2178 = vmatprep.subr.mxu0 0.0
    %2179 = vmatpush1.msra.mxu0 0.0
    %2180 = vmatprep.subr.mxu0 0.0
    %2181 = vmatpush1.msra.mxu0 0.0
    %2182 = vmatprep.subr.mxu0 0.0
    %2183 = vmatpush1.msra.mxu0 0.0
    %2184 = vmatprep.subr.mxu0 0.0
    %2185 = vmatpush1.msra.mxu0 0.0
    %2186 = vmatprep.subr.mxu0 0.0
    %2187 = vmatpush1.msra.mxu0 0.0
    %2188 = vmatprep.subr.mxu0 0.0
    %2189 = vmatpush1.msra.mxu0 0.0
    %2190 = vmatprep.subr.mxu0 0.0
    %2191 = vmatpush1.msra.mxu0 0.0
    %2192 = vmatprep.subr.mxu0 0.0
    %2193 = vmatpush1.msra.mxu0 0.0
    %2194 = vmatprep.subr.mxu0 0.0
    %2195 = vmatpush1.msra.mxu0 0.0
    %2196 = vmatprep.subr.mxu0 0.0
    %2197 = vmatpush1.msra.mxu0 0.0
    %2198 = vmatprep.subr.mxu0 0.0
    %2199 = vmatpush1.msra.mxu0 0.0
    %2200 = vmatprep.subr.mxu0 0.0
    %2201 = vmatpush1.msra.mxu0 0.0
    %2202 = vmatprep.subr.mxu0 0.0
    %2203 = vmatpush1.msra.mxu0 0.0
    %2204 = vmatprep.subr.mxu0 0.0
    %2205 = vmatpush1.msra.mxu0 0.0
    %2206 = vmatprep.subr.mxu0 0.0
    %2207 = vmatpush1.msra.mxu0 0.0
    %2208 = vmatprep.subr.mxu0 0.0
    %2209 = vmatpush1.msra.mxu0 0.0
    %2210 = vmatprep.subr.mxu0 0.0
    %2211 = vmatpush1.msra.mxu0 0.0
    %2212 = vmatprep.subr.mxu0 0.0
    %2213 = vmatpush1.msra.mxu0 0.0
    %2214 = vmatprep.subr.mxu0 0.0
    %2215 = vmatpush1.msra.mxu0 0.0
    %2216 = vmatprep.subr.mxu0 0.0
    %2217 = vmatpush1.msra.mxu0 0.0
    %2218 = vmatprep.subr.mxu0 0.0
    %2219 = vmatpush1.msra.mxu0 0.0
    %2220 = vmatprep.subr.mxu0 0.0
    %2221 = vmatpush1.msra.mxu0 0.0
    %2222 = vmatprep.subr.mxu0 0.0
    %2223 = vmatpush1.msra.mxu0 0.0
    %2224 = vmatprep.subr.mxu0 0.0
    %2225 = vmatpush1.msra.mxu0 0.0
    %2226 = vmatprep.subr.mxu0 0.0
    %2227 = vmatpush1.msra.mxu0 0.0
    %2228 = vmatprep.subr.mxu0 0.0
    %2229 = vmatpush1.msra.mxu0 0.0
    %2230 = vmatprep.subr.mxu0 0.0
    %2231 = vmatpush1.msra.mxu0 0.0
    %2232 = vmatprep.subr.mxu0 0.0
    %2233 = vmatpush1.msra.mxu0 0.0
    %2234 = vmatprep.mubr.f32.mxu0 0.0
    %2235 = vmatmul.mubr.f32.gmra.mrb[0].mxu0 %v2165
    %v2236 = vpop.f32.mrb[0].mxu0
    %v2237 = vadd.f32 %v2147, %v2236
    %v2238 = vpop.f32.mrb[0].mxu0
    %2239 = vmatprep.mubr.f32.mxu0 0.0
    %2240 = vmatmul.mubr.f32.gmra.mrb[0].mxu0 %v2168
    %v2241 = vpop.f32.mrb[0].mxu0
    %v2242 = vadd.f32 %v2147, %v2241
    %v2243 = vpop.f32.mrb[0].mxu0
    %2244 = vdwg.mxu0
    %v2245 = vadd.f32 %v1364, %v2237
    %v2246 = vadd.f32 %v1365, %v2242
    %v2247 = vsel %vm134, %v2245, 0.0
    %2248 = vadd.xlane.f32.xlu0 %v2247
    %v2249 = vpop.xlane.xlu0 %2248
    %v2250 = vsel %vm134, %v2246, 0.0
    %2251 = vadd.xlane.f32.xlu0 %v2250
    %v2252 = vpop.xlane.xlu0 %2251
    %v2253 = vmul.f32 %v2249, %v141
    %v2254 = vmul.f32 %v2252, %v141
    %v2255 = vsub.f32 %v2245, %v2253
    %v2256 = vsub.f32 %v2246, %v2254
    %v2257 = vmul.f32 %v2255, %v2255
    %v2258 = vmul.f32 %v2256, %v2256
    %v2259 = vsel %vm134, %v2257, 0.0
    %2260 = vadd.xlane.f32.xlu0 %v2259
    %v2261 = vpop.xlane.xlu0 %2260
    %v2262 = vsel %vm134, %v2258, 0.0
    %2263 = vadd.xlane.f32.xlu0 %v2262
    %v2264 = vpop.xlane.xlu0 %2263
    %v2265 = vmul.f32 %v2261, %v141
    %v2266 = vmul.f32 %v2264, %v141
    %v2267 = vadd.f32 %v2265, 1e-12
    %v2268 = vadd.f32 %v2266, 1e-12
    %v2269 = vrsqrt.pop %v2267
    %v2270 = vrsqrt.pop %v2268
    %v2271 = vmul.f32 %v2255, %v2269
    %v2272 = vmul.f32 %v2256, %v2270
    %v2273 = vlaneseq
    %v2274 = vshrl.u32 %v2273, 7
    %v2275 = vsub.s32 0, %v2274
    %v2276 = vrot.slane %v1368, %v2275
    %v2277 = vmul.f32 %v2271, %v2276
    %v2278 = vmul.f32 %v2272, %v2276
    %v2279 = vlaneseq
    %v2280 = vshrl.u32 %v2279, 7
    %v2281 = vsub.s32 0, %v2280
    %v2282 = vrot.slane %v1369, %v2281
    %v2283 = vadd.f32 %v2277, %v2282
    %v2284 = vadd.f32 %v2278, %v2282
    %v2285 = vlaneseq
    %v2286 = vshrl.u32 %v2285, 7
    %v2287 = vsub.s32 0, %v2286
    %v2288 = vrot.slane %v1370, %v2287
    %v2290 = vsel %vm134, %v2283, 0
    %v2293 = vsel %vm134, %v2284, 0
    %2295 = vmatprep.subr.mxu0 0.0
    %2296 = vmatpush1.msra.mxu0 %v1376
    %2297 = vmatprep.subr.mxu0 0.0
    %2298 = vmatpush1.msra.mxu0 %v1378
    %2299 = vmatprep.subr.mxu0 0.0
    %2300 = vmatpush1.msra.mxu0 %v1380
    %2301 = vmatprep.subr.mxu0 0.0
    %2302 = vmatpush1.msra.mxu0 %v1382
    %2303 = vmatprep.subr.mxu0 0.0
    %2304 = vmatpush1.msra.mxu0 0.0
    %2305 = vmatprep.subr.mxu0 0.0
    %2306 = vmatpush1.msra.mxu0 0.0
    %2307 = vmatprep.subr.mxu0 0.0
    %2308 = vmatpush1.msra.mxu0 0.0
    %2309 = vmatprep.subr.mxu0 0.0
    %2310 = vmatpush1.msra.mxu0 0.0
    %2311 = vmatprep.subr.mxu0 0.0
    %2312 = vmatpush1.msra.mxu0 0.0
    %2313 = vmatprep.subr.mxu0 0.0
    %2314 = vmatpush1.msra.mxu0 0.0
    %2315 = vmatprep.subr.mxu0 0.0
    %2316 = vmatpush1.msra.mxu0 0.0
    %2317 = vmatprep.subr.mxu0 0.0
    %2318 = vmatpush1.msra.mxu0 0.0
    %2319 = vmatprep.subr.mxu0 0.0
    %2320 = vmatpush1.msra.mxu0 0.0
    %2321 = vmatprep.subr.mxu0 0.0
    %2322 = vmatpush1.msra.mxu0 0.0
    %2323 = vmatprep.subr.mxu0 0.0
    %2324 = vmatpush1.msra.mxu0 0.0
    %2325 = vmatprep.subr.mxu0 0.0
    %2326 = vmatpush1.msra.mxu0 0.0
    %2327 = vmatprep.subr.mxu0 0.0
    %2328 = vmatpush1.msra.mxu0 0.0
    %2329 = vmatprep.subr.mxu0 0.0
    %2330 = vmatpush1.msra.mxu0 0.0
    %2331 = vmatprep.subr.mxu0 0.0
    %2332 = vmatpush1.msra.mxu0 0.0
    %2333 = vmatprep.subr.mxu0 0.0
    %2334 = vmatpush1.msra.mxu0 0.0
    %2335 = vmatprep.subr.mxu0 0.0
    %2336 = vmatpush1.msra.mxu0 0.0
    %2337 = vmatprep.subr.mxu0 0.0
    %2338 = vmatpush1.msra.mxu0 0.0
    %2339 = vmatprep.subr.mxu0 0.0
    %2340 = vmatpush1.msra.mxu0 0.0
    %2341 = vmatprep.subr.mxu0 0.0
    %2342 = vmatpush1.msra.mxu0 0.0
    %2343 = vmatprep.subr.mxu0 0.0
    %2344 = vmatpush1.msra.mxu0 0.0
    %2345 = vmatprep.subr.mxu0 0.0
    %2346 = vmatpush1.msra.mxu0 0.0
    %2347 = vmatprep.subr.mxu0 0.0
    %2348 = vmatpush1.msra.mxu0 0.0
    %2349 = vmatprep.subr.mxu0 0.0
    %2350 = vmatpush1.msra.mxu0 0.0
    %2351 = vmatprep.subr.mxu0 0.0
    %2352 = vmatpush1.msra.mxu0 0.0
    %2353 = vmatprep.subr.mxu0 0.0
    %2354 = vmatpush1.msra.mxu0 0.0
    %2355 = vmatprep.subr.mxu0 0.0
    %2356 = vmatpush1.msra.mxu0 0.0
    %2357 = vmatprep.subr.mxu0 0.0
    %2358 = vmatpush1.msra.mxu0 0.0
    %2359 = vmatprep.mubr.f32.mxu0 0.0
    %2360 = vmatmul.mubr.f32.gmra.mrb[0].mxu0 %v2290
    %v2361 = vpop.f32.mrb[0].mxu0
    %v2362 = vadd.f32 %v2288, %v2361
    %v2363 = vpop.f32.mrb[0].mxu0
    %2364 = vmatprep.mubr.f32.mxu0 0.0
    %2365 = vmatmul.mubr.f32.gmra.mrb[0].mxu0 %v2293
    %v2366 = vpop.f32.mrb[0].mxu0
    %v2367 = vadd.f32 %v2288, %v2366
    %v2368 = vpop.f32.mrb[0].mxu0
    %2369 = vdwg.mxu0
    %v2370 = vmul.f32 %v2362, 0.5
    %v2371 = vmul.f32 %v2367, 0.5
    %v2372 = vmul.f32 %v2362, 0.044715
    %v2373 = vmul.f32 %v2367, 0.044715
    %v2374 = vmul.f32 %v2372, %v2362
    %v2375 = vmul.f32 %v2373, %v2367
    %v2376 = vmul.f32 %v2374, %v2362
    %v2377 = vmul.f32 %v2375, %v2367
    %v2378 = vadd.f32 %v2362, %v2376
    %v2379 = vadd.f32 %v2367, %v2377
    %v2380 = vmul.f32 %v2378, 0.7978846
    %v2381 = vmul.f32 %v2379, 0.7978846
    %v2382 = vtanh.pop %v2380
    %v2383 = vtanh.pop %v2381
    %v2384 = vadd.f32 %v2382, 1.0
    %v2385 = vadd.f32 %v2383, 1.0
    %v2386 = vmul.f32 %v2370, %v2384
    %v2387 = vmul.f32 %v2371, %v2385
    %s2388 = scalar_lea.vmem %s4, 64
    %v2389 = vld [vmem:[%s2388] sm:$0xff]
    %v2390 = vld [vmem:[%s2388 + $0x8] sm:$0xff]
    %v2391 = vld [vmem:[%s2388 + $0x10] sm:$0xff]
    %v2392 = vld [vmem:[%s2388 + $0x18] sm:$0xff]
    %v2393 = vld [vmem:[%s2388 + $0x20] sm:$0xff]
    %v2394 = vld [vmem:[%s2388 + $0x28] sm:$0xff]
    %v2395 = vld [vmem:[%s2388 + $0x30] sm:$0xff]
    %v2396 = vld [vmem:[%s2388 + $0x38] sm:$0xff]
    %v2397 = vlaneseq
    %v2398 = vshrl.u32 %v2397, 7
    %v2399 = vsub.s32 0, %v2398
    %v2400 = vrot.slane %v1371, %v2399
    %v2402 = vsel %vm50, %v2386, 0
    %v2405 = vsel %vm50, %v2387, 0
    %2407 = vmatprep.subr.mxu0 0.0
    %2408 = vmatpush1.msra.mxu0 %v2389
    %2409 = vmatprep.subr.mxu0 0.0
    %2410 = vmatpush1.msra.mxu0 %v2390
    %2411 = vmatprep.subr.mxu0 0.0
    %2412 = vmatpush1.msra.mxu0 %v2391
    %2413 = vmatprep.subr.mxu0 0.0
    %2414 = vmatpush1.msra.mxu0 %v2392
    %2415 = vmatprep.subr.mxu0 0.0
    %2416 = vmatpush1.msra.mxu0 %v2393
    %2417 = vmatprep.subr.mxu0 0.0
    %2418 = vmatpush1.msra.mxu0 %v2394
    %2419 = vmatprep.subr.mxu0 0.0
    %2420 = vmatpush1.msra.mxu0 %v2395
    %2421 = vmatprep.subr.mxu0 0.0
    %2422 = vmatpush1.msra.mxu0 %v2396
    %2423 = vmatprep.subr.mxu0 0.0
    %2424 = vmatpush1.msra.mxu0 0.0
    %2425 = vmatprep.subr.mxu0 0.0
    %2426 = vmatpush1.msra.mxu0 0.0
    %2427 = vmatprep.subr.mxu0 0.0
    %2428 = vmatpush1.msra.mxu0 0.0
    %2429 = vmatprep.subr.mxu0 0.0
    %2430 = vmatpush1.msra.mxu0 0.0
    %2431 = vmatprep.subr.mxu0 0.0
    %2432 = vmatpush1.msra.mxu0 0.0
    %2433 = vmatprep.subr.mxu0 0.0
    %2434 = vmatpush1.msra.mxu0 0.0
    %2435 = vmatprep.subr.mxu0 0.0
    %2436 = vmatpush1.msra.mxu0 0.0
    %2437 = vmatprep.subr.mxu0 0.0
    %2438 = vmatpush1.msra.mxu0 0.0
    %2439 = vmatprep.subr.mxu0 0.0
    %2440 = vmatpush1.msra.mxu0 0.0
    %2441 = vmatprep.subr.mxu0 0.0
    %2442 = vmatpush1.msra.mxu0 0.0
    %2443 = vmatprep.subr.mxu0 0.0
    %2444 = vmatpush1.msra.mxu0 0.0
    %2445 = vmatprep.subr.mxu0 0.0
    %2446 = vmatpush1.msra.mxu0 0.0
    %2447 = vmatprep.subr.mxu0 0.0
    %2448 = vmatpush1.msra.mxu0 0.0
    %2449 = vmatprep.subr.mxu0 0.0
    %2450 = vmatpush1.msra.mxu0 0.0
    %2451 = vmatprep.subr.mxu0 0.0
    %2452 = vmatpush1.msra.mxu0 0.0
    %2453 = vmatprep.subr.mxu0 0.0
    %2454 = vmatpush1.msra.mxu0 0.0
    %2455 = vmatprep.subr.mxu0 0.0
    %2456 = vmatpush1.msra.mxu0 0.0
    %2457 = vmatprep.subr.mxu0 0.0
    %2458 = vmatpush1.msra.mxu0 0.0
    %2459 = vmatprep.subr.mxu0 0.0
    %2460 = vmatpush1.msra.mxu0 0.0
    %2461 = vmatprep.subr.mxu0 0.0
    %2462 = vmatpush1.msra.mxu0 0.0
    %2463 = vmatprep.subr.mxu0 0.0
    %2464 = vmatpush1.msra.mxu0 0.0
    %2465 = vmatprep.subr.mxu0 0.0
    %2466 = vmatpush1.msra.mxu0 0.0
    %2467 = vmatprep.subr.mxu0 0.0
    %2468 = vmatpush1.msra.mxu0 0.0
    %2469 = vmatprep.subr.mxu0 0.0
    %2470 = vmatpush1.msra.mxu0 0.0
    %2471 = vmatprep.mubr.f32.mxu0 0.0
    %2472 = vmatmul.mubr.f32.gmra.mrb[0].mxu0 %v2402
    %v2473 = vpop.f32.mrb[0].mxu0
    %v2474 = vadd.f32 %v2400, %v2473
    %v2475 = vpop.f32.mrb[0].mxu0
    %2476 = vmatprep.mubr.f32.mxu0 0.0
    %2477 = vmatmul.mubr.f32.gmra.mrb[0].mxu0 %v2405
    %v2478 = vpop.f32.mrb[0].mxu0
    %v2479 = vadd.f32 %v2400, %v2478
    %v2480 = vpop.f32.mrb[0].mxu0
    %2481 = vdwg.mxu0
    %v2482 = vadd.f32 %v2283, %v2474
    %v2483 = vadd.f32 %v2284, %v2479
    %v2484 = vsel %vm134, %v2482, 0.0
    %2485 = vadd.xlane.f32.xlu0 %v2484
    %v2486 = vpop.xlane.xlu0 %2485
    %v2487 = vsel %vm134, %v2483, 0.0
    %2488 = vadd.xlane.f32.xlu0 %v2487
    %v2489 = vpop.xlane.xlu0 %2488
    %v2490 = vmul.f32 %v2486, %v141
    %v2491 = vmul.f32 %v2489, %v141
    %v2492 = vsub.f32 %v2482, %v2490
    %v2493 = vsub.f32 %v2483, %v2491
    %v2494 = vmul.f32 %v2492, %v2492
    %v2495 = vmul.f32 %v2493, %v2493
    %v2496 = vsel %vm134, %v2494, 0.0
    %2497 = vadd.xlane.f32.xlu0 %v2496
    %v2498 = vpop.xlane.xlu0 %2497
    %v2499 = vsel %vm134, %v2495, 0.0
    %2500 = vadd.xlane.f32.xlu0 %v2499
    %v2501 = vpop.xlane.xlu0 %2500
    %v2502 = vmul.f32 %v2498, %v141
    %v2503 = vmul.f32 %v2501, %v141
    %v2504 = vadd.f32 %v2502, 1e-12
    %v2505 = vadd.f32 %v2503, 1e-12
    %v2506 = vrsqrt.pop %v2504
    %v2507 = vrsqrt.pop %v2505
    %v2508 = vmul.f32 %v2492, %v2506
    %v2509 = vmul.f32 %v2493, %v2507
    %v2510 = vlaneseq
    %v2511 = vshrl.u32 %v2510, 7
    %v2512 = vsub.s32 0, %v2511
    %v2513 = vrot.slane %v1372, %v2512
    %v2514 = vmul.f32 %v2508, %v2513
    %v2515 = vmul.f32 %v2509, %v2513
    %v2516 = vlaneseq
    %v2517 = vshrl.u32 %v2516, 7
    %v2518 = vsub.s32 0, %v2517
    %v2519 = vrot.slane %v1373, %v2518
    %v2520 = vadd.f32 %v2514, %v2519
    %v2521 = vadd.f32 %v2515, %v2519
    %v2522 = vlaneseq
    %v2523 = vshrl.u32 %v2522, 7
    %v2524 = vmul.u32 %v2523, 8
    %vm2525 = vcmp.eq.s32.totalorder %v27, %v2524
    %v2526 = vsel %vm2525, 1, 0
    %v2527 = vcvt.s32.f32 %v2526
    %v2529 = vsel %vm309, %v2527, 0
    %2531 = vmatprep.subr.mxu0 0.0
    %2532 = vmatpush1.msra.mxu0 %v2520
    %2533 = vmatprep.subr.mxu0 0.0
    %2534 = vmatpush1.msra.mxu0 %v2521
    %2535 = vmatprep.subr.mxu0 0.0
    %2536 = vmatpush1.msra.mxu0 0.0
    %2537 = vmatprep.subr.mxu0 0.0
    %2538 = vmatpush1.msra.mxu0 0.0
    %2539 = vmatprep.subr.mxu0 0.0
    %2540 = vmatpush1.msra.mxu0 0.0
    %2541 = vmatprep.subr.mxu0 0.0
    %2542 = vmatpush1.msra.mxu0 0.0
    %2543 = vmatprep.subr.mxu0 0.0
    %2544 = vmatpush1.msra.mxu0 0.0
    %2545 = vmatprep.subr.mxu0 0.0
    %2546 = vmatpush1.msra.mxu0 0.0
    %2547 = vmatprep.subr.mxu0 0.0
    %2548 = vmatpush1.msra.mxu0 0.0
    %2549 = vmatprep.subr.mxu0 0.0
    %2550 = vmatpush1.msra.mxu0 0.0
    %2551 = vmatprep.subr.mxu0 0.0
    %2552 = vmatpush1.msra.mxu0 0.0
    %2553 = vmatprep.subr.mxu0 0.0
    %2554 = vmatpush1.msra.mxu0 0.0
    %2555 = vmatprep.subr.mxu0 0.0
    %2556 = vmatpush1.msra.mxu0 0.0
    %2557 = vmatprep.subr.mxu0 0.0
    %2558 = vmatpush1.msra.mxu0 0.0
    %2559 = vmatprep.subr.mxu0 0.0
    %2560 = vmatpush1.msra.mxu0 0.0
    %2561 = vmatprep.subr.mxu0 0.0
    %2562 = vmatpush1.msra.mxu0 0.0
    %2563 = vmatprep.subr.mxu0 0.0
    %2564 = vmatpush1.msra.mxu0 0.0
    %2565 = vmatprep.subr.mxu0 0.0
    %2566 = vmatpush1.msra.mxu0 0.0
    %2567 = vmatprep.subr.mxu0 0.0
    %2568 = vmatpush1.msra.mxu0 0.0
    %2569 = vmatprep.subr.mxu0 0.0
    %2570 = vmatpush1.msra.mxu0 0.0
    %2571 = vmatprep.subr.mxu0 0.0
    %2572 = vmatpush1.msra.mxu0 0.0
    %2573 = vmatprep.subr.mxu0 0.0
    %2574 = vmatpush1.msra.mxu0 0.0
    %2575 = vmatprep.subr.mxu0 0.0
    %2576 = vmatpush1.msra.mxu0 0.0
    %2577 = vmatprep.subr.mxu0 0.0
    %2578 = vmatpush1.msra.mxu0 0.0
    %2579 = vmatprep.subr.mxu0 0.0
    %2580 = vmatpush1.msra.mxu0 0.0
    %2581 = vmatprep.subr.mxu0 0.0
    %2582 = vmatpush1.msra.mxu0 0.0
    %2583 = vmatprep.subr.mxu0 0.0
    %2584 = vmatpush1.msra.mxu0 0.0
    %2585 = vmatprep.subr.mxu0 0.0
    %2586 = vmatpush1.msra.mxu0 0.0
    %2587 = vmatprep.subr.mxu0 0.0
    %2588 = vmatpush1.msra.mxu0 0.0
    %2589 = vmatprep.subr.mxu0 0.0
    %2590 = vmatpush1.msra.mxu0 0.0
    %2591 = vmatprep.subr.mxu0 0.0
    %2592 = vmatpush1.msra.mxu0 0.0
    %2593 = vmatprep.subr.mxu0 0.0
    %2594 = vmatpush1.msra.mxu0 0.0
    %2595 = vmatprep.mubr.f32.mxu0 0.0
    %2596 = vmatmul.mubr.f32.gmra.mrb[0].mxu0 %v2529
    %v2597 = vpop.f32.mrb[0].mxu0
    %v2598 = vadd.f32 0.0, %v2597
    %v2599 = vpop.f32.mrb[0].mxu0
    %2600 = vdwg.mxu0
    %v2601 = vld [vmem:[%s5] sm:$0xff]
    %v2602 = vld [vmem:[%s5 + $0x8] sm:$0xff]
    %v2603 = vld [vmem:[%s5 + $0x10] sm:$0xff]
    %v2604 = vld [vmem:[%s5 + $0x18] sm:$0xff]
    %v2605 = vld [vmem:[%s5 + $0x20] sm:$0xff]
    %v2606 = vld [vmem:[%s5 + $0x28] sm:$0xff]
    %v2607 = vld [vmem:[%s5 + $0x30] sm:$0xff]
    %v2608 = vld [vmem:[%s5 + $0x38] sm:$0xff]
    %v2609 = vld [vmem:[%s2 + $0x52] sm:$0x1]
    %v2610 = vlaneseq
    %v2611 = vshrl.u32 %v2610, 7
    %v2612 = vsub.s32 0, %v2611
    %v2613 = vrot.slane %v2609, %v2612
    %v2615 = vsel %vm134, %v2598, 0
    %2617 = vmatprep.subr.mxu0 0.0
    %2618 = vmatpush1.msra.mxu0 %v2601
    %2619 = vmatprep.subr.mxu0 0.0
    %2620 = vmatpush1.msra.mxu0 %v2603
    %2621 = vmatprep.subr.mxu0 0.0
    %2622 = vmatpush1.msra.mxu0 %v2605
    %2623 = vmatprep.subr.mxu0 0.0
    %2624 = vmatpush1.msra.mxu0 %v2607
    %2625 = vmatprep.subr.mxu0 0.0
    %2626 = vmatpush1.msra.mxu0 0.0
    %2627 = vmatprep.subr.mxu0 0.0
    %2628 = vmatpush1.msra.mxu0 0.0
    %2629 = vmatprep.subr.mxu0 0.0
    %2630 = vmatpush1.msra.mxu0 0.0
    %2631 = vmatprep.subr.mxu0 0.0
    %2632 = vmatpush1.msra.mxu0 0.0
    %2633 = vmatprep.subr.mxu0 0.0
    %2634 = vmatpush1.msra.mxu0 0.0
    %2635 = vmatprep.subr.mxu0 0.0
    %2636 = vmatpush1.msra.mxu0 0.0
    %2637 = vmatprep.subr.mxu0 0.0
    %2638 = vmatpush1.msra.mxu0 0.0
    %2639 = vmatprep.subr.mxu0 0.0
    %2640 = vmatpush1.msra.mxu0 0.0
    %2641 = vmatprep.subr.mxu0 0.0
    %2642 = vmatpush1.msra.mxu0 0.0
    %2643 = vmatprep.subr.mxu0 0.0
    %2644 = vmatpush1.msra.mxu0 0.0
    %2645 = vmatprep.subr.mxu0 0.0
    %2646 = vmatpush1.msra.mxu0 0.0
    %2647 = vmatprep.subr.mxu0 0.0
    %2648 = vmatpush1.msra.mxu0 0.0
    %2649 = vmatprep.subr.mxu0 0.0
    %2650 = vmatpush1.msra.mxu0 0.0
    %2651 = vmatprep.subr.mxu0 0.0
    %2652 = vmatpush1.msra.mxu0 0.0
    %2653 = vmatprep.subr.mxu0 0.0
    %2654 = vmatpush1.msra.mxu0 0.0
    %2655 = vmatprep.subr.mxu0 0.0
    %2656 = vmatpush1.msra.mxu0 0.0
    %2657 = vmatprep.subr.mxu0 0.0
    %2658 = vmatpush1.msra.mxu0 0.0
    %2659 = vmatprep.subr.mxu0 0.0
    %2660 = vmatpush1.msra.mxu0 0.0
    %2661 = vmatprep.subr.mxu0 0.0
    %2662 = vmatpush1.msra.mxu0 0.0
    %2663 = vmatprep.subr.mxu0 0.0
    %2664 = vmatpush1.msra.mxu0 0.0
    %2665 = vmatprep.subr.mxu0 0.0
    %2666 = vmatpush1.msra.mxu0 0.0
    %2667 = vmatprep.subr.mxu0 0.0
    %2668 = vmatpush1.msra.mxu0 0.0
    %2669 = vmatprep.subr.mxu0 0.0
    %2670 = vmatpush1.msra.mxu0 0.0
    %2671 = vmatprep.subr.mxu0 0.0
    %2672 = vmatpush1.msra.mxu0 0.0
    %2673 = vmatprep.subr.mxu0 0.0
    %2674 = vmatpush1.msra.mxu0 0.0
    %2675 = vmatprep.subr.mxu0 0.0
    %2676 = vmatpush1.msra.mxu0 0.0
    %2677 = vmatprep.subr.mxu0 0.0
    %2678 = vmatpush1.msra.mxu0 0.0
    %2679 = vmatprep.subr.mxu0 0.0
    %2680 = vmatpush1.msra.mxu0 0.0
    %2681 = vmatprep.mubr.f32.mxu0 0.0
    %2682 = vmatmul.mubr.f32.gmra.mrb[0].mxu0 %v2615
    %v2683 = vpop.f32.mrb[0].mxu0
    %v2684 = vadd.f32 %v2613, %v2683
    %v2685 = vpop.f32.mrb[0].mxu0
    %2686 = vdwg.mxu0
    %v2687 = vtanh.pop %v2684
    %v2688 = vld [vmem:[%s2 + $0x53] sm:$0x1]
    %v2689 = vlaneseq
    %v2690 = vshrl.u32 %v2689, 7
    %v2691 = vsub.s32 0, %v2690
    %v2692 = vrot.slane %v2688, %v2691
    %2701 = vrot.lane.b32.xlu0 %v2601, 96
    %v2702 = vpop.permute.xlu0 %2701
    %2703 = vrot.lane.b32.xlu0 %v2602, 96
    %v2704 = vpop.permute.xlu0 %2703
    %2705 = vrot.lane.b32.xlu0 %v2603, 96
    %v2706 = vpop.permute.xlu0 %2705
    %2707 = vrot.lane.b32.xlu0 %v2604, 96
    %v2708 = vpop.permute.xlu0 %2707
    %2709 = vrot.lane.b32.xlu0 %v2605, 96
    %v2710 = vpop.permute.xlu0 %2709
    %2711 = vrot.lane.b32.xlu0 %v2606, 96
    %v2712 = vpop.permute.xlu0 %2711
    %2713 = vrot.lane.b32.xlu0 %v2607, 96
    %v2714 = vpop.permute.xlu0 %2713
    %2715 = vrot.lane.b32.xlu0 %v2608, 96
    %v2716 = vpop.permute.xlu0 %2715
    %vm2717 = vcmask 785408
    %v2718 = vsel %vm2717, %v2702, %v2704
    %v2719 = vsel %vm2717, %v2706, %v2708
    %v2720 = vsel %vm2717, %v2710, %v2712
    %v2721 = vsel %vm2717, %v2714, %v2716
    %v2727 = vsel %vm134, %v2687, 0
    %2729 = vmatprep.subr.mxu0 0.0
    %2730 = vmatpush1.msra.mxu0 %v2718
    %2731 = vmatprep.subr.mxu0 0.0
    %2732 = vmatpush1.msra.mxu0 %v2719
    %2733 = vmatprep.subr.mxu0 0.0
    %2734 = vmatpush1.msra.mxu0 %v2720
    %2735 = vmatprep.subr.mxu0 0.0
    %2736 = vmatpush1.msra.mxu0 %v2721
    %2737 = vmatprep.subr.mxu0 0.0
    %2738 = vmatpush1.msra.mxu0 0.0
    %2739 = vmatprep.subr.mxu0 0.0
    %2740 = vmatpush1.msra.mxu0 0.0
    %2741 = vmatprep.subr.mxu0 0.0
    %2742 = vmatpush1.msra.mxu0 0.0
    %2743 = vmatprep.subr.mxu0 0.0
    %2744 = vmatpush1.msra.mxu0 0.0
    %2745 = vmatprep.subr.mxu0 0.0
    %2746 = vmatpush1.msra.mxu0 0.0
    %2747 = vmatprep.subr.mxu0 0.0
    %2748 = vmatpush1.msra.mxu0 0.0
    %2749 = vmatprep.subr.mxu0 0.0
    %2750 = vmatpush1.msra.mxu0 0.0
    %2751 = vmatprep.subr.mxu0 0.0
    %2752 = vmatpush1.msra.mxu0 0.0
    %2753 = vmatprep.subr.mxu0 0.0
    %2754 = vmatpush1.msra.mxu0 0.0
    %2755 = vmatprep.subr.mxu0 0.0
    %2756 = vmatpush1.msra.mxu0 0.0
    %2757 = vmatprep.subr.mxu0 0.0
    %2758 = vmatpush1.msra.mxu0 0.0
    %2759 = vmatprep.subr.mxu0 0.0
    %2760 = vmatpush1.msra.mxu0 0.0
    %2761 = vmatprep.subr.mxu0 0.0
    %2762 = vmatpush1.msra.mxu0 0.0
    %2763 = vmatprep.subr.mxu0 0.0
    %2764 = vmatpush1.msra.mxu0 0.0
    %2765 = vmatprep.subr.mxu0 0.0
    %2766 = vmatpush1.msra.mxu0 0.0
    %2767 = vmatprep.subr.mxu0 0.0
    %2768 = vmatpush1.msra.mxu0 0.0
    %2769 = vmatprep.subr.mxu0 0.0
    %2770 = vmatpush1.msra.mxu0 0.0
    %2771 = vmatprep.subr.mxu0 0.0
    %2772 = vmatpush1.msra.mxu0 0.0
    %2773 = vmatprep.subr.mxu0 0.0
    %2774 = vmatpush1.msra.mxu0 0.0
    %2775 = vmatprep.subr.mxu0 0.0
    %2776 = vmatpush1.msra.mxu0 0.0
    %2777 = vmatprep.subr.mxu0 0.0
    %2778 = vmatpush1.msra.mxu0 0.0
    %2779 = vmatprep.subr.mxu0 0.0
    %2780 = vmatpush1.msra.mxu0 0.0
    %2781 = vmatprep.subr.mxu0 0.0
    %2782 = vmatpush1.msra.mxu0 0.0
    %2783 = vmatprep.subr.mxu0 0.0
    %2784 = vmatpush1.msra.mxu0 0.0
    %2785 = vmatprep.subr.mxu0 0.0
    %2786 = vmatpush1.msra.mxu0 0.0
    %2787 = vmatprep.subr.mxu0 0.0
    %2788 = vmatpush1.msra.mxu0 0.0
    %2789 = vmatprep.subr.mxu0 0.0
    %2790 = vmatpush1.msra.mxu0 0.0
    %2791 = vmatprep.subr.mxu0 0.0
    %2792 = vmatpush1.msra.mxu0 0.0
    %2793 = vmatprep.mubr.f32.mxu0 0.0
    %2794 = vmatmul.mubr.f32.gmra.mrb[0].mxu0 %v2727
    %v2795 = vpop.f32.mrb[0].mxu0
    %v2796 = vadd.f32 %v2692, %v2795
    %v2797 = vpop.f32.mrb[0].mxu0
    %2798 = vdwg.mxu0
    %2799 = vst [vmem:[#allocation2] sm:$0x3] %v2796
    // Predicated region
    $region26: #{bert_classifier_forward.1} parent=1 // pred_check
      _
    $region27: #{bert_classifier_forward.1} parent=1 // pred_check_branch
      %2801 = sbr.rel (0) target = $region29
    $region28: #{bert_classifier_forward.1} parent=1 // pred_region
      %s2803 = ssub.s32 32, 32
      %2804 = vsyncadd [#allocation3], %s2803
      %s2806 = sshll.u32 [#allocation2], 4
      %s2807 = int_to_ptr.vmem [resolvable:$true] %s2806
      %2809 = dma.vmem_to_hbm [thread:$0]  %s2807, 32, %s6, [#allocation3]
    $region29: #{bert_classifier_forward.1} parent=1 // pred_fallthru
      _
    // Predicated region
    $region30: #{bert_classifier_forward.1} parent=1 // pred_check
      _
    $region31: #{bert_classifier_forward.1} parent=1 // pred_check_branch
      %2811 = sbr.rel (0) target = $region33
    $region32: #{bert_classifier_forward.1} parent=1 // pred_region
      %2812 = dma.done [#allocation3], 32
    $region33: #{bert_classifier_forward.1} parent=1 // pred_fallthru
      _
    %2813 = vsyncpa [#allocation3], 1

</llo_original>
